<compile_context>
chip_gen: v5e
topology: v5e:2x2
jax: 0.10.0
libtpu: 0.0.40
codegen_flags: <defaults>
</compile_context>

<pallas_src>
import functools
import math

import jax
import jax.numpy as jnp
from jax import lax
from jax.experimental import pallas as pl
from jax.experimental.pallas import tpu as pltpu

NEG_INF = -10000.0   # matches masked_fill(mask == 0, -10000)
LN_EPS = 1e-12       # matches the reference custom LayerNorm eps


def _largest_divisor_le(n, cap):
    for t in range(min(n, cap), 0, -1):
        if n % t == 0:
            return t
    return 1


# ----------------------------- kernel helpers -----------------------------

def _layernorm(v, gamma, beta):
    # v: (TB, S, D) f32 ; gamma/beta: (1, D) f32
    mu = jnp.mean(v, axis=-1, keepdims=True)
    var = jnp.mean(jnp.square(v - mu), axis=-1, keepdims=True)
    return (v - mu) * lax.rsqrt(var + LN_EPS) * gamma + beta


def _mha(q_in, kv_in, mask_keep, wq, bq, wk, bk, wv, bv, wo, bo, num_head):
    """Multi-head attention on (TB, S, D) activations.

    wq/wk/wv/wo are full (D, D) bf16 matrices; bq/bk/bv/bo are (1, D) f32.
    The four projections run as full-width MXU matmuls; per-head score/context
    work uses static lane slices of the projected Q/K/V.
    """
    TB, Sq, D = q_in.shape
    Sk = kv_in.shape[1]
    H = num_head
    hd = D // H
    scale = 1.0 / math.sqrt(hd)

    q2 = q_in.reshape(TB * Sq, D).astype(jnp.bfloat16)
    kv2 = kv_in.reshape(TB * Sk, D).astype(jnp.bfloat16)

    # Full-width projections: (rows, D) @ (D, D), f32 accumulation.
    q = (jnp.dot(q2, wq, preferred_element_type=jnp.float32) + bq)
    k = (jnp.dot(kv2, wk, preferred_element_type=jnp.float32) + bk)
    v = (jnp.dot(kv2, wv, preferred_element_type=jnp.float32) + bv)
    q = q.reshape(TB, Sq, D).astype(jnp.bfloat16)
    k = k.reshape(TB, Sk, D).astype(jnp.bfloat16)
    v = v.reshape(TB, Sk, D).astype(jnp.bfloat16)

    # TODO(synk): replace this static head unroll + materialized score tile
    #             with a KV-tiled online-softmax fori_loop for long S / big H.
    out = jnp.zeros((TB * Sq, D), jnp.float32)
    for h in range(H):
        lo = h * hd
        qh = q[:, :, lo:lo + hd]
        kh = k[:, :, lo:lo + hd]
        vh = v[:, :, lo:lo + hd]
        sc = jnp.einsum("bqd,bkd->bqk", qh, kh,
                        preferred_element_type=jnp.float32) * scale
        sc = jnp.where(mask_keep, sc, NEG_INF)
        sc = sc - jnp.max(sc, axis=-1, keepdims=True)
        p = jnp.exp(sc)
        # exact reciprocal (approx=False) of the small (TB, Sq, 1) denominator
        p = p * pl.reciprocal(jnp.sum(p, axis=-1, keepdims=True))
        ctx = jnp.einsum("bqk,bkd->bqd", p.astype(jnp.bfloat16), vh,
                         preferred_element_type=jnp.float32)
        # concat(heads) @ Wo  ==  sum_h  head_h @ Wo[rows of head h]
        out = out + jnp.dot(ctx.reshape(TB * Sq, hd).astype(jnp.bfloat16),
                            wo[lo:lo + hd, :],
                            preferred_element_type=jnp.float32)
    return (out + bo).reshape(TB, Sq, D)


# ----------------------------- Pallas kernels ------------------------------

def decoder_stack_kernel(num_head, *refs):
    (x_ref, enc_ref, tmask_ref, smask_ref,
     wq1, bq1, wk1, bk1, wv1, bv1, wo1, bo1, g1, be1,
     wq2, bq2, wk2, bk2, wv2, bv2, wo2, bo2, g2, be2,
     wf1, bf1, wf2, bf2, g3, be3,
     o_ref, h_ref) = refs

    layer = pl.program_id(1)

    # Initialize the residual-stream carry at the first layer of the block.
    @pl.when(layer == 0)
    def _():
        h_ref[...] = x_ref[...]

    x = h_ref[...]                                        # (TB, S_t, D) f32
    tkeep = tmask_ref[...].astype(jnp.float32) != 0.0     # keep where mask != 0
    skeep = smask_ref[...].astype(jnp.float32) != 0.0

    # 1) masked self-attention -> (dropout = identity) -> add & norm
    sa = _mha(x, x, tkeep, wq1[0], bq1[0], wk1[0], bk1[0], wv1[0], bv1[0],
              wo1[0], bo1[0], num_head)
    x1 = _layernorm(sa + x, g1[0], be1[0])

    # 2) encoder-decoder cross-attention -> add & norm
    ca = _mha(x1, enc_ref[...], skeep, wq2[0], bq2[0], wk2[0], bk2[0],
              wv2[0], bv2[0], wo2[0], bo2[0], num_head)
    x2 = _layernorm(ca + x1, g2[0], be2[0])

    # 3) position-wise FFN (linear -> relu -> linear) -> add & norm
    TB, S, D = x2.shape
    x2r = x2.reshape(TB * S, D).astype(jnp.bfloat16)
    hmid = jnp.dot(x2r, wf1[0], preferred_element_type=jnp.float32) + bf1[0]
    hmid = jnp.maximum(hmid, 0.0)
    ff = jnp.dot(hmid.astype(jnp.bfloat16), wf2[0],
                 preferred_element_type=jnp.float32) + bf2[0]
    x3 = _layernorm(ff.reshape(TB, S, D) + x2, g3[0], be3[0])

    h_ref[...] = x3                                       # carry to next layer

    @pl.when(layer == pl.num_programs(1) - 1)
    def _():
        o_ref[...] = x3.astype(o_ref.dtype)               # bf16 writeback


def linear_kernel(x_ref, w_ref, b_ref, o_ref):
    # x_ref already bf16 -> no in-kernel cast of the activation tile.
    o_ref[...] = (jnp.dot(x_ref[...], w_ref[...],
                          preferred_element_type=jnp.float32)
                  + b_ref[...]).astype(o_ref.dtype)


# ----------------------------- wrappers ------------------------------------

def run_decoder_stack(x, enc, tmask, smask, stacked, num_head, num_layers):
    B, S_t, D = x.shape
    S_s = enc.shape[1]

    # Large TB amortizes per-layer weight streaming (weights are re-DMA'd once
    # per batch block); keep >= 2 blocks when B allows so the "parallel" batch
    # axis can shard across v7x's two TensorCores.
    tb_cap = max(1, 512 // max(S_t, 1))
    if B >= 2:
        tb_cap = min(tb_cap, max(1, B // 2))
    TB = _largest_divisor_le(B, tb_cap)

    def _act_spec(s1, s2):
        return pl.BlockSpec((TB, s1, s2), lambda b, l: (b, 0, 0))

    def _w_spec(arr, mode=None):
        shape = (1,) + arr.shape[1:]
        if mode is None:
            return pl.BlockSpec(shape, lambda b, l: (l, 0, 0))
        return pl.BlockSpec(shape, lambda b, l: (l, 0, 0), pipeline_mode=mode)

    # ---- explicit VMEM budget (inputs x2 buffers + weights + out + scratch) ----
    act_bytes = 2 * (TB * S_t * D * 4        # x f32
                     + TB * S_s * D * 2      # enc bf16
                     + TB * S_t * S_t * 2    # trg mask bf16
                     + TB * S_t * S_s * 2)   # src mask bf16
    out_bytes = 2 * TB * S_t * D * 2         # bf16 output block
    scratch_bytes = TB * S_t * D * 4         # f32 residual carry
    w_layer = sum(math.prod(w.shape[1:]) * w.dtype.itemsize for w in stacked)
    ffn_w = sum(math.prod(stacked[i].shape[1:]) * stacked[i].dtype.itemsize
                for i in (20, 22))           # wf1, wf2 dominate at big D/F

    ffn_mode = None
    w_buf = 2 * w_layer
    if act_bytes + out_bytes + scratch_bytes + w_buf > (48 << 20):
        # v7x (64 MiB physical VMEM): single-buffer the large FFN weight mats.
        ffn_mode = pl.Buffered(1)
        w_buf = 2 * (w_layer - ffn_w) + ffn_w
    vmem_limit = act_bytes + out_bytes + scratch_bytes + w_buf
    vmem_limit = int(min(max(int(vmem_limit * 1.3) + (2 << 20), 32 << 20),
                         128 << 20))

    in_specs = [_act_spec(S_t, D), _act_spec(S_s, D),
                _act_spec(S_t, S_t), _act_spec(S_t, S_s)]
    for idx, w in enumerate(stacked):
        in_specs.append(_w_spec(w, ffn_mode if idx in (20, 22) else None))

    kernel = functools.partial(decoder_stack_kernel, num_head)
    return pl.pallas_call(
        kernel,
        out_shape=jax.ShapeDtypeStruct((B, S_t, D), jnp.bfloat16),
        grid=(B // TB, num_layers),
        in_specs=in_specs,
        out_specs=pl.BlockSpec((TB, S_t, D), lambda b, l: (b, 0, 0)),
        scratch_shapes=[pltpu.VMEM((TB, S_t, D), jnp.float32)],
        compiler_params=pltpu.CompilerParams(
            dimension_semantics=("parallel", "arbitrary"),
            vmem_limit_bytes=vmem_limit),
    )(x.astype(jnp.float32), enc.astype(jnp.bfloat16),
      tmask.astype(jnp.bfloat16), smask.astype(jnp.bfloat16), *stacked)


def run_final_linear(x, w, b):
    # x: (B, S, D) bf16 ; w: (D, V) bf16 ; b: (1, V) f32 -> f32 logits
    B, S, D = x.shape
    V = w.shape[1]
    rows = B * S
    x2 = x.reshape(rows, D)

    TM = _largest_divisor_le(rows, 1024)
    TN = V
    for cand in (2048, 1024, 512, 256, 128):
        if V % cand == 0:
            TN = cand
            break

    vmem_need = 2 * (TM * D * 2 + D * TN * 2 + TN * 4 + TM * TN * 4)
    vmem_limit = int(min(max(int(vmem_need * 1.3) + (2 << 20), 32 << 20),
                         128 << 20))

    # Vocab axis OUTER, rows INNER: the (D, TN) weight tile's block index is
    # constant across the inner row loop, so each weight tile is read from HBM
    # once instead of once per row tile.
    out = pl.pallas_call(
        linear_kernel,
        out_shape=jax.ShapeDtypeStruct((rows, V), jnp.float32),
        grid=(V // TN, rows // TM),
        in_specs=[pl.BlockSpec((TM, D), lambda n, m: (m, 0)),
                  pl.BlockSpec((D, TN), lambda n, m: (0, n)),
                  pl.BlockSpec((1, TN), lambda n, m: (0, n))],
        out_specs=pl.BlockSpec((TM, TN), lambda n, m: (m, n)),
        compiler_params=pltpu.CompilerParams(
            dimension_semantics=("parallel", "parallel"),
            vmem_limit_bytes=vmem_limit),
    )(x2, w, b)
    return out.reshape(B, S, V)


# ----------------------------- parameters ----------------------------------

def sinusoid_pos_encoding(max_len, d_model):
    pos = jnp.arange(max_len, dtype=jnp.float32)[:, None]
    i2 = jnp.arange(0, d_model, 2, dtype=jnp.float32)
    div = jnp.power(10000.0, i2 / d_model)
    pe = jnp.zeros((max_len, d_model), jnp.float32)
    pe = pe.at[:, 0::2].set(jnp.sin(pos / div))
    pe = pe.at[:, 1::2].set(jnp.cos(pos / div))
    return pe


def init_params(key, vocab, max_len, d_model, ffn_hidden, num_head, num_layers):
    L, D, F = num_layers, d_model, ffn_hidden
    keys = iter(jax.random.split(key, 64))

    def dense(shape):
        return 0.02 * jax.random.normal(next(keys), shape, jnp.float32)

    emb = dense((vocab, d_model)).at[1].set(0.0)   # nn.Embedding padding_idx=1

    def attn_block():
        wq = dense((L, D, D)).astype(jnp.bfloat16)
        wk = dense((L, D, D)).astype(jnp.bfloat16)
        wv = dense((L, D, D)).astype(jnp.bfloat16)
        wo = dense((L, D, D)).astype(jnp.bfloat16)
        bq = dense((L, 1, D))
        bk = dense((L, 1, D))
        bv = dense((L, 1, D))
        bo = dense((L, 1, D))
        gamma = jnp.ones((L, 1, D), jnp.float32)
        beta = jnp.zeros((L, 1, D), jnp.float32)
        return [wq, bq, wk, bk, wv, bv, wo, bo, gamma, beta]

    ffn = [dense((L, D, F)).astype(jnp.bfloat16), dense((L, 1, F)),
           dense((L, F, D)).astype(jnp.bfloat16), dense((L, 1, D)),
           jnp.ones((L, 1, D), jnp.float32), jnp.zeros((L, 1, D), jnp.float32)]

    layer_stack = attn_block() + attn_block() + ffn   # order matches kernel refs

    lin_w = dense((d_model, vocab)).astype(jnp.bfloat16)
    lin_b = dense((1, vocab))
    return {"emb_table": emb,
            "pos_enc": sinusoid_pos_encoding(max_len, d_model),
            "layer_stack": layer_stack,
            "lin_w": lin_w, "lin_b": lin_b}


def decoder_forward(trg_ids, enc_src, trg_mask, src_mask, params,
                    num_head, num_layers):
    B, S_t = trg_ids.shape
    # TransformerEmbedding: token gather + sinusoidal positional encoding
    # (data-dependent gather is plain-JAX glue; dropout is identity in eval).
    x = params["emb_table"][trg_ids] + params["pos_enc"][:S_t][None, :, :]
    h = run_decoder_stack(x.astype(jnp.float32), enc_src, trg_mask, src_mask,
                          params["layer_stack"], num_head, num_layers)
    return run_final_linear(h, params["lin_w"], params["lin_b"])


# ----------------------------- main ----------------------------------------

if __name__ == "__main__":
    B, S_t, S_s = 2, 8, 8
    d_model, ffn_hidden = 32, 64
    num_head, num_layers = 2, 2
    dec_voc_size, max_len = 50, 16

    root = jax.random.PRNGKey(0)
    k_tok, k_enc, k_par = jax.random.split(root, 3)

    trg = jax.random.randint(k_tok, (B, S_t), 0, dec_voc_size)
    enc_src = jax.random.normal(k_enc, (B, S_s, d_model), jnp.float32)

    # target mask: causal (lower-triangular); source mask: all visible
    causal = jnp.tril(jnp.ones((S_t, S_t), jnp.float32))
    trg_mask = jnp.broadcast_to(causal, (B, S_t, S_t))
    src_mask = jnp.ones((B, S_t, S_s), jnp.float32)

    params = init_params(k_par, dec_voc_size, max_len, d_model,
                         ffn_hidden, num_head, num_layers)

    out = decoder_forward(trg, enc_src, trg_mask, src_mask, params,
                          num_head, num_layers)
    out = jax.block_until_ready(out)
    assert out.shape == (B, S_t, dec_voc_size)
    assert bool(jnp.all(jnp.isfinite(out)))
    print("KERNEL_OK")
</pallas_src>

<mosaic_0001>
module attributes {stable_mosaic.version = 11 : i64} {
  func.func @decoder_stack_kernel(%arg0: i32, %arg1: i32, %arg2: memref<1x8x32xf32, #tpu.memory_space<vmem>>, %arg3: memref<1x8x32xbf16, #tpu.memory_space<vmem>>, %arg4: memref<1x8x8xbf16, #tpu.memory_space<vmem>>, %arg5: memref<1x8x8xbf16, #tpu.memory_space<vmem>>, %arg6: memref<1x32x32xbf16, #tpu.memory_space<vmem>>, %arg7: memref<1x1x32xf32, #tpu.memory_space<vmem>>, %arg8: memref<1x32x32xbf16, #tpu.memory_space<vmem>>, %arg9: memref<1x1x32xf32, #tpu.memory_space<vmem>>, %arg10: memref<1x32x32xbf16, #tpu.memory_space<vmem>>, %arg11: memref<1x1x32xf32, #tpu.memory_space<vmem>>, %arg12: memref<1x32x32xbf16, #tpu.memory_space<vmem>>, %arg13: memref<1x1x32xf32, #tpu.memory_space<vmem>>, %arg14: memref<1x1x32xf32, #tpu.memory_space<vmem>>, %arg15: memref<1x1x32xf32, #tpu.memory_space<vmem>>, %arg16: memref<1x32x32xbf16, #tpu.memory_space<vmem>>, %arg17: memref<1x1x32xf32, #tpu.memory_space<vmem>>, %arg18: memref<1x32x32xbf16, #tpu.memory_space<vmem>>, %arg19: memref<1x1x32xf32, #tpu.memory_space<vmem>>, %arg20: memref<1x32x32xbf16, #tpu.memory_space<vmem>>, %arg21: memref<1x1x32xf32, #tpu.memory_space<vmem>>, %arg22: memref<1x32x32xbf16, #tpu.memory_space<vmem>>, %arg23: memref<1x1x32xf32, #tpu.memory_space<vmem>>, %arg24: memref<1x1x32xf32, #tpu.memory_space<vmem>>, %arg25: memref<1x1x32xf32, #tpu.memory_space<vmem>>, %arg26: memref<1x32x64xbf16, #tpu.memory_space<vmem>>, %arg27: memref<1x1x64xf32, #tpu.memory_space<vmem>>, %arg28: memref<1x64x32xbf16, #tpu.memory_space<vmem>>, %arg29: memref<1x1x32xf32, #tpu.memory_space<vmem>>, %arg30: memref<1x1x32xf32, #tpu.memory_space<vmem>>, %arg31: memref<1x1x32xf32, #tpu.memory_space<vmem>>, %arg32: memref<1x8x32xbf16, #tpu.memory_space<vmem>>, %arg33: memref<1x8x32xf32, #tpu.memory_space<vmem>>) attributes {dimension_semantics = [#tpu.dimension_semantics<parallel>, #tpu.dimension_semantics<arbitrary>], iteration_bounds = array<i64: 2, 2>, scalar_prefetch = 0 : i64, scratch_operands = 1 : i64, tpu.core_type = #tpu.core_type<tc>, window_params = [{transform_indices = @transform_0, window_bounds = array<i64: 1, 8, 32>}, {transform_indices = @transform_1, window_bounds = array<i64: 1, 8, 32>}, {transform_indices = @transform_2, window_bounds = array<i64: 1, 8, 8>}, {transform_indices = @transform_3, window_bounds = array<i64: 1, 8, 8>}, {transform_indices = @transform_4, window_bounds = array<i64: 1, 32, 32>}, {transform_indices = @transform_5, window_bounds = array<i64: 1, 1, 32>}, {transform_indices = @transform_6, window_bounds = array<i64: 1, 32, 32>}, {transform_indices = @transform_7, window_bounds = array<i64: 1, 1, 32>}, {transform_indices = @transform_8, window_bounds = array<i64: 1, 32, 32>}, {transform_indices = @transform_9, window_bounds = array<i64: 1, 1, 32>}, {transform_indices = @transform_10, window_bounds = array<i64: 1, 32, 32>}, {transform_indices = @transform_11, window_bounds = array<i64: 1, 1, 32>}, {transform_indices = @transform_12, window_bounds = array<i64: 1, 1, 32>}, {transform_indices = @transform_13, window_bounds = array<i64: 1, 1, 32>}, {transform_indices = @transform_14, window_bounds = array<i64: 1, 32, 32>}, {transform_indices = @transform_15, window_bounds = array<i64: 1, 1, 32>}, {transform_indices = @transform_16, window_bounds = array<i64: 1, 32, 32>}, {transform_indices = @transform_17, window_bounds = array<i64: 1, 1, 32>}, {transform_indices = @transform_18, window_bounds = array<i64: 1, 32, 32>}, {transform_indices = @transform_19, window_bounds = array<i64: 1, 1, 32>}, {transform_indices = @transform_20, window_bounds = array<i64: 1, 32, 32>}, {transform_indices = @transform_21, window_bounds = array<i64: 1, 1, 32>}, {transform_indices = @transform_22, window_bounds = array<i64: 1, 1, 32>}, {transform_indices = @transform_23, window_bounds = array<i64: 1, 1, 32>}, {transform_indices = @transform_24, window_bounds = array<i64: 1, 32, 64>}, {transform_indices = @transform_25, window_bounds = array<i64: 1, 1, 64>}, {transform_indices = @transform_26, window_bounds = array<i64: 1, 64, 32>}, {transform_indices = @transform_27, window_bounds = array<i64: 1, 1, 32>}, {transform_indices = @transform_28, window_bounds = array<i64: 1, 1, 32>}, {transform_indices = @transform_29, window_bounds = array<i64: 1, 1, 32>}, {transform_indices = @transform_30, window_bounds = array<i64: 1, 8, 32>}]} {
    %c0_i32 = arith.constant 0 : i32
    %0 = arith.cmpi eq, %arg1, %c0_i32 : i32
    %1 = arith.extui %0 : i1 to i32
    %c0_i32_0 = arith.constant 0 : i32
    %2 = arith.cmpi ne, %1, %c0_i32_0 : i32
    scf.if %2 {
      %c0_149 = arith.constant 0 : index
      %c0_150 = arith.constant 0 : index
      %c0_151 = arith.constant 0 : index
      %301 = vector.load %arg2[%c0_149, %c0_150, %c0_151] : memref<1x8x32xf32, #tpu.memory_space<vmem>>, vector<1x8x32xf32>
      %c0_152 = arith.constant 0 : index
      %c0_153 = arith.constant 0 : index
      %c0_154 = arith.constant 0 : index
      %302 = vector.load %arg33[%c0_152, %c0_153, %c0_154] : memref<1x8x32xf32, #tpu.memory_space<vmem>>, vector<1x8x32xf32>
      tpu.vector_store %arg33[%c0_152, %c0_153, %c0_154], %301 {strides = array<i32>} : memref<1x8x32xf32, #tpu.memory_space<vmem>>, vector<1x8x32xf32>,
    } else {
    }
    %c0 = arith.constant 0 : index
    %c0_1 = arith.constant 0 : index
    %c0_2 = arith.constant 0 : index
    %3 = vector.load %arg33[%c0, %c0_1, %c0_2] : memref<1x8x32xf32, #tpu.memory_space<vmem>>, vector<1x8x32xf32>
    %c0_3 = arith.constant 0 : index
    %c0_4 = arith.constant 0 : index
    %c0_5 = arith.constant 0 : index
    %4 = vector.load %arg4[%c0_3, %c0_4, %c0_5] : memref<1x8x8xbf16, #tpu.memory_space<vmem>>, vector<1x8x8xbf16>
    %5 = arith.extf %4 : vector<1x8x8xbf16> to vector<1x8x8xf32>
    %cst = arith.constant 0.000000e+00 : f32
    %6 = vector.broadcast %cst : f32 to vector<1x8x8xf32>
    %7 = arith.cmpf one, %5, %6 : vector<1x8x8xf32>
    %c0_6 = arith.constant 0 : index
    %c0_7 = arith.constant 0 : index
    %c0_8 = arith.constant 0 : index
    %8 = vector.load %arg5[%c0_6, %c0_7, %c0_8] : memref<1x8x8xbf16, #tpu.memory_space<vmem>>, vector<1x8x8xbf16>
    %9 = arith.extf %8 : vector<1x8x8xbf16> to vector<1x8x8xf32>
    %cst_9 = arith.constant 0.000000e+00 : f32
    %10 = vector.broadcast %cst_9 : f32 to vector<1x8x8xf32>
    %11 = arith.cmpf one, %9, %10 : vector<1x8x8xf32>
    %c0_10 = arith.constant 0 : index
    %c0_11 = arith.constant 0 : index
    %c0_12 = arith.constant 0 : index
    %12 = vector.load %arg6[%c0_10, %c0_11, %c0_12] : memref<1x32x32xbf16, #tpu.memory_space<vmem>>, vector<1x32x32xbf16>
    %13 = vector.shape_cast %12 : vector<1x32x32xbf16> to vector<32x32xbf16>
    %c0_13 = arith.constant 0 : index
    %c0_14 = arith.constant 0 : index
    %c0_15 = arith.constant 0 : index
    %14 = vector.load %arg7[%c0_13, %c0_14, %c0_15] : memref<1x1x32xf32, #tpu.memory_space<vmem>>, vector<1x1x32xf32>
    %15 = vector.shape_cast %14 : vector<1x1x32xf32> to vector<1x32xf32>
    %c0_16 = arith.constant 0 : index
    %c0_17 = arith.constant 0 : index
    %c0_18 = arith.constant 0 : index
    %16 = vector.load %arg8[%c0_16, %c0_17, %c0_18] : memref<1x32x32xbf16, #tpu.memory_space<vmem>>, vector<1x32x32xbf16>
    %17 = vector.shape_cast %16 : vector<1x32x32xbf16> to vector<32x32xbf16>
    %c0_19 = arith.constant 0 : index
    %c0_20 = arith.constant 0 : index
    %c0_21 = arith.constant 0 : index
    %18 = vector.load %arg9[%c0_19, %c0_20, %c0_21] : memref<1x1x32xf32, #tpu.memory_space<vmem>>, vector<1x1x32xf32>
    %19 = vector.shape_cast %18 : vector<1x1x32xf32> to vector<1x32xf32>
    %c0_22 = arith.constant 0 : index
    %c0_23 = arith.constant 0 : index
    %c0_24 = arith.constant 0 : index
    %20 = vector.load %arg10[%c0_22, %c0_23, %c0_24] : memref<1x32x32xbf16, #tpu.memory_space<vmem>>, vector<1x32x32xbf16>
    %21 = vector.shape_cast %20 : vector<1x32x32xbf16> to vector<32x32xbf16>
    %c0_25 = arith.constant 0 : index
    %c0_26 = arith.constant 0 : index
    %c0_27 = arith.constant 0 : index
    %22 = vector.load %arg11[%c0_25, %c0_26, %c0_27] : memref<1x1x32xf32, #tpu.memory_space<vmem>>, vector<1x1x32xf32>
    %23 = vector.shape_cast %22 : vector<1x1x32xf32> to vector<1x32xf32>
    %c0_28 = arith.constant 0 : index
    %c0_29 = arith.constant 0 : index
    %c0_30 = arith.constant 0 : index
    %24 = vector.load %arg12[%c0_28, %c0_29, %c0_30] : memref<1x32x32xbf16, #tpu.memory_space<vmem>>, vector<1x32x32xbf16>
    %25 = vector.shape_cast %24 : vector<1x32x32xbf16> to vector<32x32xbf16>
    %c0_31 = arith.constant 0 : index
    %c0_32 = arith.constant 0 : index
    %c0_33 = arith.constant 0 : index
    %26 = vector.load %arg13[%c0_31, %c0_32, %c0_33] : memref<1x1x32xf32, #tpu.memory_space<vmem>>, vector<1x1x32xf32>
    %27 = vector.shape_cast %26 : vector<1x1x32xf32> to vector<1x32xf32>
    %28 = vector.shape_cast %3 : vector<1x8x32xf32> to vector<8x32xf32>
    %29 = arith.truncf %28 : vector<8x32xf32> to vector<8x32xbf16>
    %30 = vector.shape_cast %3 : vector<1x8x32xf32> to vector<8x32xf32>
    %31 = arith.truncf %30 : vector<8x32xf32> to vector<8x32xbf16>
    %cst_34 = arith.constant dense<0.000000e+00> : vector<8x32xf32>
    %32 = tpu.matmul %29, %13, %cst_34 {dimension_numbers = #tpu.dot_dimension_numbers<[1], [0], [0], [1], [0, 0, 1, 1], [], []>} : vector<8x32xbf16>, vector<32x32xbf16>, vector<8x32xf32> -> vector<8x32xf32>
    %33 = vector.broadcast %15 : vector<1x32xf32> to vector<8x32xf32>
    %34 = arith.addf %32, %33 : vector<8x32xf32>
    %cst_35 = arith.constant dense<0.000000e+00> : vector<8x32xf32>
    %35 = tpu.matmul %31, %17, %cst_35 {dimension_numbers = #tpu.dot_dimension_numbers<[1], [0], [0], [1], [0, 0, 1, 1], [], []>} : vector<8x32xbf16>, vector<32x32xbf16>, vector<8x32xf32> -> vector<8x32xf32>
    %36 = vector.broadcast %19 : vector<1x32xf32> to vector<8x32xf32>
    %37 = arith.addf %35, %36 : vector<8x32xf32>
    %cst_36 = arith.constant dense<0.000000e+00> : vector<8x32xf32>
    %38 = tpu.matmul %31, %21, %cst_36 {dimension_numbers = #tpu.dot_dimension_numbers<[1], [0], [0], [1], [0, 0, 1, 1], [], []>} : vector<8x32xbf16>, vector<32x32xbf16>, vector<8x32xf32> -> vector<8x32xf32>
    %39 = vector.broadcast %23 : vector<1x32xf32> to vector<8x32xf32>
    %40 = arith.addf %38, %39 : vector<8x32xf32>
    %41 = vector.shape_cast %34 : vector<8x32xf32> to vector<1x8x32xf32>
    %42 = arith.truncf %41 : vector<1x8x32xf32> to vector<1x8x32xbf16>
    %43 = vector.shape_cast %37 : vector<8x32xf32> to vector<1x8x32xf32>
    %44 = arith.truncf %43 : vector<1x8x32xf32> to vector<1x8x32xbf16>
    %45 = vector.shape_cast %40 : vector<8x32xf32> to vector<1x8x32xf32>
    %46 = arith.truncf %45 : vector<1x8x32xf32> to vector<1x8x32xbf16>
    %cst_37 = arith.constant 0.000000e+00 : f32
    %47 = vector.broadcast %cst_37 : f32 to vector<8x32xf32>
    %48 = vector.extract_strided_slice %42 {offsets = [0, 0, 0], sizes = [1, 8, 16], strides = [1, 1, 1]} : vector<1x8x32xbf16> to vector<1x8x16xbf16>
    %49 = vector.extract_strided_slice %44 {offsets = [0, 0, 0], sizes = [1, 8, 16], strides = [1, 1, 1]} : vector<1x8x32xbf16> to vector<1x8x16xbf16>
    %50 = vector.extract_strided_slice %46 {offsets = [0, 0, 0], sizes = [1, 8, 16], strides = [1, 1, 1]} : vector<1x8x32xbf16> to vector<1x8x16xbf16>
    "tpu.trace_start"() <{level = 10 : i32, message = "bqd,bkd->bqk"}> : () -> ()
    %cst_38 = arith.constant dense<0.000000e+00> : vector<1x8x8xf32>
    %51 = tpu.matmul %48, %49, %cst_38 {dimension_numbers = #tpu.dot_dimension_numbers<[2], [2], [1], [1], [0, 0, 0, 1, 1, 1], [0], [0]>} : vector<1x8x16xbf16>, vector<1x8x16xbf16>, vector<1x8x8xf32> -> vector<1x8x8xf32>
    "tpu.trace_stop"() : () -> ()
    %cst_39 = arith.constant 2.500000e-01 : f32
    %52 = vector.broadcast %cst_39 : f32 to vector<1x8x8xf32>
    %53 = arith.mulf %51, %52 : vector<1x8x8xf32>
    %cst_40 = arith.constant -1.000000e+04 : f32
    %54 = vector.broadcast %cst_40 : f32 to vector<1x8x8xf32>
    %55 = arith.select %7, %53, %54 : vector<1x8x8xi1>, vector<1x8x8xf32>
    %cst_41 = arith.constant dense<0xFF800000> : vector<1x8xf32>
    %56 = vector.multi_reduction <maximumf>, %55, %cst_41 [2] : vector<1x8x8xf32> to vector<1x8xf32>
    %57 = vector.shape_cast %56 : vector<1x8xf32> to vector<1x8x1xf32>
    %58 = vector.broadcast %57 : vector<1x8x1xf32> to vector<1x8x8xf32>
    %59 = arith.subf %55, %58 : vector<1x8x8xf32>
    %60 = math.exp %59 : vector<1x8x8xf32>
    %cst_42 = arith.constant dense<0.000000e+00> : vector<1x8xf32>
    %61 = vector.multi_reduction <add>, %60, %cst_42 [2] : vector<1x8x8xf32> to vector<1x8xf32>
    %62 = vector.shape_cast %61 : vector<1x8xf32> to vector<1x8x1xf32>
    %63 = tpu.reciprocal %62 : vector<1x8x1xf32> -> vector<1x8x1xf32>
    %64 = vector.broadcast %63 : vector<1x8x1xf32> to vector<1x8x8xf32>
    %65 = arith.mulf %60, %64 : vector<1x8x8xf32>
    %66 = arith.truncf %65 : vector<1x8x8xf32> to vector<1x8x8xbf16>
    "tpu.trace_start"() <{level = 10 : i32, message = "bqk,bkd->bqd"}> : () -> ()
    %cst_43 = arith.constant dense<0.000000e+00> : vector<1x8x16xf32>
    %67 = tpu.matmul %66, %50, %cst_43 {dimension_numbers = #tpu.dot_dimension_numbers<[2], [1], [1], [2], [0, 0, 0, 1, 1, 2], [0], [0]>} : vector<1x8x8xbf16>, vector<1x8x16xbf16>, vector<1x8x16xf32> -> vector<1x8x16xf32>
    "tpu.trace_stop"() : () -> ()
    %68 = vector.shape_cast %67 : vector<1x8x16xf32> to vector<8x16xf32>
    %69 = arith.truncf %68 : vector<8x16xf32> to vector<8x16xbf16>
    %70 = vector.extract_strided_slice %25 {offsets = [0, 0], sizes = [16, 32], strides = [1, 1]} : vector<32x32xbf16> to vector<16x32xbf16>
    %cst_44 = arith.constant dense<0.000000e+00> : vector<8x32xf32>
    %71 = tpu.matmul %69, %70, %cst_44 {dimension_numbers = #tpu.dot_dimension_numbers<[1], [0], [0], [1], [0, 0, 1, 1], [], []>} : vector<8x16xbf16>, vector<16x32xbf16>, vector<8x32xf32> -> vector<8x32xf32>
    %72 = arith.addf %47, %71 : vector<8x32xf32>
    %73 = vector.extract_strided_slice %42 {offsets = [0, 0, 16], sizes = [1, 8, 16], strides = [1, 1, 1]} : vector<1x8x32xbf16> to vector<1x8x16xbf16>
    %74 = vector.extract_strided_slice %44 {offsets = [0, 0, 16], sizes = [1, 8, 16], strides = [1, 1, 1]} : vector<1x8x32xbf16> to vector<1x8x16xbf16>
    %75 = vector.extract_strided_slice %46 {offsets = [0, 0, 16], sizes = [1, 8, 16], strides = [1, 1, 1]} : vector<1x8x32xbf16> to vector<1x8x16xbf16>
    "tpu.trace_start"() <{level = 10 : i32, message = "bqd,bkd->bqk"}> : () -> ()
    %cst_45 = arith.constant dense<0.000000e+00> : vector<1x8x8xf32>
    %76 = tpu.matmul %73, %74, %cst_45 {dimension_numbers = #tpu.dot_dimension_numbers<[2], [2], [1], [1], [0, 0, 0, 1, 1, 1], [0], [0]>} : vector<1x8x16xbf16>, vector<1x8x16xbf16>, vector<1x8x8xf32> -> vector<1x8x8xf32>
    "tpu.trace_stop"() : () -> ()
    %cst_46 = arith.constant 2.500000e-01 : f32
    %77 = vector.broadcast %cst_46 : f32 to vector<1x8x8xf32>
    %78 = arith.mulf %76, %77 : vector<1x8x8xf32>
    %cst_47 = arith.constant -1.000000e+04 : f32
    %79 = vector.broadcast %cst_47 : f32 to vector<1x8x8xf32>
    %80 = arith.select %7, %78, %79 : vector<1x8x8xi1>, vector<1x8x8xf32>
    %cst_48 = arith.constant dense<0xFF800000> : vector<1x8xf32>
    %81 = vector.multi_reduction <maximumf>, %80, %cst_48 [2] : vector<1x8x8xf32> to vector<1x8xf32>
    %82 = vector.shape_cast %81 : vector<1x8xf32> to vector<1x8x1xf32>
    %83 = vector.broadcast %82 : vector<1x8x1xf32> to vector<1x8x8xf32>
    %84 = arith.subf %80, %83 : vector<1x8x8xf32>
    %85 = math.exp %84 : vector<1x8x8xf32>
    %cst_49 = arith.constant dense<0.000000e+00> : vector<1x8xf32>
    %86 = vector.multi_reduction <add>, %85, %cst_49 [2] : vector<1x8x8xf32> to vector<1x8xf32>
    %87 = vector.shape_cast %86 : vector<1x8xf32> to vector<1x8x1xf32>
    %88 = tpu.reciprocal %87 : vector<1x8x1xf32> -> vector<1x8x1xf32>
    %89 = vector.broadcast %88 : vector<1x8x1xf32> to vector<1x8x8xf32>
    %90 = arith.mulf %85, %89 : vector<1x8x8xf32>
    %91 = arith.truncf %90 : vector<1x8x8xf32> to vector<1x8x8xbf16>
    "tpu.trace_start"() <{level = 10 : i32, message = "bqk,bkd->bqd"}> : () -> ()
    %cst_50 = arith.constant dense<0.000000e+00> : vector<1x8x16xf32>
    %92 = tpu.matmul %91, %75, %cst_50 {dimension_numbers = #tpu.dot_dimension_numbers<[2], [1], [1], [2], [0, 0, 0, 1, 1, 2], [0], [0]>} : vector<1x8x8xbf16>, vector<1x8x16xbf16>, vector<1x8x16xf32> -> vector<1x8x16xf32>
    "tpu.trace_stop"() : () -> ()
    %93 = vector.shape_cast %92 : vector<1x8x16xf32> to vector<8x16xf32>
    %94 = arith.truncf %93 : vector<8x16xf32> to vector<8x16xbf16>
    %95 = vector.extract_strided_slice %25 {offsets = [16, 0], sizes = [16, 32], strides = [1, 1]} : vector<32x32xbf16> to vector<16x32xbf16>
    %cst_51 = arith.constant dense<0.000000e+00> : vector<8x32xf32>
    %96 = tpu.matmul %94, %95, %cst_51 {dimension_numbers = #tpu.dot_dimension_numbers<[1], [0], [0], [1], [0, 0, 1, 1], [], []>} : vector<8x16xbf16>, vector<16x32xbf16>, vector<8x32xf32> -> vector<8x32xf32>
    %97 = arith.addf %72, %96 : vector<8x32xf32>
    %98 = vector.broadcast %27 : vector<1x32xf32> to vector<8x32xf32>
    %99 = arith.addf %97, %98 : vector<8x32xf32>
    %100 = vector.shape_cast %99 : vector<8x32xf32> to vector<1x8x32xf32>
    %101 = arith.addf %100, %3 : vector<1x8x32xf32>
    %c0_52 = arith.constant 0 : index
    %c0_53 = arith.constant 0 : index
    %c0_54 = arith.constant 0 : index
    %102 = vector.load %arg14[%c0_52, %c0_53, %c0_54] : memref<1x1x32xf32, #tpu.memory_space<vmem>>, vector<1x1x32xf32>
    %103 = vector.shape_cast %102 : vector<1x1x32xf32> to vector<1x32xf32>
    %c0_55 = arith.constant 0 : index
    %c0_56 = arith.constant 0 : index
    %c0_57 = arith.constant 0 : index
    %104 = vector.load %arg15[%c0_55, %c0_56, %c0_57] : memref<1x1x32xf32, #tpu.memory_space<vmem>>, vector<1x1x32xf32>
    %105 = vector.shape_cast %104 : vector<1x1x32xf32> to vector<1x32xf32>
    %cst_58 = arith.constant dense<0.000000e+00> : vector<1x8xf32>
    %106 = vector.multi_reduction <add>, %101, %cst_58 [2] : vector<1x8x32xf32> to vector<1x8xf32>
    %107 = vector.shape_cast %106 : vector<1x8xf32> to vector<1x8x1xf32>
    %cst_59 = arith.constant 3.200000e+01 : f32
    %108 = vector.broadcast %cst_59 : f32 to vector<1x8x1xf32>
    %109 = arith.divf %107, %108 : vector<1x8x1xf32>
    %110 = vector.broadcast %109 : vector<1x8x1xf32> to vector<1x8x32xf32>
    %111 = arith.subf %101, %110 : vector<1x8x32xf32>
    %112 = arith.mulf %111, %111 : vector<1x8x32xf32>
    %cst_60 = arith.constant dense<0.000000e+00> : vector<1x8xf32>
    %113 = vector.multi_reduction <add>, %112, %cst_60 [2] : vector<1x8x32xf32> to vector<1x8xf32>
    %114 = vector.shape_cast %113 : vector<1x8xf32> to vector<1x8x1xf32>
    %cst_61 = arith.constant 3.200000e+01 : f32
    %115 = vector.broadcast %cst_61 : f32 to vector<1x8x1xf32>
    %116 = arith.divf %114, %115 : vector<1x8x1xf32>
    %117 = vector.broadcast %109 : vector<1x8x1xf32> to vector<1x8x32xf32>
    %118 = arith.subf %101, %117 : vector<1x8x32xf32>
    %cst_62 = arith.constant 9.99999996E-13 : f32
    %119 = vector.broadcast %cst_62 : f32 to vector<1x8x1xf32>
    %120 = arith.addf %116, %119 : vector<1x8x1xf32>
    %121 = math.rsqrt %120 : vector<1x8x1xf32>
    %122 = vector.broadcast %121 : vector<1x8x1xf32> to vector<1x8x32xf32>
    %123 = arith.mulf %118, %122 : vector<1x8x32xf32>
    %124 = vector.shape_cast %103 : vector<1x32xf32> to vector<1x1x32xf32>
    %125 = vector.broadcast %124 : vector<1x1x32xf32> to vector<1x8x32xf32>
    %126 = arith.mulf %123, %125 : vector<1x8x32xf32>
    %127 = vector.shape_cast %105 : vector<1x32xf32> to vector<1x1x32xf32>
    %128 = vector.broadcast %127 : vector<1x1x32xf32> to vector<1x8x32xf32>
    %129 = arith.addf %126, %128 : vector<1x8x32xf32>
    %c0_63 = arith.constant 0 : index
    %c0_64 = arith.constant 0 : index
    %c0_65 = arith.constant 0 : index
    %130 = vector.load %arg3[%c0_63, %c0_64, %c0_65] : memref<1x8x32xbf16, #tpu.memory_space<vmem>>, vector<1x8x32xbf16>
    %c0_66 = arith.constant 0 : index
    %c0_67 = arith.constant 0 : index
    %c0_68 = arith.constant 0 : index
    %131 = vector.load %arg16[%c0_66, %c0_67, %c0_68] : memref<1x32x32xbf16, #tpu.memory_space<vmem>>, vector<1x32x32xbf16>
    %132 = vector.shape_cast %131 : vector<1x32x32xbf16> to vector<32x32xbf16>
    %c0_69 = arith.constant 0 : index
    %c0_70 = arith.constant 0 : index
    %c0_71 = arith.constant 0 : index
    %133 = vector.load %arg17[%c0_69, %c0_70, %c0_71] : memref<1x1x32xf32, #tpu.memory_space<vmem>>, vector<1x1x32xf32>
    %134 = vector.shape_cast %133 : vector<1x1x32xf32> to vector<1x32xf32>
    %c0_72 = arith.constant 0 : index
    %c0_73 = arith.constant 0 : index
    %c0_74 = arith.constant 0 : index
    %135 = vector.load %arg18[%c0_72, %c0_73, %c0_74] : memref<1x32x32xbf16, #tpu.memory_space<vmem>>, vector<1x32x32xbf16>
    %136 = vector.shape_cast %135 : vector<1x32x32xbf16> to vector<32x32xbf16>
    %c0_75 = arith.constant 0 : index
    %c0_76 = arith.constant 0 : index
    %c0_77 = arith.constant 0 : index
    %137 = vector.load %arg19[%c0_75, %c0_76, %c0_77] : memref<1x1x32xf32, #tpu.memory_space<vmem>>, vector<1x1x32xf32>
    %138 = vector.shape_cast %137 : vector<1x1x32xf32> to vector<1x32xf32>
    %c0_78 = arith.constant 0 : index
    %c0_79 = arith.constant 0 : index
    %c0_80 = arith.constant 0 : index
    %139 = vector.load %arg20[%c0_78, %c0_79, %c0_80] : memref<1x32x32xbf16, #tpu.memory_space<vmem>>, vector<1x32x32xbf16>
    %140 = vector.shape_cast %139 : vector<1x32x32xbf16> to vector<32x32xbf16>
    %c0_81 = arith.constant 0 : index
    %c0_82 = arith.constant 0 : index
    %c0_83 = arith.constant 0 : index
    %141 = vector.load %arg21[%c0_81, %c0_82, %c0_83] : memref<1x1x32xf32, #tpu.memory_space<vmem>>, vector<1x1x32xf32>
    %142 = vector.shape_cast %141 : vector<1x1x32xf32> to vector<1x32xf32>
    %c0_84 = arith.constant 0 : index
    %c0_85 = arith.constant 0 : index
    %c0_86 = arith.constant 0 : index
    %143 = vector.load %arg22[%c0_84, %c0_85, %c0_86] : memref<1x32x32xbf16, #tpu.memory_space<vmem>>, vector<1x32x32xbf16>
    %144 = vector.shape_cast %143 : vector<1x32x32xbf16> to vector<32x32xbf16>
    %c0_87 = arith.constant 0 : index
    %c0_88 = arith.constant 0 : index
    %c0_89 = arith.constant 0 : index
    %145 = vector.load %arg23[%c0_87, %c0_88, %c0_89] : memref<1x1x32xf32, #tpu.memory_space<vmem>>, vector<1x1x32xf32>
    %146 = vector.shape_cast %145 : vector<1x1x32xf32> to vector<1x32xf32>
    %147 = vector.shape_cast %129 : vector<1x8x32xf32> to vector<8x32xf32>
    %148 = arith.truncf %147 : vector<8x32xf32> to vector<8x32xbf16>
    %149 = vector.shape_cast %130 : vector<1x8x32xbf16> to vector<8x32xbf16>
    %cst_90 = arith.constant dense<0.000000e+00> : vector<8x32xf32>
    %150 = tpu.matmul %148, %132, %cst_90 {dimension_numbers = #tpu.dot_dimension_numbers<[1], [0], [0], [1], [0, 0, 1, 1], [], []>} : vector<8x32xbf16>, vector<32x32xbf16>, vector<8x32xf32> -> vector<8x32xf32>
    %151 = vector.broadcast %134 : vector<1x32xf32> to vector<8x32xf32>
    %152 = arith.addf %150, %151 : vector<8x32xf32>
    %cst_91 = arith.constant dense<0.000000e+00> : vector<8x32xf32>
    %153 = tpu.matmul %149, %136, %cst_91 {dimension_numbers = #tpu.dot_dimension_numbers<[1], [0], [0], [1], [0, 0, 1, 1], [], []>} : vector<8x32xbf16>, vector<32x32xbf16>, vector<8x32xf32> -> vector<8x32xf32>
    %154 = vector.broadcast %138 : vector<1x32xf32> to vector<8x32xf32>
    %155 = arith.addf %153, %154 : vector<8x32xf32>
    %cst_92 = arith.constant dense<0.000000e+00> : vector<8x32xf32>
    %156 = tpu.matmul %149, %140, %cst_92 {dimension_numbers = #tpu.dot_dimension_numbers<[1], [0], [0], [1], [0, 0, 1, 1], [], []>} : vector<8x32xbf16>, vector<32x32xbf16>, vector<8x32xf32> -> vector<8x32xf32>
    %157 = vector.broadcast %142 : vector<1x32xf32> to vector<8x32xf32>
    %158 = arith.addf %156, %157 : vector<8x32xf32>
    %159 = vector.shape_cast %152 : vector<8x32xf32> to vector<1x8x32xf32>
    %160 = arith.truncf %159 : vector<1x8x32xf32> to vector<1x8x32xbf16>
    %161 = vector.shape_cast %155 : vector<8x32xf32> to vector<1x8x32xf32>
    %162 = arith.truncf %161 : vector<1x8x32xf32> to vector<1x8x32xbf16>
    %163 = vector.shape_cast %158 : vector<8x32xf32> to vector<1x8x32xf32>
    %164 = arith.truncf %163 : vector<1x8x32xf32> to vector<1x8x32xbf16>
    %cst_93 = arith.constant 0.000000e+00 : f32
    %165 = vector.broadcast %cst_93 : f32 to vector<8x32xf32>
    %166 = vector.extract_strided_slice %160 {offsets = [0, 0, 0], sizes = [1, 8, 16], strides = [1, 1, 1]} : vector<1x8x32xbf16> to vector<1x8x16xbf16>
    %167 = vector.extract_strided_slice %162 {offsets = [0, 0, 0], sizes = [1, 8, 16], strides = [1, 1, 1]} : vector<1x8x32xbf16> to vector<1x8x16xbf16>
    %168 = vector.extract_strided_slice %164 {offsets = [0, 0, 0], sizes = [1, 8, 16], strides = [1, 1, 1]} : vector<1x8x32xbf16> to vector<1x8x16xbf16>
    "tpu.trace_start"() <{level = 10 : i32, message = "bqd,bkd->bqk"}> : () -> ()
    %cst_94 = arith.constant dense<0.000000e+00> : vector<1x8x8xf32>
    %169 = tpu.matmul %166, %167, %cst_94 {dimension_numbers = #tpu.dot_dimension_numbers<[2], [2], [1], [1], [0, 0, 0, 1, 1, 1], [0], [0]>} : vector<1x8x16xbf16>, vector<1x8x16xbf16>, vector<1x8x8xf32> -> vector<1x8x8xf32>
    "tpu.trace_stop"() : () -> ()
    %cst_95 = arith.constant 2.500000e-01 : f32
    %170 = vector.broadcast %cst_95 : f32 to vector<1x8x8xf32>
    %171 = arith.mulf %169, %170 : vector<1x8x8xf32>
    %cst_96 = arith.constant -1.000000e+04 : f32
    %172 = vector.broadcast %cst_96 : f32 to vector<1x8x8xf32>
    %173 = arith.select %11, %171, %172 : vector<1x8x8xi1>, vector<1x8x8xf32>
    %cst_97 = arith.constant dense<0xFF800000> : vector<1x8xf32>
    %174 = vector.multi_reduction <maximumf>, %173, %cst_97 [2] : vector<1x8x8xf32> to vector<1x8xf32>
    %175 = vector.shape_cast %174 : vector<1x8xf32> to vector<1x8x1xf32>
    %176 = vector.broadcast %175 : vector<1x8x1xf32> to vector<1x8x8xf32>
    %177 = arith.subf %173, %176 : vector<1x8x8xf32>
    %178 = math.exp %177 : vector<1x8x8xf32>
    %cst_98 = arith.constant dense<0.000000e+00> : vector<1x8xf32>
    %179 = vector.multi_reduction <add>, %178, %cst_98 [2] : vector<1x8x8xf32> to vector<1x8xf32>
    %180 = vector.shape_cast %179 : vector<1x8xf32> to vector<1x8x1xf32>
    %181 = tpu.reciprocal %180 : vector<1x8x1xf32> -> vector<1x8x1xf32>
    %182 = vector.broadcast %181 : vector<1x8x1xf32> to vector<1x8x8xf32>
    %183 = arith.mulf %178, %182 : vector<1x8x8xf32>
    %184 = arith.truncf %183 : vector<1x8x8xf32> to vector<1x8x8xbf16>
    "tpu.trace_start"() <{level = 10 : i32, message = "bqk,bkd->bqd"}> : () -> ()
    %cst_99 = arith.constant dense<0.000000e+00> : vector<1x8x16xf32>
    %185 = tpu.matmul %184, %168, %cst_99 {dimension_numbers = #tpu.dot_dimension_numbers<[2], [1], [1], [2], [0, 0, 0, 1, 1, 2], [0], [0]>} : vector<1x8x8xbf16>, vector<1x8x16xbf16>, vector<1x8x16xf32> -> vector<1x8x16xf32>
    "tpu.trace_stop"() : () -> ()
    %186 = vector.shape_cast %185 : vector<1x8x16xf32> to vector<8x16xf32>
    %187 = arith.truncf %186 : vector<8x16xf32> to vector<8x16xbf16>
    %188 = vector.extract_strided_slice %144 {offsets = [0, 0], sizes = [16, 32], strides = [1, 1]} : vector<32x32xbf16> to vector<16x32xbf16>
    %cst_100 = arith.constant dense<0.000000e+00> : vector<8x32xf32>
    %189 = tpu.matmul %187, %188, %cst_100 {dimension_numbers = #tpu.dot_dimension_numbers<[1], [0], [0], [1], [0, 0, 1, 1], [], []>} : vector<8x16xbf16>, vector<16x32xbf16>, vector<8x32xf32> -> vector<8x32xf32>
    %190 = arith.addf %165, %189 : vector<8x32xf32>
    %191 = vector.extract_strided_slice %160 {offsets = [0, 0, 16], sizes = [1, 8, 16], strides = [1, 1, 1]} : vector<1x8x32xbf16> to vector<1x8x16xbf16>
    %192 = vector.extract_strided_slice %162 {offsets = [0, 0, 16], sizes = [1, 8, 16], strides = [1, 1, 1]} : vector<1x8x32xbf16> to vector<1x8x16xbf16>
    %193 = vector.extract_strided_slice %164 {offsets = [0, 0, 16], sizes = [1, 8, 16], strides = [1, 1, 1]} : vector<1x8x32xbf16> to vector<1x8x16xbf16>
    "tpu.trace_start"() <{level = 10 : i32, message = "bqd,bkd->bqk"}> : () -> ()
    %cst_101 = arith.constant dense<0.000000e+00> : vector<1x8x8xf32>
    %194 = tpu.matmul %191, %192, %cst_101 {dimension_numbers = #tpu.dot_dimension_numbers<[2], [2], [1], [1], [0, 0, 0, 1, 1, 1], [0], [0]>} : vector<1x8x16xbf16>, vector<1x8x16xbf16>, vector<1x8x8xf32> -> vector<1x8x8xf32>
    "tpu.trace_stop"() : () -> ()
    %cst_102 = arith.constant 2.500000e-01 : f32
    %195 = vector.broadcast %cst_102 : f32 to vector<1x8x8xf32>
    %196 = arith.mulf %194, %195 : vector<1x8x8xf32>
    %cst_103 = arith.constant -1.000000e+04 : f32
    %197 = vector.broadcast %cst_103 : f32 to vector<1x8x8xf32>
    %198 = arith.select %11, %196, %197 : vector<1x8x8xi1>, vector<1x8x8xf32>
    %cst_104 = arith.constant dense<0xFF800000> : vector<1x8xf32>
    %199 = vector.multi_reduction <maximumf>, %198, %cst_104 [2] : vector<1x8x8xf32> to vector<1x8xf32>
    %200 = vector.shape_cast %199 : vector<1x8xf32> to vector<1x8x1xf32>
    %201 = vector.broadcast %200 : vector<1x8x1xf32> to vector<1x8x8xf32>
    %202 = arith.subf %198, %201 : vector<1x8x8xf32>
    %203 = math.exp %202 : vector<1x8x8xf32>
    %cst_105 = arith.constant dense<0.000000e+00> : vector<1x8xf32>
    %204 = vector.multi_reduction <add>, %203, %cst_105 [2] : vector<1x8x8xf32> to vector<1x8xf32>
    %205 = vector.shape_cast %204 : vector<1x8xf32> to vector<1x8x1xf32>
    %206 = tpu.reciprocal %205 : vector<1x8x1xf32> -> vector<1x8x1xf32>
    %207 = vector.broadcast %206 : vector<1x8x1xf32> to vector<1x8x8xf32>
    %208 = arith.mulf %203, %207 : vector<1x8x8xf32>
    %209 = arith.truncf %208 : vector<1x8x8xf32> to vector<1x8x8xbf16>
    "tpu.trace_start"() <{level = 10 : i32, message = "bqk,bkd->bqd"}> : () -> ()
    %cst_106 = arith.constant dense<0.000000e+00> : vector<1x8x16xf32>
    %210 = tpu.matmul %209, %193, %cst_106 {dimension_numbers = #tpu.dot_dimension_numbers<[2], [1], [1], [2], [0, 0, 0, 1, 1, 2], [0], [0]>} : vector<1x8x8xbf16>, vector<1x8x16xbf16>, vector<1x8x16xf32> -> vector<1x8x16xf32>
    "tpu.trace_stop"() : () -> ()
    %211 = vector.shape_cast %210 : vector<1x8x16xf32> to vector<8x16xf32>
    %212 = arith.truncf %211 : vector<8x16xf32> to vector<8x16xbf16>
    %213 = vector.extract_strided_slice %144 {offsets = [16, 0], sizes = [16, 32], strides = [1, 1]} : vector<32x32xbf16> to vector<16x32xbf16>
    %cst_107 = arith.constant dense<0.000000e+00> : vector<8x32xf32>
    %214 = tpu.matmul %212, %213, %cst_107 {dimension_numbers = #tpu.dot_dimension_numbers<[1], [0], [0], [1], [0, 0, 1, 1], [], []>} : vector<8x16xbf16>, vector<16x32xbf16>, vector<8x32xf32> -> vector<8x32xf32>
    %215 = arith.addf %190, %214 : vector<8x32xf32>
    %216 = vector.broadcast %146 : vector<1x32xf32> to vector<8x32xf32>
    %217 = arith.addf %215, %216 : vector<8x32xf32>
    %218 = vector.shape_cast %217 : vector<8x32xf32> to vector<1x8x32xf32>
    %219 = arith.addf %218, %129 : vector<1x8x32xf32>
    %c0_108 = arith.constant 0 : index
    %c0_109 = arith.constant 0 : index
    %c0_110 = arith.constant 0 : index
    %220 = vector.load %arg24[%c0_108, %c0_109, %c0_110] : memref<1x1x32xf32, #tpu.memory_space<vmem>>, vector<1x1x32xf32>
    %221 = vector.shape_cast %220 : vector<1x1x32xf32> to vector<1x32xf32>
    %c0_111 = arith.constant 0 : index
    %c0_112 = arith.constant 0 : index
    %c0_113 = arith.constant 0 : index
    %222 = vector.load %arg25[%c0_111, %c0_112, %c0_113] : memref<1x1x32xf32, #tpu.memory_space<vmem>>, vector<1x1x32xf32>
    %223 = vector.shape_cast %222 : vector<1x1x32xf32> to vector<1x32xf32>
    %cst_114 = arith.constant dense<0.000000e+00> : vector<1x8xf32>
    %224 = vector.multi_reduction <add>, %219, %cst_114 [2] : vector<1x8x32xf32> to vector<1x8xf32>
    %225 = vector.shape_cast %224 : vector<1x8xf32> to vector<1x8x1xf32>
    %cst_115 = arith.constant 3.200000e+01 : f32
    %226 = vector.broadcast %cst_115 : f32 to vector<1x8x1xf32>
    %227 = arith.divf %225, %226 : vector<1x8x1xf32>
    %228 = vector.broadcast %227 : vector<1x8x1xf32> to vector<1x8x32xf32>
    %229 = arith.subf %219, %228 : vector<1x8x32xf32>
    %230 = arith.mulf %229, %229 : vector<1x8x32xf32>
    %cst_116 = arith.constant dense<0.000000e+00> : vector<1x8xf32>
    %231 = vector.multi_reduction <add>, %230, %cst_116 [2] : vector<1x8x32xf32> to vector<1x8xf32>
    %232 = vector.shape_cast %231 : vector<1x8xf32> to vector<1x8x1xf32>
    %cst_117 = arith.constant 3.200000e+01 : f32
    %233 = vector.broadcast %cst_117 : f32 to vector<1x8x1xf32>
    %234 = arith.divf %232, %233 : vector<1x8x1xf32>
    %235 = vector.broadcast %227 : vector<1x8x1xf32> to vector<1x8x32xf32>
    %236 = arith.subf %219, %235 : vector<1x8x32xf32>
    %cst_118 = arith.constant 9.99999996E-13 : f32
    %237 = vector.broadcast %cst_118 : f32 to vector<1x8x1xf32>
    %238 = arith.addf %234, %237 : vector<1x8x1xf32>
    %239 = math.rsqrt %238 : vector<1x8x1xf32>
    %240 = vector.broadcast %239 : vector<1x8x1xf32> to vector<1x8x32xf32>
    %241 = arith.mulf %236, %240 : vector<1x8x32xf32>
    %242 = vector.shape_cast %221 : vector<1x32xf32> to vector<1x1x32xf32>
    %243 = vector.broadcast %242 : vector<1x1x32xf32> to vector<1x8x32xf32>
    %244 = arith.mulf %241, %243 : vector<1x8x32xf32>
    %245 = vector.shape_cast %223 : vector<1x32xf32> to vector<1x1x32xf32>
    %246 = vector.broadcast %245 : vector<1x1x32xf32> to vector<1x8x32xf32>
    %247 = arith.addf %244, %246 : vector<1x8x32xf32>
    %248 = vector.shape_cast %247 : vector<1x8x32xf32> to vector<8x32xf32>
    %249 = arith.truncf %248 : vector<8x32xf32> to vector<8x32xbf16>
    %c0_119 = arith.constant 0 : index
    %c0_120 = arith.constant 0 : index
    %c0_121 = arith.constant 0 : index
    %250 = vector.load %arg26[%c0_119, %c0_120, %c0_121] : memref<1x32x64xbf16, #tpu.memory_space<vmem>>, vector<1x32x64xbf16>
    %251 = vector.shape_cast %250 : vector<1x32x64xbf16> to vector<32x64xbf16>
    %cst_122 = arith.constant dense<0.000000e+00> : vector<8x64xf32>
    %252 = tpu.matmul %249, %251, %cst_122 {dimension_numbers = #tpu.dot_dimension_numbers<[1], [0], [0], [1], [0, 0, 1, 1], [], []>} : vector<8x32xbf16>, vector<32x64xbf16>, vector<8x64xf32> -> vector<8x64xf32>
    %c0_123 = arith.constant 0 : index
    %c0_124 = arith.constant 0 : index
    %c0_125 = arith.constant 0 : index
    %253 = vector.load %arg27[%c0_123, %c0_124, %c0_125] : memref<1x1x64xf32, #tpu.memory_space<vmem>>, vector<1x1x64xf32>
    %254 = vector.shape_cast %253 : vector<1x1x64xf32> to vector<1x64xf32>
    %255 = vector.broadcast %254 : vector<1x64xf32> to vector<8x64xf32>
    %256 = arith.addf %252, %255 : vector<8x64xf32>
    %cst_126 = arith.constant 0.000000e+00 : f32
    %257 = vector.broadcast %cst_126 : f32 to vector<8x64xf32>
    %258 = arith.maximumf %256, %257 : vector<8x64xf32>
    %259 = arith.truncf %258 : vector<8x64xf32> to vector<8x64xbf16>
    %c0_127 = arith.constant 0 : index
    %c0_128 = arith.constant 0 : index
    %c0_129 = arith.constant 0 : index
    %260 = vector.load %arg28[%c0_127, %c0_128, %c0_129] : memref<1x64x32xbf16, #tpu.memory_space<vmem>>, vector<1x64x32xbf16>
    %261 = vector.shape_cast %260 : vector<1x64x32xbf16> to vector<64x32xbf16>
    %cst_130 = arith.constant dense<0.000000e+00> : vector<8x32xf32>
    %262 = tpu.matmul %259, %261, %cst_130 {dimension_numbers = #tpu.dot_dimension_numbers<[1], [0], [0], [1], [0, 0, 1, 1], [], []>} : vector<8x64xbf16>, vector<64x32xbf16>, vector<8x32xf32> -> vector<8x32xf32>
    %c0_131 = arith.constant 0 : index
    %c0_132 = arith.constant 0 : index
    %c0_133 = arith.constant 0 : index
    %263 = vector.load %arg29[%c0_131, %c0_132, %c0_133] : memref<1x1x32xf32, #tpu.memory_space<vmem>>, vector<1x1x32xf32>
    %264 = vector.shape_cast %263 : vector<1x1x32xf32> to vector<1x32xf32>
    %265 = vector.broadcast %264 : vector<1x32xf32> to vector<8x32xf32>
    %266 = arith.addf %262, %265 : vector<8x32xf32>
    %267 = vector.shape_cast %266 : vector<8x32xf32> to vector<1x8x32xf32>
    %268 = arith.addf %267, %247 : vector<1x8x32xf32>
    %c0_134 = arith.constant 0 : index
    %c0_135 = arith.constant 0 : index
    %c0_136 = arith.constant 0 : index
    %269 = vector.load %arg30[%c0_134, %c0_135, %c0_136] : memref<1x1x32xf32, #tpu.memory_space<vmem>>, vector<1x1x32xf32>
    %270 = vector.shape_cast %269 : vector<1x1x32xf32> to vector<1x32xf32>
    %c0_137 = arith.constant 0 : index
    %c0_138 = arith.constant 0 : index
    %c0_139 = arith.constant 0 : index
    %271 = vector.load %arg31[%c0_137, %c0_138, %c0_139] : memref<1x1x32xf32, #tpu.memory_space<vmem>>, vector<1x1x32xf32>
    %272 = vector.shape_cast %271 : vector<1x1x32xf32> to vector<1x32xf32>
    %cst_140 = arith.constant dense<0.000000e+00> : vector<1x8xf32>
    %273 = vector.multi_reduction <add>, %268, %cst_140 [2] : vector<1x8x32xf32> to vector<1x8xf32>
    %274 = vector.shape_cast %273 : vector<1x8xf32> to vector<1x8x1xf32>
    %cst_141 = arith.constant 3.200000e+01 : f32
    %275 = vector.broadcast %cst_141 : f32 to vector<1x8x1xf32>
    %276 = arith.divf %274, %275 : vector<1x8x1xf32>
    %277 = vector.broadcast %276 : vector<1x8x1xf32> to vector<1x8x32xf32>
    %278 = arith.subf %268, %277 : vector<1x8x32xf32>
    %279 = arith.mulf %278, %278 : vector<1x8x32xf32>
    %cst_142 = arith.constant dense<0.000000e+00> : vector<1x8xf32>
    %280 = vector.multi_reduction <add>, %279, %cst_142 [2] : vector<1x8x32xf32> to vector<1x8xf32>
    %281 = vector.shape_cast %280 : vector<1x8xf32> to vector<1x8x1xf32>
    %cst_143 = arith.constant 3.200000e+01 : f32
    %282 = vector.broadcast %cst_143 : f32 to vector<1x8x1xf32>
    %283 = arith.divf %281, %282 : vector<1x8x1xf32>
    %284 = vector.broadcast %276 : vector<1x8x1xf32> to vector<1x8x32xf32>
    %285 = arith.subf %268, %284 : vector<1x8x32xf32>
    %cst_144 = arith.constant 9.99999996E-13 : f32
    %286 = vector.broadcast %cst_144 : f32 to vector<1x8x1xf32>
    %287 = arith.addf %283, %286 : vector<1x8x1xf32>
    %288 = math.rsqrt %287 : vector<1x8x1xf32>
    %289 = vector.broadcast %288 : vector<1x8x1xf32> to vector<1x8x32xf32>
    %290 = arith.mulf %285, %289 : vector<1x8x32xf32>
    %291 = vector.shape_cast %270 : vector<1x32xf32> to vector<1x1x32xf32>
    %292 = vector.broadcast %291 : vector<1x1x32xf32> to vector<1x8x32xf32>
    %293 = arith.mulf %290, %292 : vector<1x8x32xf32>
    %294 = vector.shape_cast %272 : vector<1x32xf32> to vector<1x1x32xf32>
    %295 = vector.broadcast %294 : vector<1x1x32xf32> to vector<1x8x32xf32>
    %296 = arith.addf %293, %295 : vector<1x8x32xf32>
    %c0_145 = arith.constant 0 : index
    %c0_146 = arith.constant 0 : index
    %c0_147 = arith.constant 0 : index
    %297 = vector.load %arg33[%c0_145, %c0_146, %c0_147] : memref<1x8x32xf32, #tpu.memory_space<vmem>>, vector<1x8x32xf32>
    tpu.vector_store %arg33[%c0_145, %c0_146, %c0_147], %296 {strides = array<i32>} : memref<1x8x32xf32, #tpu.memory_space<vmem>>, vector<1x8x32xf32>,
    %c1_i32 = arith.constant 1 : i32
    %298 = arith.cmpi eq, %arg1, %c1_i32 : i32
    %299 = arith.extui %298 : i1 to i32
    %c0_i32_148 = arith.constant 0 : i32
    %300 = arith.cmpi ne, %299, %c0_i32_148 : i32
    scf.if %300 {
      %301 = arith.truncf %296 : vector<1x8x32xf32> to vector<1x8x32xbf16>
      %c0_149 = arith.constant 0 : index
      %c0_150 = arith.constant 0 : index
      %c0_151 = arith.constant 0 : index
      %302 = vector.load %arg32[%c0_149, %c0_150, %c0_151] : memref<1x8x32xbf16, #tpu.memory_space<vmem>>, vector<1x8x32xbf16>
      tpu.vector_store %arg32[%c0_149, %c0_150, %c0_151], %301 {strides = array<i32>} : memref<1x8x32xbf16, #tpu.memory_space<vmem>>, vector<1x8x32xbf16>,
    } else {
    }
    return
  }
  func.func @transform_0(%arg0: i32, %arg1: i32) -> (i32, i32, i32) {
    %c0_i32 = arith.constant 0 : i32
    %c0_i32_0 = arith.constant 0 : i32
    %c0_i32_1 = arith.constant 0 : i32
    return %arg0, %c0_i32, %c0_i32_0 : i32, i32, i32
  }
  func.func @transform_1(%arg0: i32, %arg1: i32) -> (i32, i32, i32) {
    %c0_i32 = arith.constant 0 : i32
    %c0_i32_0 = arith.constant 0 : i32
    %c0_i32_1 = arith.constant 0 : i32
    return %arg0, %c0_i32, %c0_i32_0 : i32, i32, i32
  }
  func.func @transform_2(%arg0: i32, %arg1: i32) -> (i32, i32, i32) {
    %c0_i32 = arith.constant 0 : i32
    %c0_i32_0 = arith.constant 0 : i32
    %c0_i32_1 = arith.constant 0 : i32
    return %arg0, %c0_i32, %c0_i32_0 : i32, i32, i32
  }
  func.func @transform_3(%arg0: i32, %arg1: i32) -> (i32, i32, i32) {
    %c0_i32 = arith.constant 0 : i32
    %c0_i32_0 = arith.constant 0 : i32
    %c0_i32_1 = arith.constant 0 : i32
    return %arg0, %c0_i32, %c0_i32_0 : i32, i32, i32
  }
  func.func @transform_4(%arg0: i32, %arg1: i32) -> (i32, i32, i32) {
    %c0_i32 = arith.constant 0 : i32
    %c0_i32_0 = arith.constant 0 : i32
    %c0_i32_1 = arith.constant 0 : i32
    return %arg1, %c0_i32, %c0_i32_0 : i32, i32, i32
  }
  func.func @transform_5(%arg0: i32, %arg1: i32) -> (i32, i32, i32) {
    %c0_i32 = arith.constant 0 : i32
    %c0_i32_0 = arith.constant 0 : i32
    %c0_i32_1 = arith.constant 0 : i32
    return %arg1, %c0_i32, %c0_i32_0 : i32, i32, i32
  }
  func.func @transform_6(%arg0: i32, %arg1: i32) -> (i32, i32, i32) {
    %c0_i32 = arith.constant 0 : i32
    %c0_i32_0 = arith.constant 0 : i32
    %c0_i32_1 = arith.constant 0 : i32
    return %arg1, %c0_i32, %c0_i32_0 : i32, i32, i32
  }
  func.func @transform_7(%arg0: i32, %arg1: i32) -> (i32, i32, i32) {
    %c0_i32 = arith.constant 0 : i32
    %c0_i32_0 = arith.constant 0 : i32
    %c0_i32_1 = arith.constant 0 : i32
    return %arg1, %c0_i32, %c0_i32_0 : i32, i32, i32
  }
  func.func @transform_8(%arg0: i32, %arg1: i32) -> (i32, i32, i32) {
    %c0_i32 = arith.constant 0 : i32
    %c0_i32_0 = arith.constant 0 : i32
    %c0_i32_1 = arith.constant 0 : i32
    return %arg1, %c0_i32, %c0_i32_0 : i32, i32, i32
  }
  func.func @transform_9(%arg0: i32, %arg1: i32) -> (i32, i32, i32) {
    %c0_i32 = arith.constant 0 : i32
    %c0_i32_0 = arith.constant 0 : i32
    %c0_i32_1 = arith.constant 0 : i32
    return %arg1, %c0_i32, %c0_i32_0 : i32, i32, i32
  }
  func.func @transform_10(%arg0: i32, %arg1: i32) -> (i32, i32, i32) {
    %c0_i32 = arith.constant 0 : i32
    %c0_i32_0 = arith.constant 0 : i32
    %c0_i32_1 = arith.constant 0 : i32
    return %arg1, %c0_i32, %c0_i32_0 : i32, i32, i32
  }
  func.func @transform_11(%arg0: i32, %arg1: i32) -> (i32, i32, i32) {
    %c0_i32 = arith.constant 0 : i32
    %c0_i32_0 = arith.constant 0 : i32
    %c0_i32_1 = arith.constant 0 : i32
    return %arg1, %c0_i32, %c0_i32_0 : i32, i32, i32
  }
  func.func @transform_12(%arg0: i32, %arg1: i32) -> (i32, i32, i32) {
    %c0_i32 = arith.constant 0 : i32
    %c0_i32_0 = arith.constant 0 : i32
    %c0_i32_1 = arith.constant 0 : i32
    return %arg1, %c0_i32, %c0_i32_0 : i32, i32, i32
  }
  func.func @transform_13(%arg0: i32, %arg1: i32) -> (i32, i32, i32) {
    %c0_i32 = arith.constant 0 : i32
    %c0_i32_0 = arith.constant 0 : i32
    %c0_i32_1 = arith.constant 0 : i32
    return %arg1, %c0_i32, %c0_i32_0 : i32, i32, i32
  }
  func.func @transform_14(%arg0: i32, %arg1: i32) -> (i32, i32, i32) {
    %c0_i32 = arith.constant 0 : i32
    %c0_i32_0 = arith.constant 0 : i32
    %c0_i32_1 = arith.constant 0 : i32
    return %arg1, %c0_i32, %c0_i32_0 : i32, i32, i32
  }
  func.func @transform_15(%arg0: i32, %arg1: i32) -> (i32, i32, i32) {
    %c0_i32 = arith.constant 0 : i32
    %c0_i32_0 = arith.constant 0 : i32
    %c0_i32_1 = arith.constant 0 : i32
    return %arg1, %c0_i32, %c0_i32_0 : i32, i32, i32
  }
  func.func @transform_16(%arg0: i32, %arg1: i32) -> (i32, i32, i32) {
    %c0_i32 = arith.constant 0 : i32
    %c0_i32_0 = arith.constant 0 : i32
    %c0_i32_1 = arith.constant 0 : i32
    return %arg1, %c0_i32, %c0_i32_0 : i32, i32, i32
  }
  func.func @transform_17(%arg0: i32, %arg1: i32) -> (i32, i32, i32) {
    %c0_i32 = arith.constant 0 : i32
    %c0_i32_0 = arith.constant 0 : i32
    %c0_i32_1 = arith.constant 0 : i32
    return %arg1, %c0_i32, %c0_i32_0 : i32, i32, i32
  }
  func.func @transform_18(%arg0: i32, %arg1: i32) -> (i32, i32, i32) {
    %c0_i32 = arith.constant 0 : i32
    %c0_i32_0 = arith.constant 0 : i32
    %c0_i32_1 = arith.constant 0 : i32
    return %arg1, %c0_i32, %c0_i32_0 : i32, i32, i32
  }
  func.func @transform_19(%arg0: i32, %arg1: i32) -> (i32, i32, i32) {
    %c0_i32 = arith.constant 0 : i32
    %c0_i32_0 = arith.constant 0 : i32
    %c0_i32_1 = arith.constant 0 : i32
    return %arg1, %c0_i32, %c0_i32_0 : i32, i32, i32
  }
  func.func @transform_20(%arg0: i32, %arg1: i32) -> (i32, i32, i32) {
    %c0_i32 = arith.constant 0 : i32
    %c0_i32_0 = arith.constant 0 : i32
    %c0_i32_1 = arith.constant 0 : i32
    return %arg1, %c0_i32, %c0_i32_0 : i32, i32, i32
  }
  func.func @transform_21(%arg0: i32, %arg1: i32) -> (i32, i32, i32) {
    %c0_i32 = arith.constant 0 : i32
    %c0_i32_0 = arith.constant 0 : i32
    %c0_i32_1 = arith.constant 0 : i32
    return %arg1, %c0_i32, %c0_i32_0 : i32, i32, i32
  }
  func.func @transform_22(%arg0: i32, %arg1: i32) -> (i32, i32, i32) {
    %c0_i32 = arith.constant 0 : i32
    %c0_i32_0 = arith.constant 0 : i32
    %c0_i32_1 = arith.constant 0 : i32
    return %arg1, %c0_i32, %c0_i32_0 : i32, i32, i32
  }
  func.func @transform_23(%arg0: i32, %arg1: i32) -> (i32, i32, i32) {
    %c0_i32 = arith.constant 0 : i32
    %c0_i32_0 = arith.constant 0 : i32
    %c0_i32_1 = arith.constant 0 : i32
    return %arg1, %c0_i32, %c0_i32_0 : i32, i32, i32
  }
  func.func @transform_24(%arg0: i32, %arg1: i32) -> (i32, i32, i32) {
    %c0_i32 = arith.constant 0 : i32
    %c0_i32_0 = arith.constant 0 : i32
    %c0_i32_1 = arith.constant 0 : i32
    return %arg1, %c0_i32, %c0_i32_0 : i32, i32, i32
  }
  func.func @transform_25(%arg0: i32, %arg1: i32) -> (i32, i32, i32) {
    %c0_i32 = arith.constant 0 : i32
    %c0_i32_0 = arith.constant 0 : i32
    %c0_i32_1 = arith.constant 0 : i32
    return %arg1, %c0_i32, %c0_i32_0 : i32, i32, i32
  }
  func.func @transform_26(%arg0: i32, %arg1: i32) -> (i32, i32, i32) {
    %c0_i32 = arith.constant 0 : i32
    %c0_i32_0 = arith.constant 0 : i32
    %c0_i32_1 = arith.constant 0 : i32
    return %arg1, %c0_i32, %c0_i32_0 : i32, i32, i32
  }
  func.func @transform_27(%arg0: i32, %arg1: i32) -> (i32, i32, i32) {
    %c0_i32 = arith.constant 0 : i32
    %c0_i32_0 = arith.constant 0 : i32
    %c0_i32_1 = arith.constant 0 : i32
    return %arg1, %c0_i32, %c0_i32_0 : i32, i32, i32
  }
  func.func @transform_28(%arg0: i32, %arg1: i32) -> (i32, i32, i32) {
    %c0_i32 = arith.constant 0 : i32
    %c0_i32_0 = arith.constant 0 : i32
    %c0_i32_1 = arith.constant 0 : i32
    return %arg1, %c0_i32, %c0_i32_0 : i32, i32, i32
  }
  func.func @transform_29(%arg0: i32, %arg1: i32) -> (i32, i32, i32) {
    %c0_i32 = arith.constant 0 : i32
    %c0_i32_0 = arith.constant 0 : i32
    %c0_i32_1 = arith.constant 0 : i32
    return %arg1, %c0_i32, %c0_i32_0 : i32, i32, i32
  }
  func.func @transform_30(%arg0: i32, %arg1: i32) -> (i32, i32, i32) {
    %c0_i32 = arith.constant 0 : i32
    %c0_i32_0 = arith.constant 0 : i32
    %c0_i32_1 = arith.constant 0 : i32
    return %arg0, %c0_i32, %c0_i32_0 : i32, i32, i32
  }
}

</mosaic_0001>

<llo_original>
// kernel: tpu_custom_call.1
$region0: #{tpu_custom_call.1}
  #allocation0 [shape = 'u32[]', space=smem, size = 0x4, offset = 0x4, fixed_abs, tag = 'smem constant byte address 0x4 - core index']
  #allocation1 [shape = 'u32[72,128]{1,0:T(1,128)}', space=vmem, size = 0x9000, scoped, tag = 'internal scratch']
  #allocation2 [shape = 'f32[1,8,32]{2,1,0:T(8,128)}', space=vmem, size = 0x1000, scoped, tag = 'scratch operand']
  %s0 = inlined_call_operand.smem [shape: u32[31], index: -1, kind: input, shape index: {}]
  %s1 = sld [smem:[%s0]]
  %s2 = scalar_lea.smem %s0, 1
  %s3 = sld [smem:[%s2]]
  %s4 = scalar_lea.smem %s0, 2
  %s5 = sld [smem:[%s4]]
  %s6 = scalar_lea.smem %s0, 3
  %s7 = sld [smem:[%s6]]
  %s8 = scalar_lea.smem %s0, 4
  %s9 = sld [smem:[%s8]]
  %s10 = scalar_lea.smem %s0, 5
  %s11 = sld [smem:[%s10]]
  %s12 = scalar_lea.smem %s0, 6
  %s13 = sld [smem:[%s12]]
  %s14 = scalar_lea.smem %s0, 7
  %s15 = sld [smem:[%s14]]
  %s16 = scalar_lea.smem %s0, 8
  %s17 = sld [smem:[%s16]]
  %s18 = scalar_lea.smem %s0, 9
  %s19 = sld [smem:[%s18]]
  %s20 = scalar_lea.smem %s0, 10
  %s21 = sld [smem:[%s20]]
  %s22 = scalar_lea.smem %s0, 11
  %s23 = sld [smem:[%s22]]
  %s24 = scalar_lea.smem %s0, 12
  %s25 = sld [smem:[%s24]]
  %s26 = scalar_lea.smem %s0, 13
  %s27 = sld [smem:[%s26]]
  %s28 = scalar_lea.smem %s0, 14
  %s29 = sld [smem:[%s28]]
  %s30 = scalar_lea.smem %s0, 15
  %s31 = sld [smem:[%s30]]
  %s32 = scalar_lea.smem %s0, 16
  %s33 = sld [smem:[%s32]]
  %s34 = scalar_lea.smem %s0, 17
  %s35 = sld [smem:[%s34]]
  %s36 = scalar_lea.smem %s0, 18
  %s37 = sld [smem:[%s36]]
  %s38 = scalar_lea.smem %s0, 19
  %s39 = sld [smem:[%s38]]
  %s40 = scalar_lea.smem %s0, 20
  %s41 = sld [smem:[%s40]]
  %s42 = scalar_lea.smem %s0, 21
  %s43 = sld [smem:[%s42]]
  %s44 = scalar_lea.smem %s0, 22
  %s45 = sld [smem:[%s44]]
  %s46 = scalar_lea.smem %s0, 23
  %s47 = sld [smem:[%s46]]
  %s48 = scalar_lea.smem %s0, 24
  %s49 = sld [smem:[%s48]]
  %s50 = scalar_lea.smem %s0, 25
  %s51 = sld [smem:[%s50]]
  %s52 = scalar_lea.smem %s0, 26
  %s53 = sld [smem:[%s52]]
  %s54 = scalar_lea.smem %s0, 27
  %s55 = sld [smem:[%s54]]
  %s56 = scalar_lea.smem %s0, 28
  %s57 = sld [smem:[%s56]]
  %s58 = scalar_lea.smem %s0, 29
  %s59 = sld [smem:[%s58]]
  %s60 = scalar_lea.smem %s0, 30
  %s61 = sld [smem:[%s60]]
  %s62 = sld [smem:[#allocation0]]
  $region213: #{tpu_custom_call.1} parent=0
    _
  %s64 = ssub.s32 1, %s62
  %s65 = scalar_select 0, %s64, %s62
  $region1: #{tpu_custom_call.1} parent=0
    #allocation3 [shape = 'u8[8192]{0}', space=vmem, size = 0x2000, scoped, tag = 'input window, operand 0']
    #allocation4 [shape = 's32[2]{0}', space=sflag, size = 0x8, scoped, tag = 'scoped memory for tpu_custom_call.1']
    #allocation5 [shape = 's32[2]{0}', space=sflag, size = 0x8, scoped, tag = 'scoped memory for tpu_custom_call.1']
    #allocation6 [shape = 'u8[4096]{0}', space=vmem, size = 0x1000, scoped, tag = 'input window, operand 1']
    #allocation7 [shape = 's32[2]{0}', space=sflag, size = 0x8, scoped, tag = 'scoped memory for tpu_custom_call.1']
    #allocation8 [shape = 'u8[4096]{0}', space=vmem, size = 0x1000, scoped, tag = 'input window, operand 2']
    #allocation9 [shape = 'u8[4096]{0}', space=vmem, size = 0x1000, scoped, tag = 'input window, operand 3']
    #allocation10 [shape = 's32[2]{0}', space=sflag, size = 0x8, scoped, tag = 'scoped memory for tpu_custom_call.1']
    #allocation11 [shape = 'u8[16384]{0}', space=vmem, size = 0x4000, scoped, tag = 'input window, operand 10']
    #allocation12 [shape = 'u8[1024]{0}', space=vmem, size = 0x400, scoped, tag = 'input window, operand 13']
    #allocation13 [shape = 's32[2]{0}', space=sflag, size = 0x8, scoped, tag = 'scoped memory for tpu_custom_call.1']
    #allocation14 [shape = 'u8[16384]{0}', space=vmem, size = 0x4000, scoped, tag = 'input window, operand 14']
    #allocation15 [shape = 'u8[16384]{0}', space=vmem, size = 0x4000, scoped, tag = 'input window, operand 16']
    #allocation16 [shape = 's32[2]{0}', space=sflag, size = 0x8, scoped, tag = 'scoped memory for tpu_custom_call.1']
    #allocation17 [shape = 'u8[16384]{0}', space=vmem, size = 0x4000, scoped, tag = 'input window, operand 18']
    #allocation18 [shape = 'u8[16384]{0}', space=vmem, size = 0x4000, scoped, tag = 'input window, operand 20']
    #allocation19 [shape = 's32[2]{0}', space=sflag, size = 0x8, scoped, tag = 'scoped memory for tpu_custom_call.1']
    #allocation20 [shape = 'u8[1024]{0}', space=vmem, size = 0x400, scoped, tag = 'input window, operand 23']
    #allocation21 [shape = 'u8[16384]{0}', space=vmem, size = 0x4000, scoped, tag = 'input window, operand 24']
    #allocation22 [shape = 's32[2]{0}', space=sflag, size = 0x8, scoped, tag = 'scoped memory for tpu_custom_call.1']
    #allocation23 [shape = 'u8[1024]{0}', space=vmem, size = 0x400, scoped, tag = 'input window, operand 29']
    #allocation24 [shape = 'u8[4096]{0}', space=vmem, size = 0x1000, scoped, tag = 'output window, operand 0']
    %66 = vsyncpa [#allocation4], 0
    %s67 = scalar_lea.sflag [#allocation4], 1
    %68 = vsyncpa %s67, 0
    %69 = vsyncpa [#allocation7], 0
    %s70 = scalar_lea.sflag [#allocation7], 1
    %71 = vsyncpa %s70, 0
    %72 = vsyncpa [#allocation10], 0
    %s73 = scalar_lea.sflag [#allocation10], 1
    %74 = vsyncpa %s73, 0
    %75 = vsyncpa [#allocation13], 0
    %s76 = scalar_lea.sflag [#allocation13], 1
    %77 = vsyncpa %s76, 0
    %78 = vsyncpa [#allocation16], 0
    %s79 = scalar_lea.sflag [#allocation16], 1
    %80 = vsyncpa %s79, 0
    %81 = vsyncpa [#allocation19], 0
    %s82 = scalar_lea.sflag [#allocation19], 1
    %83 = vsyncpa %s82, 0
    %84 = vsyncpa [#allocation22], 0
    %s85 = scalar_lea.sflag [#allocation22], 1
    %86 = vsyncpa %s85, 0
    %87 = vsyncpa [#allocation5], 0
    %s88 = scalar_lea.sflag [#allocation5], 1
    %89 = vsyncpa %s88, 0
    loop: start=0, step=1, limit=6
    $region2: #{tpu_custom_call.1} parent=1 // loop_pre_header
      _
    $region3: #{tpu_custom_call.1} parent=1 // loop_header
      %s91 = sphi 0, %s95
      %p92 = scmp.ge.s32.totalorder %s91, 6
      %s98 = sphi 0, %s110
      %s99 = sphi 0, %s106
      %s100 = sphi 0, %s98
      %s101 = sphi 0, %s99
      %s102 = sphi 0, %s100
      %s103 = sphi 0, %s101
      %s113 = sphi 0, %s115
      %s116 = sphi 0, %s113
      %s117 = sphi 0, %s116
      %s133 = sphi 0, %s117
      %s139 = sphi 0, %s141
      %s142 = sphi 0, %s139
      %s143 = sphi 0, %s142
      %s159 = sphi 0, %s143
      %s165 = sphi 0, %s167
      %s168 = sphi 0, %s165
      %s169 = sphi 0, %s168
      %s185 = sphi 0, %s169
      %s191 = sphi 0, %s193
      %s194 = sphi 0, %s191
      %s195 = sphi 0, %s194
      %s211 = sphi 0, %s195
      %s217 = sphi 0, %s219
      %s220 = sphi 0, %s217
      %s221 = sphi 0, %s220
      %s237 = sphi 0, %s221
      %s243 = sphi 0, %s245
      %s246 = sphi 0, %s243
      %s247 = sphi 0, %s246
      %s263 = sphi 0, %s247
      %s269 = sphi 0, %s271
      %s272 = sphi 0, %s269
      %s273 = sphi 0, %s272
      %s289 = sphi 0, %s273
      %s295 = sphi 0, %s297
      %s298 = sphi 0, %s295
      %s299 = sphi 0, %s298
      %s315 = sphi 0, %s299
      %s321 = sphi 0, %s323
      %s324 = sphi 0, %s321
      %s325 = sphi 0, %s324
      %s341 = sphi 0, %s325
      %s347 = sphi 0, %s349
      %s350 = sphi 0, %s347
      %s351 = sphi 0, %s350
      %s367 = sphi 0, %s351
      %s373 = sphi 0, %s375
      %s376 = sphi 0, %s373
      %s377 = sphi 0, %s376
      %s393 = sphi 0, %s377
      %s399 = sphi 0, %s401
      %s402 = sphi 0, %s399
      %s403 = sphi 0, %s402
      %s419 = sphi 0, %s403
      %s425 = sphi 0, %s427
      %s428 = sphi 0, %s425
      %s429 = sphi 0, %s428
      %s445 = sphi 0, %s429
      %s451 = sphi 0, %s453
      %s454 = sphi 0, %s451
      %s455 = sphi 0, %s454
      %s471 = sphi 0, %s455
      %s477 = sphi 0, %s479
      %s480 = sphi 0, %s477
      %s481 = sphi 0, %s480
      %s497 = sphi 0, %s481
      %s503 = sphi 0, %s505
      %s506 = sphi 0, %s503
      %s507 = sphi 0, %s506
      %s523 = sphi 0, %s507
      %s529 = sphi 0, %s531
      %s532 = sphi 0, %s529
      %s533 = sphi 0, %s532
      %s549 = sphi 0, %s533
      %s555 = sphi 0, %s557
      %s558 = sphi 0, %s555
      %s559 = sphi 0, %s558
      %s575 = sphi 0, %s559
      %s581 = sphi 0, %s583
      %s584 = sphi 0, %s581
      %s585 = sphi 0, %s584
      %s601 = sphi 0, %s585
      %s607 = sphi 0, %s609
      %s610 = sphi 0, %s607
      %s611 = sphi 0, %s610
      %s627 = sphi 0, %s611
      %s633 = sphi 0, %s635
      %s636 = sphi 0, %s633
      %s637 = sphi 0, %s636
      %s653 = sphi 0, %s637
      %s659 = sphi 0, %s661
      %s662 = sphi 0, %s659
      %s663 = sphi 0, %s662
      %s679 = sphi 0, %s663
      %s685 = sphi 0, %s687
      %s688 = sphi 0, %s685
      %s689 = sphi 0, %s688
      %s705 = sphi 0, %s689
      %s711 = sphi 0, %s713
      %s714 = sphi 0, %s711
      %s715 = sphi 0, %s714
      %s731 = sphi 0, %s715
      %s737 = sphi 0, %s739
      %s740 = sphi 0, %s737
      %s741 = sphi 0, %s740
      %s757 = sphi 0, %s741
      %s763 = sphi 0, %s765
      %s766 = sphi 0, %s763
      %s767 = sphi 0, %s766
      %s783 = sphi 0, %s767
      %s789 = sphi 0, %s791
      %s792 = sphi 0, %s789
      %s793 = sphi 0, %s792
      %s809 = sphi 0, %s793
      %s815 = sphi 0, %s817
      %s818 = sphi 0, %s815
      %s819 = sphi 0, %s818
      %s835 = sphi 0, %s819
      %s841 = sphi 0, %s843
      %s844 = sphi 0, %s841
      %s845 = sphi 0, %s844
      %s861 = sphi 0, %s845
      %s867 = sphi 0, %s869
      %s870 = sphi 0, %s867
      %s871 = sphi 0, %s870
      %s887 = sphi 0, %s871
      %s893 = sphi 0, %s895
      %s896 = sphi 0, %s893
      %s897 = sphi 0, %s896
      %s913 = sphi 0, %s897
    $region4: #{tpu_custom_call.1} parent=1 // loop_header_branch
      %94 = sbr.rel (%p92) target = $region8
    $region5: #{tpu_custom_call.1} parent=1 // loop_body
      %s96 = ssub.s32 %s91, 1
      %s97 = ssub.s32 %s91, 2
      %s104 = sadd.s32 1, %s99
      %p105 = scmp.ge.s32.totalorder %s104, 2
      %s106 = scalar_select %p105, 0, %s104
      %s107 = sadd.s32 1, %s98
      %s108 = scalar_select %p105, %s107, %s98
      %p109 = scmp.ge.s32.totalorder %s108, 2
      %s110 = scalar_select %p109, 0, %s108
      %s111 = ssub.s32 %s98, %s110
      %p112 = scmp.eq.s32.totalorder %s111, 0
      %s114 = sadd.s32 %s113, 1
      %s115 = scalar_select %p112, %s113, %s114
      %p118 = pneg %p112
      %p119 = scmp.eq.s32.totalorder %s91, 3
      %p120 = por %p118, %p119
      %p121 = scmp.ne.s32.totalorder %s113, %s116
      %p122 = scmp.eq.s32.totalorder %s91, 0
      %p123 = por %p121, %p122
      %p124 = scmp.ne.s32.totalorder %s113, %s116
      %p125 = scmp.eq.s32.totalorder %s96, 3
      %p126 = por %p124, %p125
      %p127 = scmp.ne.s32.totalorder %s116, %s117
      %p128 = scmp.eq.s32.totalorder %s96, 0
      %p129 = por %p127, %p128
      %p130 = scmp.ne.s32.totalorder %s116, %s117
      %p131 = scmp.eq.s32.totalorder %s97, 3
      %p132 = por %p130, %p131
      %p134 = scmp.ne.s32.totalorder %s117, %s133
      %p135 = scmp.eq.s32.totalorder %s97, 0
      %p136 = por %p134, %p135
      %s137 = ssub.s32 %s98, %s110
      %p138 = scmp.eq.s32.totalorder %s137, 0
      %s140 = sadd.s32 %s139, 1
      %s141 = scalar_select %p138, %s139, %s140
      %p144 = pneg %p138
      %p145 = scmp.eq.s32.totalorder %s91, 3
      %p146 = por %p144, %p145
      %p147 = scmp.ne.s32.totalorder %s139, %s142
      %p148 = scmp.eq.s32.totalorder %s91, 0
      %p149 = por %p147, %p148
      %p150 = scmp.ne.s32.totalorder %s139, %s142
      %p151 = scmp.eq.s32.totalorder %s96, 3
      %p152 = por %p150, %p151
      %p153 = scmp.ne.s32.totalorder %s142, %s143
      %p154 = scmp.eq.s32.totalorder %s96, 0
      %p155 = por %p153, %p154
      %p156 = scmp.ne.s32.totalorder %s142, %s143
      %p157 = scmp.eq.s32.totalorder %s97, 3
      %p158 = por %p156, %p157
      %p160 = scmp.ne.s32.totalorder %s143, %s159
      %p161 = scmp.eq.s32.totalorder %s97, 0
      %p162 = por %p160, %p161
      %s163 = ssub.s32 %s98, %s110
      %p164 = scmp.eq.s32.totalorder %s163, 0
      %s166 = sadd.s32 %s165, 1
      %s167 = scalar_select %p164, %s165, %s166
      %p170 = pneg %p164
      %p171 = scmp.eq.s32.totalorder %s91, 3
      %p172 = por %p170, %p171
      %p173 = scmp.ne.s32.totalorder %s165, %s168
      %p174 = scmp.eq.s32.totalorder %s91, 0
      %p175 = por %p173, %p174
      %p176 = scmp.ne.s32.totalorder %s165, %s168
      %p177 = scmp.eq.s32.totalorder %s96, 3
      %p178 = por %p176, %p177
      %p179 = scmp.ne.s32.totalorder %s168, %s169
      %p180 = scmp.eq.s32.totalorder %s96, 0
      %p181 = por %p179, %p180
      %p182 = scmp.ne.s32.totalorder %s168, %s169
      %p183 = scmp.eq.s32.totalorder %s97, 3
      %p184 = por %p182, %p183
      %p186 = scmp.ne.s32.totalorder %s169, %s185
      %p187 = scmp.eq.s32.totalorder %s97, 0
      %p188 = por %p186, %p187
      %s189 = ssub.s32 %s98, %s110
      %p190 = scmp.eq.s32.totalorder %s189, 0
      %s192 = sadd.s32 %s191, 1
      %s193 = scalar_select %p190, %s191, %s192
      %p196 = pneg %p190
      %p197 = scmp.eq.s32.totalorder %s91, 3
      %p198 = por %p196, %p197
      %p199 = scmp.ne.s32.totalorder %s191, %s194
      %p200 = scmp.eq.s32.totalorder %s91, 0
      %p201 = por %p199, %p200
      %p202 = scmp.ne.s32.totalorder %s191, %s194
      %p203 = scmp.eq.s32.totalorder %s96, 3
      %p204 = por %p202, %p203
      %p205 = scmp.ne.s32.totalorder %s194, %s195
      %p206 = scmp.eq.s32.totalorder %s96, 0
      %p207 = por %p205, %p206
      %p208 = scmp.ne.s32.totalorder %s194, %s195
      %p209 = scmp.eq.s32.totalorder %s97, 3
      %p210 = por %p208, %p209
      %p212 = scmp.ne.s32.totalorder %s195, %s211
      %p213 = scmp.eq.s32.totalorder %s97, 0
      %p214 = por %p212, %p213
      %s215 = ssub.s32 %s99, %s106
      %p216 = scmp.eq.s32.totalorder %s215, 0
      %s218 = sadd.s32 %s217, 1
      %s219 = scalar_select %p216, %s217, %s218
      %p222 = pneg %p216
      %p223 = scmp.eq.s32.totalorder %s91, 3
      %p224 = por %p222, %p223
      %p225 = scmp.ne.s32.totalorder %s217, %s220
      %p226 = scmp.eq.s32.totalorder %s91, 0
      %p227 = por %p225, %p226
      %p228 = scmp.ne.s32.totalorder %s217, %s220
      %p229 = scmp.eq.s32.totalorder %s96, 3
      %p230 = por %p228, %p229
      %p231 = scmp.ne.s32.totalorder %s220, %s221
      %p232 = scmp.eq.s32.totalorder %s96, 0
      %p233 = por %p231, %p232
      %p234 = scmp.ne.s32.totalorder %s220, %s221
      %p235 = scmp.eq.s32.totalorder %s97, 3
      %p236 = por %p234, %p235
      %p238 = scmp.ne.s32.totalorder %s221, %s237
      %p239 = scmp.eq.s32.totalorder %s97, 0
      %p240 = por %p238, %p239
      %s241 = ssub.s32 %s99, %s106
      %p242 = scmp.eq.s32.totalorder %s241, 0
      %s244 = sadd.s32 %s243, 1
      %s245 = scalar_select %p242, %s243, %s244
      %p248 = pneg %p242
      %p249 = scmp.eq.s32.totalorder %s91, 3
      %p250 = por %p248, %p249
      %p251 = scmp.ne.s32.totalorder %s243, %s246
      %p252 = scmp.eq.s32.totalorder %s91, 0
      %p253 = por %p251, %p252
      %p254 = scmp.ne.s32.totalorder %s243, %s246
      %p255 = scmp.eq.s32.totalorder %s96, 3
      %p256 = por %p254, %p255
      %p257 = scmp.ne.s32.totalorder %s246, %s247
      %p258 = scmp.eq.s32.totalorder %s96, 0
      %p259 = por %p257, %p258
      %p260 = scmp.ne.s32.totalorder %s246, %s247
      %p261 = scmp.eq.s32.totalorder %s97, 3
      %p262 = por %p260, %p261
      %p264 = scmp.ne.s32.totalorder %s247, %s263
      %p265 = scmp.eq.s32.totalorder %s97, 0
      %p266 = por %p264, %p265
      %s267 = ssub.s32 %s99, %s106
      %p268 = scmp.eq.s32.totalorder %s267, 0
      %s270 = sadd.s32 %s269, 1
      %s271 = scalar_select %p268, %s269, %s270
      %p274 = pneg %p268
      %p275 = scmp.eq.s32.totalorder %s91, 3
      %p276 = por %p274, %p275
      %p277 = scmp.ne.s32.totalorder %s269, %s272
      %p278 = scmp.eq.s32.totalorder %s91, 0
      %p279 = por %p277, %p278
      %p280 = scmp.ne.s32.totalorder %s269, %s272
      %p281 = scmp.eq.s32.totalorder %s96, 3
      %p282 = por %p280, %p281
      %p283 = scmp.ne.s32.totalorder %s272, %s273
      %p284 = scmp.eq.s32.totalorder %s96, 0
      %p285 = por %p283, %p284
      %p286 = scmp.ne.s32.totalorder %s272, %s273
      %p287 = scmp.eq.s32.totalorder %s97, 3
      %p288 = por %p286, %p287
      %p290 = scmp.ne.s32.totalorder %s273, %s289
      %p291 = scmp.eq.s32.totalorder %s97, 0
      %p292 = por %p290, %p291
      %s293 = ssub.s32 %s99, %s106
      %p294 = scmp.eq.s32.totalorder %s293, 0
      %s296 = sadd.s32 %s295, 1
      %s297 = scalar_select %p294, %s295, %s296
      %p300 = pneg %p294
      %p301 = scmp.eq.s32.totalorder %s91, 3
      %p302 = por %p300, %p301
      %p303 = scmp.ne.s32.totalorder %s295, %s298
      %p304 = scmp.eq.s32.totalorder %s91, 0
      %p305 = por %p303, %p304
      %p306 = scmp.ne.s32.totalorder %s295, %s298
      %p307 = scmp.eq.s32.totalorder %s96, 3
      %p308 = por %p306, %p307
      %p309 = scmp.ne.s32.totalorder %s298, %s299
      %p310 = scmp.eq.s32.totalorder %s96, 0
      %p311 = por %p309, %p310
      %p312 = scmp.ne.s32.totalorder %s298, %s299
      %p313 = scmp.eq.s32.totalorder %s97, 3
      %p314 = por %p312, %p313
      %p316 = scmp.ne.s32.totalorder %s299, %s315
      %p317 = scmp.eq.s32.totalorder %s97, 0
      %p318 = por %p316, %p317
      %s319 = ssub.s32 %s99, %s106
      %p320 = scmp.eq.s32.totalorder %s319, 0
      %s322 = sadd.s32 %s321, 1
      %s323 = scalar_select %p320, %s321, %s322
      %p326 = pneg %p320
      %p327 = scmp.eq.s32.totalorder %s91, 3
      %p328 = por %p326, %p327
      %p329 = scmp.ne.s32.totalorder %s321, %s324
      %p330 = scmp.eq.s32.totalorder %s91, 0
      %p331 = por %p329, %p330
      %p332 = scmp.ne.s32.totalorder %s321, %s324
      %p333 = scmp.eq.s32.totalorder %s96, 3
      %p334 = por %p332, %p333
      %p335 = scmp.ne.s32.totalorder %s324, %s325
      %p336 = scmp.eq.s32.totalorder %s96, 0
      %p337 = por %p335, %p336
      %p338 = scmp.ne.s32.totalorder %s324, %s325
      %p339 = scmp.eq.s32.totalorder %s97, 3
      %p340 = por %p338, %p339
      %p342 = scmp.ne.s32.totalorder %s325, %s341
      %p343 = scmp.eq.s32.totalorder %s97, 0
      %p344 = por %p342, %p343
      %s345 = ssub.s32 %s99, %s106
      %p346 = scmp.eq.s32.totalorder %s345, 0
      %s348 = sadd.s32 %s347, 1
      %s349 = scalar_select %p346, %s347, %s348
      %p352 = pneg %p346
      %p353 = scmp.eq.s32.totalorder %s91, 3
      %p354 = por %p352, %p353
      %p355 = scmp.ne.s32.totalorder %s347, %s350
      %p356 = scmp.eq.s32.totalorder %s91, 0
      %p357 = por %p355, %p356
      %p358 = scmp.ne.s32.totalorder %s347, %s350
      %p359 = scmp.eq.s32.totalorder %s96, 3
      %p360 = por %p358, %p359
      %p361 = scmp.ne.s32.totalorder %s350, %s351
      %p362 = scmp.eq.s32.totalorder %s96, 0
      %p363 = por %p361, %p362
      %p364 = scmp.ne.s32.totalorder %s350, %s351
      %p365 = scmp.eq.s32.totalorder %s97, 3
      %p366 = por %p364, %p365
      %p368 = scmp.ne.s32.totalorder %s351, %s367
      %p369 = scmp.eq.s32.totalorder %s97, 0
      %p370 = por %p368, %p369
      %s371 = ssub.s32 %s99, %s106
      %p372 = scmp.eq.s32.totalorder %s371, 0
      %s374 = sadd.s32 %s373, 1
      %s375 = scalar_select %p372, %s373, %s374
      %p378 = pneg %p372
      %p379 = scmp.eq.s32.totalorder %s91, 3
      %p380 = por %p378, %p379
      %p381 = scmp.ne.s32.totalorder %s373, %s376
      %p382 = scmp.eq.s32.totalorder %s91, 0
      %p383 = por %p381, %p382
      %p384 = scmp.ne.s32.totalorder %s373, %s376
      %p385 = scmp.eq.s32.totalorder %s96, 3
      %p386 = por %p384, %p385
      %p387 = scmp.ne.s32.totalorder %s376, %s377
      %p388 = scmp.eq.s32.totalorder %s96, 0
      %p389 = por %p387, %p388
      %p390 = scmp.ne.s32.totalorder %s376, %s377
      %p391 = scmp.eq.s32.totalorder %s97, 3
      %p392 = por %p390, %p391
      %p394 = scmp.ne.s32.totalorder %s377, %s393
      %p395 = scmp.eq.s32.totalorder %s97, 0
      %p396 = por %p394, %p395
      %s397 = ssub.s32 %s99, %s106
      %p398 = scmp.eq.s32.totalorder %s397, 0
      %s400 = sadd.s32 %s399, 1
      %s401 = scalar_select %p398, %s399, %s400
      %p404 = pneg %p398
      %p405 = scmp.eq.s32.totalorder %s91, 3
      %p406 = por %p404, %p405
      %p407 = scmp.ne.s32.totalorder %s399, %s402
      %p408 = scmp.eq.s32.totalorder %s91, 0
      %p409 = por %p407, %p408
      %p410 = scmp.ne.s32.totalorder %s399, %s402
      %p411 = scmp.eq.s32.totalorder %s96, 3
      %p412 = por %p410, %p411
      %p413 = scmp.ne.s32.totalorder %s402, %s403
      %p414 = scmp.eq.s32.totalorder %s96, 0
      %p415 = por %p413, %p414
      %p416 = scmp.ne.s32.totalorder %s402, %s403
      %p417 = scmp.eq.s32.totalorder %s97, 3
      %p418 = por %p416, %p417
      %p420 = scmp.ne.s32.totalorder %s403, %s419
      %p421 = scmp.eq.s32.totalorder %s97, 0
      %p422 = por %p420, %p421
      %s423 = ssub.s32 %s99, %s106
      %p424 = scmp.eq.s32.totalorder %s423, 0
      %s426 = sadd.s32 %s425, 1
      %s427 = scalar_select %p424, %s425, %s426
      %p430 = pneg %p424
      %p431 = scmp.eq.s32.totalorder %s91, 3
      %p432 = por %p430, %p431
      %p433 = scmp.ne.s32.totalorder %s425, %s428
      %p434 = scmp.eq.s32.totalorder %s91, 0
      %p435 = por %p433, %p434
      %p436 = scmp.ne.s32.totalorder %s425, %s428
      %p437 = scmp.eq.s32.totalorder %s96, 3
      %p438 = por %p436, %p437
      %p439 = scmp.ne.s32.totalorder %s428, %s429
      %p440 = scmp.eq.s32.totalorder %s96, 0
      %p441 = por %p439, %p440
      %p442 = scmp.ne.s32.totalorder %s428, %s429
      %p443 = scmp.eq.s32.totalorder %s97, 3
      %p444 = por %p442, %p443
      %p446 = scmp.ne.s32.totalorder %s429, %s445
      %p447 = scmp.eq.s32.totalorder %s97, 0
      %p448 = por %p446, %p447
      %s449 = ssub.s32 %s99, %s106
      %p450 = scmp.eq.s32.totalorder %s449, 0
      %s452 = sadd.s32 %s451, 1
      %s453 = scalar_select %p450, %s451, %s452
      %p456 = pneg %p450
      %p457 = scmp.eq.s32.totalorder %s91, 3
      %p458 = por %p456, %p457
      %p459 = scmp.ne.s32.totalorder %s451, %s454
      %p460 = scmp.eq.s32.totalorder %s91, 0
      %p461 = por %p459, %p460
      %p462 = scmp.ne.s32.totalorder %s451, %s454
      %p463 = scmp.eq.s32.totalorder %s96, 3
      %p464 = por %p462, %p463
      %p465 = scmp.ne.s32.totalorder %s454, %s455
      %p466 = scmp.eq.s32.totalorder %s96, 0
      %p467 = por %p465, %p466
      %p468 = scmp.ne.s32.totalorder %s454, %s455
      %p469 = scmp.eq.s32.totalorder %s97, 3
      %p470 = por %p468, %p469
      %p472 = scmp.ne.s32.totalorder %s455, %s471
      %p473 = scmp.eq.s32.totalorder %s97, 0
      %p474 = por %p472, %p473
      %s475 = ssub.s32 %s99, %s106
      %p476 = scmp.eq.s32.totalorder %s475, 0
      %s478 = sadd.s32 %s477, 1
      %s479 = scalar_select %p476, %s477, %s478
      %p482 = pneg %p476
      %p483 = scmp.eq.s32.totalorder %s91, 3
      %p484 = por %p482, %p483
      %p485 = scmp.ne.s32.totalorder %s477, %s480
      %p486 = scmp.eq.s32.totalorder %s91, 0
      %p487 = por %p485, %p486
      %p488 = scmp.ne.s32.totalorder %s477, %s480
      %p489 = scmp.eq.s32.totalorder %s96, 3
      %p490 = por %p488, %p489
      %p491 = scmp.ne.s32.totalorder %s480, %s481
      %p492 = scmp.eq.s32.totalorder %s96, 0
      %p493 = por %p491, %p492
      %p494 = scmp.ne.s32.totalorder %s480, %s481
      %p495 = scmp.eq.s32.totalorder %s97, 3
      %p496 = por %p494, %p495
      %p498 = scmp.ne.s32.totalorder %s481, %s497
      %p499 = scmp.eq.s32.totalorder %s97, 0
      %p500 = por %p498, %p499
      %s501 = ssub.s32 %s99, %s106
      %p502 = scmp.eq.s32.totalorder %s501, 0
      %s504 = sadd.s32 %s503, 1
      %s505 = scalar_select %p502, %s503, %s504
      %p508 = pneg %p502
      %p509 = scmp.eq.s32.totalorder %s91, 3
      %p510 = por %p508, %p509
      %p511 = scmp.ne.s32.totalorder %s503, %s506
      %p512 = scmp.eq.s32.totalorder %s91, 0
      %p513 = por %p511, %p512
      %p514 = scmp.ne.s32.totalorder %s503, %s506
      %p515 = scmp.eq.s32.totalorder %s96, 3
      %p516 = por %p514, %p515
      %p517 = scmp.ne.s32.totalorder %s506, %s507
      %p518 = scmp.eq.s32.totalorder %s96, 0
      %p519 = por %p517, %p518
      %p520 = scmp.ne.s32.totalorder %s506, %s507
      %p521 = scmp.eq.s32.totalorder %s97, 3
      %p522 = por %p520, %p521
      %p524 = scmp.ne.s32.totalorder %s507, %s523
      %p525 = scmp.eq.s32.totalorder %s97, 0
      %p526 = por %p524, %p525
      %s527 = ssub.s32 %s99, %s106
      %p528 = scmp.eq.s32.totalorder %s527, 0
      %s530 = sadd.s32 %s529, 1
      %s531 = scalar_select %p528, %s529, %s530
      %p534 = pneg %p528
      %p535 = scmp.eq.s32.totalorder %s91, 3
      %p536 = por %p534, %p535
      %p537 = scmp.ne.s32.totalorder %s529, %s532
      %p538 = scmp.eq.s32.totalorder %s91, 0
      %p539 = por %p537, %p538
      %p540 = scmp.ne.s32.totalorder %s529, %s532
      %p541 = scmp.eq.s32.totalorder %s96, 3
      %p542 = por %p540, %p541
      %p543 = scmp.ne.s32.totalorder %s532, %s533
      %p544 = scmp.eq.s32.totalorder %s96, 0
      %p545 = por %p543, %p544
      %p546 = scmp.ne.s32.totalorder %s532, %s533
      %p547 = scmp.eq.s32.totalorder %s97, 3
      %p548 = por %p546, %p547
      %p550 = scmp.ne.s32.totalorder %s533, %s549
      %p551 = scmp.eq.s32.totalorder %s97, 0
      %p552 = por %p550, %p551
      %s553 = ssub.s32 %s99, %s106
      %p554 = scmp.eq.s32.totalorder %s553, 0
      %s556 = sadd.s32 %s555, 1
      %s557 = scalar_select %p554, %s555, %s556
      %p560 = pneg %p554
      %p561 = scmp.eq.s32.totalorder %s91, 3
      %p562 = por %p560, %p561
      %p563 = scmp.ne.s32.totalorder %s555, %s558
      %p564 = scmp.eq.s32.totalorder %s91, 0
      %p565 = por %p563, %p564
      %p566 = scmp.ne.s32.totalorder %s555, %s558
      %p567 = scmp.eq.s32.totalorder %s96, 3
      %p568 = por %p566, %p567
      %p569 = scmp.ne.s32.totalorder %s558, %s559
      %p570 = scmp.eq.s32.totalorder %s96, 0
      %p571 = por %p569, %p570
      %p572 = scmp.ne.s32.totalorder %s558, %s559
      %p573 = scmp.eq.s32.totalorder %s97, 3
      %p574 = por %p572, %p573
      %p576 = scmp.ne.s32.totalorder %s559, %s575
      %p577 = scmp.eq.s32.totalorder %s97, 0
      %p578 = por %p576, %p577
      %s579 = ssub.s32 %s99, %s106
      %p580 = scmp.eq.s32.totalorder %s579, 0
      %s582 = sadd.s32 %s581, 1
      %s583 = scalar_select %p580, %s581, %s582
      %p586 = pneg %p580
      %p587 = scmp.eq.s32.totalorder %s91, 3
      %p588 = por %p586, %p587
      %p589 = scmp.ne.s32.totalorder %s581, %s584
      %p590 = scmp.eq.s32.totalorder %s91, 0
      %p591 = por %p589, %p590
      %p592 = scmp.ne.s32.totalorder %s581, %s584
      %p593 = scmp.eq.s32.totalorder %s96, 3
      %p594 = por %p592, %p593
      %p595 = scmp.ne.s32.totalorder %s584, %s585
      %p596 = scmp.eq.s32.totalorder %s96, 0
      %p597 = por %p595, %p596
      %p598 = scmp.ne.s32.totalorder %s584, %s585
      %p599 = scmp.eq.s32.totalorder %s97, 3
      %p600 = por %p598, %p599
      %p602 = scmp.ne.s32.totalorder %s585, %s601
      %p603 = scmp.eq.s32.totalorder %s97, 0
      %p604 = por %p602, %p603
      %s605 = ssub.s32 %s99, %s106
      %p606 = scmp.eq.s32.totalorder %s605, 0
      %s608 = sadd.s32 %s607, 1
      %s609 = scalar_select %p606, %s607, %s608
      %p612 = pneg %p606
      %p613 = scmp.eq.s32.totalorder %s91, 3
      %p614 = por %p612, %p613
      %p615 = scmp.ne.s32.totalorder %s607, %s610
      %p616 = scmp.eq.s32.totalorder %s91, 0
      %p617 = por %p615, %p616
      %p618 = scmp.ne.s32.totalorder %s607, %s610
      %p619 = scmp.eq.s32.totalorder %s96, 3
      %p620 = por %p618, %p619
      %p621 = scmp.ne.s32.totalorder %s610, %s611
      %p622 = scmp.eq.s32.totalorder %s96, 0
      %p623 = por %p621, %p622
      %p624 = scmp.ne.s32.totalorder %s610, %s611
      %p625 = scmp.eq.s32.totalorder %s97, 3
      %p626 = por %p624, %p625
      %p628 = scmp.ne.s32.totalorder %s611, %s627
      %p629 = scmp.eq.s32.totalorder %s97, 0
      %p630 = por %p628, %p629
      %s631 = ssub.s32 %s99, %s106
      %p632 = scmp.eq.s32.totalorder %s631, 0
      %s634 = sadd.s32 %s633, 1
      %s635 = scalar_select %p632, %s633, %s634
      %p638 = pneg %p632
      %p639 = scmp.eq.s32.totalorder %s91, 3
      %p640 = por %p638, %p639
      %p641 = scmp.ne.s32.totalorder %s633, %s636
      %p642 = scmp.eq.s32.totalorder %s91, 0
      %p643 = por %p641, %p642
      %p644 = scmp.ne.s32.totalorder %s633, %s636
      %p645 = scmp.eq.s32.totalorder %s96, 3
      %p646 = por %p644, %p645
      %p647 = scmp.ne.s32.totalorder %s636, %s637
      %p648 = scmp.eq.s32.totalorder %s96, 0
      %p649 = por %p647, %p648
      %p650 = scmp.ne.s32.totalorder %s636, %s637
      %p651 = scmp.eq.s32.totalorder %s97, 3
      %p652 = por %p650, %p651
      %p654 = scmp.ne.s32.totalorder %s637, %s653
      %p655 = scmp.eq.s32.totalorder %s97, 0
      %p656 = por %p654, %p655
      %s657 = ssub.s32 %s99, %s106
      %p658 = scmp.eq.s32.totalorder %s657, 0
      %s660 = sadd.s32 %s659, 1
      %s661 = scalar_select %p658, %s659, %s660
      %p664 = pneg %p658
      %p665 = scmp.eq.s32.totalorder %s91, 3
      %p666 = por %p664, %p665
      %p667 = scmp.ne.s32.totalorder %s659, %s662
      %p668 = scmp.eq.s32.totalorder %s91, 0
      %p669 = por %p667, %p668
      %p670 = scmp.ne.s32.totalorder %s659, %s662
      %p671 = scmp.eq.s32.totalorder %s96, 3
      %p672 = por %p670, %p671
      %p673 = scmp.ne.s32.totalorder %s662, %s663
      %p674 = scmp.eq.s32.totalorder %s96, 0
      %p675 = por %p673, %p674
      %p676 = scmp.ne.s32.totalorder %s662, %s663
      %p677 = scmp.eq.s32.totalorder %s97, 3
      %p678 = por %p676, %p677
      %p680 = scmp.ne.s32.totalorder %s663, %s679
      %p681 = scmp.eq.s32.totalorder %s97, 0
      %p682 = por %p680, %p681
      %s683 = ssub.s32 %s99, %s106
      %p684 = scmp.eq.s32.totalorder %s683, 0
      %s686 = sadd.s32 %s685, 1
      %s687 = scalar_select %p684, %s685, %s686
      %p690 = pneg %p684
      %p691 = scmp.eq.s32.totalorder %s91, 3
      %p692 = por %p690, %p691
      %p693 = scmp.ne.s32.totalorder %s685, %s688
      %p694 = scmp.eq.s32.totalorder %s91, 0
      %p695 = por %p693, %p694
      %p696 = scmp.ne.s32.totalorder %s685, %s688
      %p697 = scmp.eq.s32.totalorder %s96, 3
      %p698 = por %p696, %p697
      %p699 = scmp.ne.s32.totalorder %s688, %s689
      %p700 = scmp.eq.s32.totalorder %s96, 0
      %p701 = por %p699, %p700
      %p702 = scmp.ne.s32.totalorder %s688, %s689
      %p703 = scmp.eq.s32.totalorder %s97, 3
      %p704 = por %p702, %p703
      %p706 = scmp.ne.s32.totalorder %s689, %s705
      %p707 = scmp.eq.s32.totalorder %s97, 0
      %p708 = por %p706, %p707
      %s709 = ssub.s32 %s99, %s106
      %p710 = scmp.eq.s32.totalorder %s709, 0
      %s712 = sadd.s32 %s711, 1
      %s713 = scalar_select %p710, %s711, %s712
      %p716 = pneg %p710
      %p717 = scmp.eq.s32.totalorder %s91, 3
      %p718 = por %p716, %p717
      %p719 = scmp.ne.s32.totalorder %s711, %s714
      %p720 = scmp.eq.s32.totalorder %s91, 0
      %p721 = por %p719, %p720
      %p722 = scmp.ne.s32.totalorder %s711, %s714
      %p723 = scmp.eq.s32.totalorder %s96, 3
      %p724 = por %p722, %p723
      %p725 = scmp.ne.s32.totalorder %s714, %s715
      %p726 = scmp.eq.s32.totalorder %s96, 0
      %p727 = por %p725, %p726
      %p728 = scmp.ne.s32.totalorder %s714, %s715
      %p729 = scmp.eq.s32.totalorder %s97, 3
      %p730 = por %p728, %p729
      %p732 = scmp.ne.s32.totalorder %s715, %s731
      %p733 = scmp.eq.s32.totalorder %s97, 0
      %p734 = por %p732, %p733
      %s735 = ssub.s32 %s99, %s106
      %p736 = scmp.eq.s32.totalorder %s735, 0
      %s738 = sadd.s32 %s737, 1
      %s739 = scalar_select %p736, %s737, %s738
      %p742 = pneg %p736
      %p743 = scmp.eq.s32.totalorder %s91, 3
      %p744 = por %p742, %p743
      %p745 = scmp.ne.s32.totalorder %s737, %s740
      %p746 = scmp.eq.s32.totalorder %s91, 0
      %p747 = por %p745, %p746
      %p748 = scmp.ne.s32.totalorder %s737, %s740
      %p749 = scmp.eq.s32.totalorder %s96, 3
      %p750 = por %p748, %p749
      %p751 = scmp.ne.s32.totalorder %s740, %s741
      %p752 = scmp.eq.s32.totalorder %s96, 0
      %p753 = por %p751, %p752
      %p754 = scmp.ne.s32.totalorder %s740, %s741
      %p755 = scmp.eq.s32.totalorder %s97, 3
      %p756 = por %p754, %p755
      %p758 = scmp.ne.s32.totalorder %s741, %s757
      %p759 = scmp.eq.s32.totalorder %s97, 0
      %p760 = por %p758, %p759
      %s761 = ssub.s32 %s99, %s106
      %p762 = scmp.eq.s32.totalorder %s761, 0
      %s764 = sadd.s32 %s763, 1
      %s765 = scalar_select %p762, %s763, %s764
      %p768 = pneg %p762
      %p769 = scmp.eq.s32.totalorder %s91, 3
      %p770 = por %p768, %p769
      %p771 = scmp.ne.s32.totalorder %s763, %s766
      %p772 = scmp.eq.s32.totalorder %s91, 0
      %p773 = por %p771, %p772
      %p774 = scmp.ne.s32.totalorder %s763, %s766
      %p775 = scmp.eq.s32.totalorder %s96, 3
      %p776 = por %p774, %p775
      %p777 = scmp.ne.s32.totalorder %s766, %s767
      %p778 = scmp.eq.s32.totalorder %s96, 0
      %p779 = por %p777, %p778
      %p780 = scmp.ne.s32.totalorder %s766, %s767
      %p781 = scmp.eq.s32.totalorder %s97, 3
      %p782 = por %p780, %p781
      %p784 = scmp.ne.s32.totalorder %s767, %s783
      %p785 = scmp.eq.s32.totalorder %s97, 0
      %p786 = por %p784, %p785
      %s787 = ssub.s32 %s99, %s106
      %p788 = scmp.eq.s32.totalorder %s787, 0
      %s790 = sadd.s32 %s789, 1
      %s791 = scalar_select %p788, %s789, %s790
      %p794 = pneg %p788
      %p795 = scmp.eq.s32.totalorder %s91, 3
      %p796 = por %p794, %p795
      %p797 = scmp.ne.s32.totalorder %s789, %s792
      %p798 = scmp.eq.s32.totalorder %s91, 0
      %p799 = por %p797, %p798
      %p800 = scmp.ne.s32.totalorder %s789, %s792
      %p801 = scmp.eq.s32.totalorder %s96, 3
      %p802 = por %p800, %p801
      %p803 = scmp.ne.s32.totalorder %s792, %s793
      %p804 = scmp.eq.s32.totalorder %s96, 0
      %p805 = por %p803, %p804
      %p806 = scmp.ne.s32.totalorder %s792, %s793
      %p807 = scmp.eq.s32.totalorder %s97, 3
      %p808 = por %p806, %p807
      %p810 = scmp.ne.s32.totalorder %s793, %s809
      %p811 = scmp.eq.s32.totalorder %s97, 0
      %p812 = por %p810, %p811
      %s813 = ssub.s32 %s99, %s106
      %p814 = scmp.eq.s32.totalorder %s813, 0
      %s816 = sadd.s32 %s815, 1
      %s817 = scalar_select %p814, %s815, %s816
      %p820 = pneg %p814
      %p821 = scmp.eq.s32.totalorder %s91, 3
      %p822 = por %p820, %p821
      %p823 = scmp.ne.s32.totalorder %s815, %s818
      %p824 = scmp.eq.s32.totalorder %s91, 0
      %p825 = por %p823, %p824
      %p826 = scmp.ne.s32.totalorder %s815, %s818
      %p827 = scmp.eq.s32.totalorder %s96, 3
      %p828 = por %p826, %p827
      %p829 = scmp.ne.s32.totalorder %s818, %s819
      %p830 = scmp.eq.s32.totalorder %s96, 0
      %p831 = por %p829, %p830
      %p832 = scmp.ne.s32.totalorder %s818, %s819
      %p833 = scmp.eq.s32.totalorder %s97, 3
      %p834 = por %p832, %p833
      %p836 = scmp.ne.s32.totalorder %s819, %s835
      %p837 = scmp.eq.s32.totalorder %s97, 0
      %p838 = por %p836, %p837
      %s839 = ssub.s32 %s99, %s106
      %p840 = scmp.eq.s32.totalorder %s839, 0
      %s842 = sadd.s32 %s841, 1
      %s843 = scalar_select %p840, %s841, %s842
      %p846 = pneg %p840
      %p847 = scmp.eq.s32.totalorder %s91, 3
      %p848 = por %p846, %p847
      %p849 = scmp.ne.s32.totalorder %s841, %s844
      %p850 = scmp.eq.s32.totalorder %s91, 0
      %p851 = por %p849, %p850
      %p852 = scmp.ne.s32.totalorder %s841, %s844
      %p853 = scmp.eq.s32.totalorder %s96, 3
      %p854 = por %p852, %p853
      %p855 = scmp.ne.s32.totalorder %s844, %s845
      %p856 = scmp.eq.s32.totalorder %s96, 0
      %p857 = por %p855, %p856
      %p858 = scmp.ne.s32.totalorder %s844, %s845
      %p859 = scmp.eq.s32.totalorder %s97, 3
      %p860 = por %p858, %p859
      %p862 = scmp.ne.s32.totalorder %s845, %s861
      %p863 = scmp.eq.s32.totalorder %s97, 0
      %p864 = por %p862, %p863
      %s865 = ssub.s32 %s99, %s106
      %p866 = scmp.eq.s32.totalorder %s865, 0
      %s868 = sadd.s32 %s867, 1
      %s869 = scalar_select %p866, %s867, %s868
      %p872 = pneg %p866
      %p873 = scmp.eq.s32.totalorder %s91, 3
      %p874 = por %p872, %p873
      %p875 = scmp.ne.s32.totalorder %s867, %s870
      %p876 = scmp.eq.s32.totalorder %s91, 0
      %p877 = por %p875, %p876
      %p878 = scmp.ne.s32.totalorder %s867, %s870
      %p879 = scmp.eq.s32.totalorder %s96, 3
      %p880 = por %p878, %p879
      %p881 = scmp.ne.s32.totalorder %s870, %s871
      %p882 = scmp.eq.s32.totalorder %s96, 0
      %p883 = por %p881, %p882
      %p884 = scmp.ne.s32.totalorder %s870, %s871
      %p885 = scmp.eq.s32.totalorder %s97, 3
      %p886 = por %p884, %p885
      %p888 = scmp.ne.s32.totalorder %s871, %s887
      %p889 = scmp.eq.s32.totalorder %s97, 0
      %p890 = por %p888, %p889
      %s891 = ssub.s32 %s98, %s110
      %p892 = scmp.eq.s32.totalorder %s891, 0
      %s894 = sadd.s32 %s893, 1
      %s895 = scalar_select %p892, %s893, %s894
      %p898 = pneg %p892
      %p899 = scmp.eq.s32.totalorder %s91, 3
      %p900 = por %p898, %p899
      %p901 = scmp.ne.s32.totalorder %s893, %s896
      %p902 = scmp.eq.s32.totalorder %s91, 0
      %p903 = por %p901, %p902
      %p904 = scmp.ne.s32.totalorder %s893, %s896
      %p905 = scmp.eq.s32.totalorder %s96, 3
      %p906 = por %p904, %p905
      %p907 = scmp.ne.s32.totalorder %s896, %s897
      %p908 = scmp.eq.s32.totalorder %s96, 0
      %p909 = por %p907, %p908
      %p910 = scmp.ne.s32.totalorder %s896, %s897
      %p911 = scmp.eq.s32.totalorder %s97, 3
      %p912 = por %p910, %p911
      %p914 = scmp.ne.s32.totalorder %s897, %s913
      %p915 = scmp.eq.s32.totalorder %s97, 0
      %p916 = por %p914, %p915
      %p917 = scmp.le.s32.totalorder 1, %s91
      %p918 = scmp.lt.s32.totalorder %s91, 5
      %p919 = pnand %p917, %p918
      %p920 = pneg %p919
      // Predicated region
      $region9: #{tpu_custom_call.1} parent=5 // pred_check
        _
      $region10: #{tpu_custom_call.1} parent=5 // pred_check_branch
        %922 = sbr.rel (%p919) target = $region12
      $region11: #{tpu_custom_call.1} parent=5 // pred_region
        %s923 = ssub.s32 %s91, 1
      $region12: #{tpu_custom_call.1} parent=5 // pred_fallthru
        _
      %p924 = scmp.lt.s32.totalorder %s91, 4
      // Predicated region
      $region13: #{tpu_custom_call.1} parent=5 // pred_check
        %p925 = pneg %p924
      $region14: #{tpu_custom_call.1} parent=5 // pred_check_branch
        %927 = sbr.rel (%p925) target = $region16
      $region15: #{tpu_custom_call.1} parent=5 // pred_region
        // Predicated region
        $region17: #{tpu_custom_call.1} parent=15 // pred_check
          %p928 = pneg %p123
        $region18: #{tpu_custom_call.1} parent=15 // pred_check_branch
          %930 = sbr.rel (%p928) target = $region20
        $region19: #{tpu_custom_call.1} parent=15 // pred_region
          %s931 = sand.u32 %s113, 1
          %s932 = scalar_lea.sflag [#allocation4], %s931
          %s933 = sand.u32 %s113, 1
          %s934 = smul.addr %s933, 8
          %s935 = scalar_lea.vmem [#allocation3], %s934
          %937 = vsyncadd %s932, 0
          %s938 = smul.addr %s98, 8
          %s939 = scalar_lea.hbm %s1, %s938
          %s941 = sshll.u32 %s939, 4
          %s942 = int_to_ptr.hbm [resolvable:$true] %s941
          %s943 = sshll.u32 %s935, 4
          %s944 = int_to_ptr.vmem [resolvable:$true] %s943
          %946 = dma.hbm_to_vmem [thread:$0]  %s942, 128, %s944, %s932
        $region20: #{tpu_custom_call.1} parent=15 // pred_fallthru
          _
        // Predicated region
        $region21: #{tpu_custom_call.1} parent=15 // pred_check
          %p947 = pneg %p149
        $region22: #{tpu_custom_call.1} parent=15 // pred_check_branch
          %949 = sbr.rel (%p947) target = $region24
        $region23: #{tpu_custom_call.1} parent=15 // pred_region
          %s950 = sand.u32 %s91, 1
          %s951 = scalar_lea.sflag [#allocation7], %s950
          %s952 = sand.u32 %s139, 1
          %s953 = smul.addr %s952, 4
          %s954 = scalar_lea.vmem [#allocation6], %s953
          %956 = vsyncadd %s951, 0
          %s957 = smul.addr %s98, 4
          %s958 = scalar_lea.hbm %s3, %s957
          %s960 = sshll.u32 %s958, 4
          %s961 = int_to_ptr.hbm [resolvable:$true] %s960
          %s962 = sshll.u32 %s954, 4
          %s963 = int_to_ptr.vmem [resolvable:$true] %s962
          %965 = dma.hbm_to_vmem [thread:$0]  %s961, 64, %s963, %s951
        $region24: #{tpu_custom_call.1} parent=15 // pred_fallthru
          _
        // Predicated region
        $region25: #{tpu_custom_call.1} parent=15 // pred_check
          %p966 = pneg %p175
        $region26: #{tpu_custom_call.1} parent=15 // pred_check_branch
          %968 = sbr.rel (%p966) target = $region28
        $region27: #{tpu_custom_call.1} parent=15 // pred_region
          %s969 = sand.u32 %s91, 1
          %s970 = scalar_lea.sflag [#allocation7], %s969
          %s971 = sand.u32 %s165, 1
          %s972 = smul.addr %s971, 4
          %s973 = scalar_lea.vmem [#allocation8], %s972
          %975 = vsyncadd %s970, 0
          %s976 = smul.addr %s98, 4
          %s977 = scalar_lea.hbm %s5, %s976
          %s979 = sshll.u32 %s977, 4
          %s980 = int_to_ptr.hbm [resolvable:$true] %s979
          %s981 = sshll.u32 %s973, 4
          %s982 = int_to_ptr.vmem [resolvable:$true] %s981
          %984 = dma.hbm_to_vmem [thread:$0]  %s980, 64, %s982, %s970
        $region28: #{tpu_custom_call.1} parent=15 // pred_fallthru
          _
        // Predicated region
        $region29: #{tpu_custom_call.1} parent=15 // pred_check
          %p985 = pneg %p201
        $region30: #{tpu_custom_call.1} parent=15 // pred_check_branch
          %987 = sbr.rel (%p985) target = $region32
        $region31: #{tpu_custom_call.1} parent=15 // pred_region
          %s988 = sand.u32 %s91, 1
          %s989 = scalar_lea.sflag [#allocation10], %s988
          %s990 = sand.u32 %s191, 1
          %s991 = smul.addr %s990, 4
          %s992 = scalar_lea.vmem [#allocation9], %s991
          %994 = vsyncadd %s989, 0
          %s995 = smul.addr %s98, 4
          %s996 = scalar_lea.hbm %s7, %s995
          %s998 = sshll.u32 %s996, 4
          %s999 = int_to_ptr.hbm [resolvable:$true] %s998
          %s1000 = sshll.u32 %s992, 4
          %s1001 = int_to_ptr.vmem [resolvable:$true] %s1000
          %1003 = dma.hbm_to_vmem [thread:$0]  %s999, 64, %s1001, %s989
        $region32: #{tpu_custom_call.1} parent=15 // pred_fallthru
          _
        // Predicated region
        $region33: #{tpu_custom_call.1} parent=15 // pred_check
          %p1004 = pneg %p227
        $region34: #{tpu_custom_call.1} parent=15 // pred_check_branch
          %1006 = sbr.rel (%p1004) target = $region36
        $region35: #{tpu_custom_call.1} parent=15 // pred_region
          %p1007 = scmp.lt.s32.totalorder %s99, 1
          %s1008 = scalar_select %p1007, %s99, 1
          %s1009 = smul.addr %s1008, 4
          %s1010 = smul.addr %s1009, 4
          %s1011 = scalar_lea.vmem %s9, %s1010
        $region36: #{tpu_custom_call.1} parent=15 // pred_fallthru
          _
        // Predicated region
        $region37: #{tpu_custom_call.1} parent=15 // pred_check
          %p1012 = pneg %p253
        $region38: #{tpu_custom_call.1} parent=15 // pred_check_branch
          %1014 = sbr.rel (%p1012) target = $region40
        $region39: #{tpu_custom_call.1} parent=15 // pred_region
          %p1015 = scmp.lt.s32.totalorder %s99, 1
          %s1016 = scalar_select %p1015, %s99, 1
          %s1017 = scalar_lea.vmem %s11, %s1016
        $region40: #{tpu_custom_call.1} parent=15 // pred_fallthru
          _
        // Predicated region
        $region41: #{tpu_custom_call.1} parent=15 // pred_check
          %p1018 = pneg %p279
        $region42: #{tpu_custom_call.1} parent=15 // pred_check_branch
          %1020 = sbr.rel (%p1018) target = $region44
        $region43: #{tpu_custom_call.1} parent=15 // pred_region
          %p1021 = scmp.lt.s32.totalorder %s99, 1
          %s1022 = scalar_select %p1021, %s99, 1
          %s1023 = smul.addr %s1022, 4
          %s1024 = smul.addr %s1023, 4
          %s1025 = scalar_lea.vmem %s13, %s1024
        $region44: #{tpu_custom_call.1} parent=15 // pred_fallthru
          _
        // Predicated region
        $region45: #{tpu_custom_call.1} parent=15 // pred_check
          %p1026 = pneg %p305
        $region46: #{tpu_custom_call.1} parent=15 // pred_check_branch
          %1028 = sbr.rel (%p1026) target = $region48
        $region47: #{tpu_custom_call.1} parent=15 // pred_region
          %p1029 = scmp.lt.s32.totalorder %s99, 1
          %s1030 = scalar_select %p1029, %s99, 1
          %s1031 = scalar_lea.vmem %s15, %s1030
        $region48: #{tpu_custom_call.1} parent=15 // pred_fallthru
          _
        // Predicated region
        $region49: #{tpu_custom_call.1} parent=15 // pred_check
          %p1032 = pneg %p331
        $region50: #{tpu_custom_call.1} parent=15 // pred_check_branch
          %1034 = sbr.rel (%p1032) target = $region52
        $region51: #{tpu_custom_call.1} parent=15 // pred_region
          %p1035 = scmp.lt.s32.totalorder %s99, 1
          %s1036 = scalar_select %p1035, %s99, 1
          %s1037 = smul.addr %s1036, 4
          %s1038 = smul.addr %s1037, 4
          %s1039 = scalar_lea.vmem %s17, %s1038
        $region52: #{tpu_custom_call.1} parent=15 // pred_fallthru
          _
        // Predicated region
        $region53: #{tpu_custom_call.1} parent=15 // pred_check
          %p1040 = pneg %p357
        $region54: #{tpu_custom_call.1} parent=15 // pred_check_branch
          %1042 = sbr.rel (%p1040) target = $region56
        $region55: #{tpu_custom_call.1} parent=15 // pred_region
          %p1043 = scmp.lt.s32.totalorder %s99, 1
          %s1044 = scalar_select %p1043, %s99, 1
          %s1045 = scalar_lea.vmem %s19, %s1044
        $region56: #{tpu_custom_call.1} parent=15 // pred_fallthru
          _
        // Predicated region
        $region57: #{tpu_custom_call.1} parent=15 // pred_check
          %p1046 = pneg %p383
        $region58: #{tpu_custom_call.1} parent=15 // pred_check_branch
          %1048 = sbr.rel (%p1046) target = $region60
        $region59: #{tpu_custom_call.1} parent=15 // pred_region
          %s1049 = sand.u32 %s91, 1
          %s1050 = scalar_lea.sflag [#allocation10], %s1049
          %s1051 = sand.u32 %s373, 1
          %s1052 = smul.addr %s1051, 16
          %s1053 = scalar_lea.vmem [#allocation11], %s1052
          %1055 = vsyncadd %s1050, 0
          %s1056 = smul.addr %s99, 4
          %s1057 = smul.addr %s1056, 4
          %s1058 = scalar_lea.hbm %s21, %s1057
          %s1059 = sshll.u32 %s1058, 4
          %s1060 = int_to_ptr.hbm [resolvable:$true] %s1059
          %s1061 = sshll.u32 %s1053, 4
          %s1062 = int_to_ptr.vmem [resolvable:$true] %s1061
          %1067 = dma.hbm_to_vmem [thread:$0]  %s1060, 256, %s1062, %s1050, 64, 64, 4
        $region60: #{tpu_custom_call.1} parent=15 // pred_fallthru
          _
        // Predicated region
        $region61: #{tpu_custom_call.1} parent=15 // pred_check
          %p1068 = pneg %p409
        $region62: #{tpu_custom_call.1} parent=15 // pred_check_branch
          %1070 = sbr.rel (%p1068) target = $region64
        $region63: #{tpu_custom_call.1} parent=15 // pred_region
          %p1071 = scmp.lt.s32.totalorder %s99, 1
          %s1072 = scalar_select %p1071, %s99, 1
          %s1073 = scalar_lea.vmem %s23, %s1072
        $region64: #{tpu_custom_call.1} parent=15 // pred_fallthru
          _
        // Predicated region
        $region65: #{tpu_custom_call.1} parent=15 // pred_check
          %p1074 = pneg %p435
        $region66: #{tpu_custom_call.1} parent=15 // pred_check_branch
          %1076 = sbr.rel (%p1074) target = $region68
        $region67: #{tpu_custom_call.1} parent=15 // pred_region
          %p1077 = scmp.lt.s32.totalorder %s99, 1
          %s1078 = scalar_select %p1077, %s99, 1
          %s1079 = scalar_lea.vmem %s25, %s1078
        $region68: #{tpu_custom_call.1} parent=15 // pred_fallthru
          _
        // Predicated region
        $region69: #{tpu_custom_call.1} parent=15 // pred_check
          %p1080 = pneg %p461
        $region70: #{tpu_custom_call.1} parent=15 // pred_check_branch
          %1082 = sbr.rel (%p1080) target = $region72
        $region71: #{tpu_custom_call.1} parent=15 // pred_region
          %s1083 = sand.u32 %s91, 1
          %s1084 = scalar_lea.sflag [#allocation13], %s1083
          %s1085 = sand.u32 %s451, 1
          %s1086 = scalar_lea.vmem [#allocation12], %s1085
          %1088 = vsyncadd %s1084, 0
          %s1089 = scalar_lea.hbm %s27, %s99
          %s1091 = sshll.u32 %s1089, 4
          %s1092 = int_to_ptr.hbm [resolvable:$true] %s1091
          %s1093 = sshll.u32 %s1086, 4
          %s1094 = int_to_ptr.vmem [resolvable:$true] %s1093
          %1096 = dma.hbm_to_vmem [thread:$0]  %s1092, 16, %s1094, %s1084
        $region72: #{tpu_custom_call.1} parent=15 // pred_fallthru
          _
        // Predicated region
        $region73: #{tpu_custom_call.1} parent=15 // pred_check
          %p1097 = pneg %p487
        $region74: #{tpu_custom_call.1} parent=15 // pred_check_branch
          %1099 = sbr.rel (%p1097) target = $region76
        $region75: #{tpu_custom_call.1} parent=15 // pred_region
          %s1100 = sand.u32 %s91, 1
          %s1101 = scalar_lea.sflag [#allocation13], %s1100
          %s1102 = sand.u32 %s477, 1
          %s1103 = smul.addr %s1102, 16
          %s1104 = scalar_lea.vmem [#allocation14], %s1103
          %1106 = vsyncadd %s1101, 0
          %s1107 = smul.addr %s99, 4
          %s1108 = smul.addr %s1107, 4
          %s1109 = scalar_lea.hbm %s29, %s1108
          %s1110 = sshll.u32 %s1109, 4
          %s1111 = int_to_ptr.hbm [resolvable:$true] %s1110
          %s1112 = sshll.u32 %s1104, 4
          %s1113 = int_to_ptr.vmem [resolvable:$true] %s1112
          %1118 = dma.hbm_to_vmem [thread:$0]  %s1111, 256, %s1113, %s1101, 64, 64, 4
        $region76: #{tpu_custom_call.1} parent=15 // pred_fallthru
          _
        // Predicated region
        $region77: #{tpu_custom_call.1} parent=15 // pred_check
          %p1119 = pneg %p513
        $region78: #{tpu_custom_call.1} parent=15 // pred_check_branch
          %1121 = sbr.rel (%p1119) target = $region80
        $region79: #{tpu_custom_call.1} parent=15 // pred_region
          %p1122 = scmp.lt.s32.totalorder %s99, 1
          %s1123 = scalar_select %p1122, %s99, 1
          %s1124 = scalar_lea.vmem %s31, %s1123
        $region80: #{tpu_custom_call.1} parent=15 // pred_fallthru
          _
        // Predicated region
        $region81: #{tpu_custom_call.1} parent=15 // pred_check
          %p1125 = pneg %p539
        $region82: #{tpu_custom_call.1} parent=15 // pred_check_branch
          %1127 = sbr.rel (%p1125) target = $region84
        $region83: #{tpu_custom_call.1} parent=15 // pred_region
          %s1128 = sand.u32 %s91, 1
          %s1129 = scalar_lea.sflag [#allocation16], %s1128
          %s1130 = sand.u32 %s529, 1
          %s1131 = smul.addr %s1130, 16
          %s1132 = scalar_lea.vmem [#allocation15], %s1131
          %1134 = vsyncadd %s1129, 0
          %s1135 = smul.addr %s99, 4
          %s1136 = smul.addr %s1135, 4
          %s1137 = scalar_lea.hbm %s33, %s1136
          %s1138 = sshll.u32 %s1137, 4
          %s1139 = int_to_ptr.hbm [resolvable:$true] %s1138
          %s1140 = sshll.u32 %s1132, 4
          %s1141 = int_to_ptr.vmem [resolvable:$true] %s1140
          %1146 = dma.hbm_to_vmem [thread:$0]  %s1139, 256, %s1141, %s1129, 64, 64, 4
        $region84: #{tpu_custom_call.1} parent=15 // pred_fallthru
          _
        // Predicated region
        $region85: #{tpu_custom_call.1} parent=15 // pred_check
          %p1147 = pneg %p565
        $region86: #{tpu_custom_call.1} parent=15 // pred_check_branch
          %1149 = sbr.rel (%p1147) target = $region88
        $region87: #{tpu_custom_call.1} parent=15 // pred_region
          %p1150 = scmp.lt.s32.totalorder %s99, 1
          %s1151 = scalar_select %p1150, %s99, 1
          %s1152 = scalar_lea.vmem %s35, %s1151
        $region88: #{tpu_custom_call.1} parent=15 // pred_fallthru
          _
        // Predicated region
        $region89: #{tpu_custom_call.1} parent=15 // pred_check
          %p1153 = pneg %p591
        $region90: #{tpu_custom_call.1} parent=15 // pred_check_branch
          %1155 = sbr.rel (%p1153) target = $region92
        $region91: #{tpu_custom_call.1} parent=15 // pred_region
          %s1156 = sand.u32 %s91, 1
          %s1157 = scalar_lea.sflag [#allocation16], %s1156
          %s1158 = sand.u32 %s581, 1
          %s1159 = smul.addr %s1158, 16
          %s1160 = scalar_lea.vmem [#allocation17], %s1159
          %1162 = vsyncadd %s1157, 0
          %s1163 = smul.addr %s99, 4
          %s1164 = smul.addr %s1163, 4
          %s1165 = scalar_lea.hbm %s37, %s1164
          %s1166 = sshll.u32 %s1165, 4
          %s1167 = int_to_ptr.hbm [resolvable:$true] %s1166
          %s1168 = sshll.u32 %s1160, 4
          %s1169 = int_to_ptr.vmem [resolvable:$true] %s1168
          %1174 = dma.hbm_to_vmem [thread:$0]  %s1167, 256, %s1169, %s1157, 64, 64, 4
        $region92: #{tpu_custom_call.1} parent=15 // pred_fallthru
          _
        // Predicated region
        $region93: #{tpu_custom_call.1} parent=15 // pred_check
          %p1175 = pneg %p617
        $region94: #{tpu_custom_call.1} parent=15 // pred_check_branch
          %1177 = sbr.rel (%p1175) target = $region96
        $region95: #{tpu_custom_call.1} parent=15 // pred_region
          %p1178 = scmp.lt.s32.totalorder %s99, 1
          %s1179 = scalar_select %p1178, %s99, 1
          %s1180 = scalar_lea.vmem %s39, %s1179
        $region96: #{tpu_custom_call.1} parent=15 // pred_fallthru
          _
        // Predicated region
        $region97: #{tpu_custom_call.1} parent=15 // pred_check
          %p1181 = pneg %p643
        $region98: #{tpu_custom_call.1} parent=15 // pred_check_branch
          %1183 = sbr.rel (%p1181) target = $region100
        $region99: #{tpu_custom_call.1} parent=15 // pred_region
          %s1184 = sand.u32 %s91, 1
          %s1185 = scalar_lea.sflag [#allocation19], %s1184
          %s1186 = sand.u32 %s633, 1
          %s1187 = smul.addr %s1186, 16
          %s1188 = scalar_lea.vmem [#allocation18], %s1187
          %1190 = vsyncadd %s1185, 0
          %s1191 = smul.addr %s99, 4
          %s1192 = smul.addr %s1191, 4
          %s1193 = scalar_lea.hbm %s41, %s1192
          %s1194 = sshll.u32 %s1193, 4
          %s1195 = int_to_ptr.hbm [resolvable:$true] %s1194
          %s1196 = sshll.u32 %s1188, 4
          %s1197 = int_to_ptr.vmem [resolvable:$true] %s1196
          %1202 = dma.hbm_to_vmem [thread:$0]  %s1195, 256, %s1197, %s1185, 64, 64, 4
        $region100: #{tpu_custom_call.1} parent=15 // pred_fallthru
          _
        // Predicated region
        $region101: #{tpu_custom_call.1} parent=15 // pred_check
          %p1203 = pneg %p669
        $region102: #{tpu_custom_call.1} parent=15 // pred_check_branch
          %1205 = sbr.rel (%p1203) target = $region104
        $region103: #{tpu_custom_call.1} parent=15 // pred_region
          %p1206 = scmp.lt.s32.totalorder %s99, 1
          %s1207 = scalar_select %p1206, %s99, 1
          %s1208 = scalar_lea.vmem %s43, %s1207
        $region104: #{tpu_custom_call.1} parent=15 // pred_fallthru
          _
        // Predicated region
        $region105: #{tpu_custom_call.1} parent=15 // pred_check
          %p1209 = pneg %p695
        $region106: #{tpu_custom_call.1} parent=15 // pred_check_branch
          %1211 = sbr.rel (%p1209) target = $region108
        $region107: #{tpu_custom_call.1} parent=15 // pred_region
          %p1212 = scmp.lt.s32.totalorder %s99, 1
          %s1213 = scalar_select %p1212, %s99, 1
          %s1214 = scalar_lea.vmem %s45, %s1213
        $region108: #{tpu_custom_call.1} parent=15 // pred_fallthru
          _
        // Predicated region
        $region109: #{tpu_custom_call.1} parent=15 // pred_check
          %p1215 = pneg %p721
        $region110: #{tpu_custom_call.1} parent=15 // pred_check_branch
          %1217 = sbr.rel (%p1215) target = $region112
        $region111: #{tpu_custom_call.1} parent=15 // pred_region
          %s1218 = sand.u32 %s91, 1
          %s1219 = scalar_lea.sflag [#allocation19], %s1218
          %s1220 = sand.u32 %s711, 1
          %s1221 = scalar_lea.vmem [#allocation20], %s1220
          %1223 = vsyncadd %s1219, 0
          %s1224 = scalar_lea.hbm %s47, %s99
          %s1226 = sshll.u32 %s1224, 4
          %s1227 = int_to_ptr.hbm [resolvable:$true] %s1226
          %s1228 = sshll.u32 %s1221, 4
          %s1229 = int_to_ptr.vmem [resolvable:$true] %s1228
          %1231 = dma.hbm_to_vmem [thread:$0]  %s1227, 16, %s1229, %s1219
        $region112: #{tpu_custom_call.1} parent=15 // pred_fallthru
          _
        // Predicated region
        $region113: #{tpu_custom_call.1} parent=15 // pred_check
          %p1232 = pneg %p747
        $region114: #{tpu_custom_call.1} parent=15 // pred_check_branch
          %1234 = sbr.rel (%p1232) target = $region116
        $region115: #{tpu_custom_call.1} parent=15 // pred_region
          %s1235 = sand.u32 %s91, 1
          %s1236 = scalar_lea.sflag [#allocation22], %s1235
          %s1237 = sand.u32 %s737, 1
          %s1238 = smul.addr %s1237, 16
          %s1239 = scalar_lea.vmem [#allocation21], %s1238
          %1241 = vsyncadd %s1236, 0
          %s1242 = smul.addr %s99, 4
          %s1243 = smul.addr %s1242, 4
          %s1244 = scalar_lea.hbm %s49, %s1243
          %s1245 = sshll.u32 %s1244, 4
          %s1246 = int_to_ptr.hbm [resolvable:$true] %s1245
          %s1247 = sshll.u32 %s1239, 4
          %s1248 = int_to_ptr.vmem [resolvable:$true] %s1247
          %1253 = dma.hbm_to_vmem [thread:$0]  %s1246, 256, %s1248, %s1236, 64, 64, 4
        $region116: #{tpu_custom_call.1} parent=15 // pred_fallthru
          _
        // Predicated region
        $region117: #{tpu_custom_call.1} parent=15 // pred_check
          %p1254 = pneg %p773
        $region118: #{tpu_custom_call.1} parent=15 // pred_check_branch
          %1256 = sbr.rel (%p1254) target = $region120
        $region119: #{tpu_custom_call.1} parent=15 // pred_region
          %p1257 = scmp.lt.s32.totalorder %s99, 1
          %s1258 = scalar_select %p1257, %s99, 1
          %s1259 = scalar_lea.vmem %s51, %s1258
        $region120: #{tpu_custom_call.1} parent=15 // pred_fallthru
          _
        // Predicated region
        $region121: #{tpu_custom_call.1} parent=15 // pred_check
          %p1260 = pneg %p799
        $region122: #{tpu_custom_call.1} parent=15 // pred_check_branch
          %1262 = sbr.rel (%p1260) target = $region124
        $region123: #{tpu_custom_call.1} parent=15 // pred_region
          %p1263 = scmp.lt.s32.totalorder %s99, 1
          %s1264 = scalar_select %p1263, %s99, 1
          %s1265 = smul.addr %s1264, 8
          %s1266 = smul.addr %s1265, 4
          %s1267 = scalar_lea.vmem %s53, %s1266
        $region124: #{tpu_custom_call.1} parent=15 // pred_fallthru
          _
        // Predicated region
        $region125: #{tpu_custom_call.1} parent=15 // pred_check
          %p1268 = pneg %p825
        $region126: #{tpu_custom_call.1} parent=15 // pred_check_branch
          %1270 = sbr.rel (%p1268) target = $region128
        $region127: #{tpu_custom_call.1} parent=15 // pred_region
          %p1271 = scmp.lt.s32.totalorder %s99, 1
          %s1272 = scalar_select %p1271, %s99, 1
          %s1273 = scalar_lea.vmem %s55, %s1272
        $region128: #{tpu_custom_call.1} parent=15 // pred_fallthru
          _
        // Predicated region
        $region129: #{tpu_custom_call.1} parent=15 // pred_check
          %p1274 = pneg %p851
        $region130: #{tpu_custom_call.1} parent=15 // pred_check_branch
          %1276 = sbr.rel (%p1274) target = $region132
        $region131: #{tpu_custom_call.1} parent=15 // pred_region
          %p1277 = scmp.lt.s32.totalorder %s99, 1
          %s1278 = scalar_select %p1277, %s99, 1
          %s1279 = scalar_lea.vmem %s57, %s1278
        $region132: #{tpu_custom_call.1} parent=15 // pred_fallthru
          _
        // Predicated region
        $region133: #{tpu_custom_call.1} parent=15 // pred_check
          %p1280 = pneg %p877
        $region134: #{tpu_custom_call.1} parent=15 // pred_check_branch
          %1282 = sbr.rel (%p1280) target = $region136
        $region135: #{tpu_custom_call.1} parent=15 // pred_region
          %s1283 = sand.u32 %s91, 1
          %s1284 = scalar_lea.sflag [#allocation22], %s1283
          %s1285 = sand.u32 %s867, 1
          %s1286 = scalar_lea.vmem [#allocation23], %s1285
          %1288 = vsyncadd %s1284, 0
          %s1289 = scalar_lea.hbm %s59, %s99
          %s1291 = sshll.u32 %s1289, 4
          %s1292 = int_to_ptr.hbm [resolvable:$true] %s1291
          %s1293 = sshll.u32 %s1286, 4
          %s1294 = int_to_ptr.vmem [resolvable:$true] %s1293
          %1296 = dma.hbm_to_vmem [thread:$0]  %s1292, 16, %s1294, %s1284
        $region136: #{tpu_custom_call.1} parent=15 // pred_fallthru
          _
      $region16: #{tpu_custom_call.1} parent=5 // pred_fallthru
        _
      %p1297 = scmp.le.s32.totalorder 1, %s91
      %p1298 = scmp.lt.s32.totalorder %s91, 5
      %p1299 = pnand %p1297, %p1298
      %p1300 = pneg %p1299
      // Predicated region
      $region137: #{tpu_custom_call.1} parent=5 // pred_check
        _
      $region138: #{tpu_custom_call.1} parent=5 // pred_check_branch
        %1302 = sbr.rel (%p1299) target = $region140
      $region139: #{tpu_custom_call.1} parent=5 // pred_region
        %s1303 = ssub.s32 %s91, 1
        %s1304 = sand.u32 %s116, 1
        %s1305 = scalar_lea.sflag [#allocation4], %s1304
        %s1306 = sand.u32 %s116, 1
        %s1307 = smul.addr %s1306, 8
        %s1308 = scalar_lea.vmem [#allocation3], %s1307
        // Predicated region
        $region141: #{tpu_custom_call.1} parent=139 // pred_check
          %p1309 = pneg %p129
        $region142: #{tpu_custom_call.1} parent=139 // pred_check_branch
          %1311 = sbr.rel (%p1309) target = $region144
        $region143: #{tpu_custom_call.1} parent=139 // pred_region
          %1313 = dma.done %s1305, 128
        $region144: #{tpu_custom_call.1} parent=139 // pred_fallthru
          _
        %s1314 = sand.u32 %s96, 1
        %s1315 = scalar_lea.sflag [#allocation7], %s1314
        %s1316 = sand.u32 %s142, 1
        %s1317 = smul.addr %s1316, 4
        %s1318 = scalar_lea.vmem [#allocation6], %s1317
        // Predicated region
        $region145: #{tpu_custom_call.1} parent=139 // pred_check
          %p1319 = pneg %p155
        $region146: #{tpu_custom_call.1} parent=139 // pred_check_branch
          %1321 = sbr.rel (%p1319) target = $region148
        $region147: #{tpu_custom_call.1} parent=139 // pred_region
          %1323 = dma.done %s1315, 64
        $region148: #{tpu_custom_call.1} parent=139 // pred_fallthru
          _
        %s1324 = sand.u32 %s96, 1
        %s1325 = scalar_lea.sflag [#allocation7], %s1324
        %s1326 = sand.u32 %s168, 1
        %s1327 = smul.addr %s1326, 4
        %s1328 = scalar_lea.vmem [#allocation8], %s1327
        // Predicated region
        $region149: #{tpu_custom_call.1} parent=139 // pred_check
          %p1329 = pneg %p181
        $region150: #{tpu_custom_call.1} parent=139 // pred_check_branch
          %1331 = sbr.rel (%p1329) target = $region152
        $region151: #{tpu_custom_call.1} parent=139 // pred_region
          %1333 = dma.done %s1325, 64
        $region152: #{tpu_custom_call.1} parent=139 // pred_fallthru
          _
        %s1334 = sand.u32 %s96, 1
        %s1335 = scalar_lea.sflag [#allocation10], %s1334
        %s1336 = sand.u32 %s194, 1
        %s1337 = smul.addr %s1336, 4
        %s1338 = scalar_lea.vmem [#allocation9], %s1337
        // Predicated region
        $region153: #{tpu_custom_call.1} parent=139 // pred_check
          %p1339 = pneg %p207
        $region154: #{tpu_custom_call.1} parent=139 // pred_check_branch
          %1341 = sbr.rel (%p1339) target = $region156
        $region155: #{tpu_custom_call.1} parent=139 // pred_region
          %1343 = dma.done %s1335, 64
        $region156: #{tpu_custom_call.1} parent=139 // pred_fallthru
          _
        %s1344 = sand.u32 %s96, 1
        %s1345 = scalar_lea.sflag [#allocation10], %s1344
        %s1346 = sand.u32 %s376, 1
        %s1347 = smul.addr %s1346, 16
        %s1348 = scalar_lea.vmem [#allocation11], %s1347
        // Predicated region
        $region157: #{tpu_custom_call.1} parent=139 // pred_check
          %p1349 = pneg %p389
        $region158: #{tpu_custom_call.1} parent=139 // pred_check_branch
          %1351 = sbr.rel (%p1349) target = $region160
        $region159: #{tpu_custom_call.1} parent=139 // pred_region
          %1353 = dma.done %s1345, 256
        $region160: #{tpu_custom_call.1} parent=139 // pred_fallthru
          _
        %s1354 = sand.u32 %s96, 1
        %s1355 = scalar_lea.sflag [#allocation13], %s1354
        %s1356 = sand.u32 %s454, 1
        %s1357 = scalar_lea.vmem [#allocation12], %s1356
        // Predicated region
        $region161: #{tpu_custom_call.1} parent=139 // pred_check
          %p1358 = pneg %p467
        $region162: #{tpu_custom_call.1} parent=139 // pred_check_branch
          %1360 = sbr.rel (%p1358) target = $region164
        $region163: #{tpu_custom_call.1} parent=139 // pred_region
          %1362 = dma.done %s1355, 16
        $region164: #{tpu_custom_call.1} parent=139 // pred_fallthru
          _
        %s1363 = sand.u32 %s96, 1
        %s1364 = scalar_lea.sflag [#allocation13], %s1363
        %s1365 = sand.u32 %s480, 1
        %s1366 = smul.addr %s1365, 16
        %s1367 = scalar_lea.vmem [#allocation14], %s1366
        // Predicated region
        $region165: #{tpu_custom_call.1} parent=139 // pred_check
          %p1368 = pneg %p493
        $region166: #{tpu_custom_call.1} parent=139 // pred_check_branch
          %1370 = sbr.rel (%p1368) target = $region168
        $region167: #{tpu_custom_call.1} parent=139 // pred_region
          %1372 = dma.done %s1364, 256
        $region168: #{tpu_custom_call.1} parent=139 // pred_fallthru
          _
        %s1373 = sand.u32 %s96, 1
        %s1374 = scalar_lea.sflag [#allocation16], %s1373
        %s1375 = sand.u32 %s532, 1
        %s1376 = smul.addr %s1375, 16
        %s1377 = scalar_lea.vmem [#allocation15], %s1376
        // Predicated region
        $region169: #{tpu_custom_call.1} parent=139 // pred_check
          %p1378 = pneg %p545
        $region170: #{tpu_custom_call.1} parent=139 // pred_check_branch
          %1380 = sbr.rel (%p1378) target = $region172
        $region171: #{tpu_custom_call.1} parent=139 // pred_region
          %1382 = dma.done %s1374, 256
        $region172: #{tpu_custom_call.1} parent=139 // pred_fallthru
          _
        %s1383 = sand.u32 %s96, 1
        %s1384 = scalar_lea.sflag [#allocation16], %s1383
        %s1385 = sand.u32 %s584, 1
        %s1386 = smul.addr %s1385, 16
        %s1387 = scalar_lea.vmem [#allocation17], %s1386
        // Predicated region
        $region173: #{tpu_custom_call.1} parent=139 // pred_check
          %p1388 = pneg %p597
        $region174: #{tpu_custom_call.1} parent=139 // pred_check_branch
          %1390 = sbr.rel (%p1388) target = $region176
        $region175: #{tpu_custom_call.1} parent=139 // pred_region
          %1392 = dma.done %s1384, 256
        $region176: #{tpu_custom_call.1} parent=139 // pred_fallthru
          _
        %s1393 = sand.u32 %s96, 1
        %s1394 = scalar_lea.sflag [#allocation19], %s1393
        %s1395 = sand.u32 %s636, 1
        %s1396 = smul.addr %s1395, 16
        %s1397 = scalar_lea.vmem [#allocation18], %s1396
        // Predicated region
        $region177: #{tpu_custom_call.1} parent=139 // pred_check
          %p1398 = pneg %p649
        $region178: #{tpu_custom_call.1} parent=139 // pred_check_branch
          %1400 = sbr.rel (%p1398) target = $region180
        $region179: #{tpu_custom_call.1} parent=139 // pred_region
          %1402 = dma.done %s1394, 256
        $region180: #{tpu_custom_call.1} parent=139 // pred_fallthru
          _
        %s1403 = sand.u32 %s96, 1
        %s1404 = scalar_lea.sflag [#allocation19], %s1403
        %s1405 = sand.u32 %s714, 1
        %s1406 = scalar_lea.vmem [#allocation20], %s1405
        // Predicated region
        $region181: #{tpu_custom_call.1} parent=139 // pred_check
          %p1407 = pneg %p727
        $region182: #{tpu_custom_call.1} parent=139 // pred_check_branch
          %1409 = sbr.rel (%p1407) target = $region184
        $region183: #{tpu_custom_call.1} parent=139 // pred_region
          %1411 = dma.done %s1404, 16
        $region184: #{tpu_custom_call.1} parent=139 // pred_fallthru
          _
        %s1412 = sand.u32 %s96, 1
        %s1413 = scalar_lea.sflag [#allocation22], %s1412
        %s1414 = sand.u32 %s740, 1
        %s1415 = smul.addr %s1414, 16
        %s1416 = scalar_lea.vmem [#allocation21], %s1415
        // Predicated region
        $region185: #{tpu_custom_call.1} parent=139 // pred_check
          %p1417 = pneg %p753
        $region186: #{tpu_custom_call.1} parent=139 // pred_check_branch
          %1419 = sbr.rel (%p1417) target = $region188
        $region187: #{tpu_custom_call.1} parent=139 // pred_region
          %1421 = dma.done %s1413, 256
        $region188: #{tpu_custom_call.1} parent=139 // pred_fallthru
          _
        %s1422 = sand.u32 %s96, 1
        %s1423 = scalar_lea.sflag [#allocation22], %s1422
        %s1424 = sand.u32 %s870, 1
        %s1425 = scalar_lea.vmem [#allocation23], %s1424
        // Predicated region
        $region189: #{tpu_custom_call.1} parent=139 // pred_check
          %p1426 = pneg %p883
        $region190: #{tpu_custom_call.1} parent=139 // pred_check_branch
          %1428 = sbr.rel (%p1426) target = $region192
        $region191: #{tpu_custom_call.1} parent=139 // pred_region
          %1430 = dma.done %s1423, 16
        $region192: #{tpu_custom_call.1} parent=139 // pred_fallthru
          _
        %s1431 = sand.u32 %s116, 1
        %s1432 = scalar_lea.sflag [#allocation4], %s1431
        %s1433 = sand.u32 %s116, 1
        %s1434 = smul.addr %s1433, 8
        %s1435 = scalar_lea.vmem [#allocation3], %s1434
        %p1436 = pneg %p129
        %p1437 = pneg %p126
        %s1438 = sand.u32 %s96, 1
        %s1439 = scalar_lea.sflag [#allocation7], %s1438
        %s1440 = sand.u32 %s142, 1
        %s1441 = smul.addr %s1440, 4
        %s1442 = scalar_lea.vmem [#allocation6], %s1441
        %p1443 = pneg %p155
        %p1444 = pneg %p152
        %s1445 = sand.u32 %s96, 1
        %s1446 = scalar_lea.sflag [#allocation7], %s1445
        %s1447 = sand.u32 %s168, 1
        %s1448 = smul.addr %s1447, 4
        %s1449 = scalar_lea.vmem [#allocation8], %s1448
        %p1450 = pneg %p181
        %p1451 = pneg %p178
        %s1452 = sand.u32 %s96, 1
        %s1453 = scalar_lea.sflag [#allocation10], %s1452
        %s1454 = sand.u32 %s194, 1
        %s1455 = smul.addr %s1454, 4
        %s1456 = scalar_lea.vmem [#allocation9], %s1455
        %p1457 = pneg %p207
        %p1458 = pneg %p204
        %p1459 = scmp.lt.s32.totalorder %s101, 1
        %s1460 = scalar_select %p1459, %s101, 1
        %s1461 = smul.addr %s1460, 4
        %s1462 = smul.addr %s1461, 4
        %s1463 = scalar_lea.vmem %s9, %s1462
        %p1464 = pneg %p233
        %p1465 = pneg %p230
        %p1466 = scmp.lt.s32.totalorder %s101, 1
        %s1467 = scalar_select %p1466, %s101, 1
        %s1468 = scalar_lea.vmem %s11, %s1467
        %p1469 = pneg %p259
        %p1470 = pneg %p256
        %p1471 = scmp.lt.s32.totalorder %s101, 1
        %s1472 = scalar_select %p1471, %s101, 1
        %s1473 = smul.addr %s1472, 4
        %s1474 = smul.addr %s1473, 4
        %s1475 = scalar_lea.vmem %s13, %s1474
        %p1476 = pneg %p285
        %p1477 = pneg %p282
        %p1478 = scmp.lt.s32.totalorder %s101, 1
        %s1479 = scalar_select %p1478, %s101, 1
        %s1480 = scalar_lea.vmem %s15, %s1479
        %p1481 = pneg %p311
        %p1482 = pneg %p308
        %p1483 = scmp.lt.s32.totalorder %s101, 1
        %s1484 = scalar_select %p1483, %s101, 1
        %s1485 = smul.addr %s1484, 4
        %s1486 = smul.addr %s1485, 4
        %s1487 = scalar_lea.vmem %s17, %s1486
        %p1488 = pneg %p337
        %p1489 = pneg %p334
        %p1490 = scmp.lt.s32.totalorder %s101, 1
        %s1491 = scalar_select %p1490, %s101, 1
        %s1492 = scalar_lea.vmem %s19, %s1491
        %p1493 = pneg %p363
        %p1494 = pneg %p360
        %s1495 = sand.u32 %s96, 1
        %s1496 = scalar_lea.sflag [#allocation10], %s1495
        %s1497 = sand.u32 %s376, 1
        %s1498 = smul.addr %s1497, 16
        %s1499 = scalar_lea.vmem [#allocation11], %s1498
        %p1500 = pneg %p389
        %p1501 = pneg %p386
        %p1502 = scmp.lt.s32.totalorder %s101, 1
        %s1503 = scalar_select %p1502, %s101, 1
        %s1504 = scalar_lea.vmem %s23, %s1503
        %p1505 = pneg %p415
        %p1506 = pneg %p412
        %p1507 = scmp.lt.s32.totalorder %s101, 1
        %s1508 = scalar_select %p1507, %s101, 1
        %s1509 = scalar_lea.vmem %s25, %s1508
        %p1510 = pneg %p441
        %p1511 = pneg %p438
        %s1512 = sand.u32 %s96, 1
        %s1513 = scalar_lea.sflag [#allocation13], %s1512
        %s1514 = sand.u32 %s454, 1
        %s1515 = scalar_lea.vmem [#allocation12], %s1514
        %p1516 = pneg %p467
        %p1517 = pneg %p464
        %s1518 = sand.u32 %s96, 1
        %s1519 = scalar_lea.sflag [#allocation13], %s1518
        %s1520 = sand.u32 %s480, 1
        %s1521 = smul.addr %s1520, 16
        %s1522 = scalar_lea.vmem [#allocation14], %s1521
        %p1523 = pneg %p493
        %p1524 = pneg %p490
        %p1525 = scmp.lt.s32.totalorder %s101, 1
        %s1526 = scalar_select %p1525, %s101, 1
        %s1527 = scalar_lea.vmem %s31, %s1526
        %p1528 = pneg %p519
        %p1529 = pneg %p516
        %s1530 = sand.u32 %s96, 1
        %s1531 = scalar_lea.sflag [#allocation16], %s1530
        %s1532 = sand.u32 %s532, 1
        %s1533 = smul.addr %s1532, 16
        %s1534 = scalar_lea.vmem [#allocation15], %s1533
        %p1535 = pneg %p545
        %p1536 = pneg %p542
        %p1537 = scmp.lt.s32.totalorder %s101, 1
        %s1538 = scalar_select %p1537, %s101, 1
        %s1539 = scalar_lea.vmem %s35, %s1538
        %p1540 = pneg %p571
        %p1541 = pneg %p568
        %s1542 = sand.u32 %s96, 1
        %s1543 = scalar_lea.sflag [#allocation16], %s1542
        %s1544 = sand.u32 %s584, 1
        %s1545 = smul.addr %s1544, 16
        %s1546 = scalar_lea.vmem [#allocation17], %s1545
        %p1547 = pneg %p597
        %p1548 = pneg %p594
        %p1549 = scmp.lt.s32.totalorder %s101, 1
        %s1550 = scalar_select %p1549, %s101, 1
        %s1551 = scalar_lea.vmem %s39, %s1550
        %p1552 = pneg %p623
        %p1553 = pneg %p620
        %s1554 = sand.u32 %s96, 1
        %s1555 = scalar_lea.sflag [#allocation19], %s1554
        %s1556 = sand.u32 %s636, 1
        %s1557 = smul.addr %s1556, 16
        %s1558 = scalar_lea.vmem [#allocation18], %s1557
        %p1559 = pneg %p649
        %p1560 = pneg %p646
        %p1561 = scmp.lt.s32.totalorder %s101, 1
        %s1562 = scalar_select %p1561, %s101, 1
        %s1563 = scalar_lea.vmem %s43, %s1562
        %p1564 = pneg %p675
        %p1565 = pneg %p672
        %p1566 = scmp.lt.s32.totalorder %s101, 1
        %s1567 = scalar_select %p1566, %s101, 1
        %s1568 = scalar_lea.vmem %s45, %s1567
        %p1569 = pneg %p701
        %p1570 = pneg %p698
        %s1571 = sand.u32 %s96, 1
        %s1572 = scalar_lea.sflag [#allocation19], %s1571
        %s1573 = sand.u32 %s714, 1
        %s1574 = scalar_lea.vmem [#allocation20], %s1573
        %p1575 = pneg %p727
        %p1576 = pneg %p724
        %s1577 = sand.u32 %s96, 1
        %s1578 = scalar_lea.sflag [#allocation22], %s1577
        %s1579 = sand.u32 %s740, 1
        %s1580 = smul.addr %s1579, 16
        %s1581 = scalar_lea.vmem [#allocation21], %s1580
        %p1582 = pneg %p753
        %p1583 = pneg %p750
        %p1584 = scmp.lt.s32.totalorder %s101, 1
        %s1585 = scalar_select %p1584, %s101, 1
        %s1586 = scalar_lea.vmem %s51, %s1585
        %p1587 = pneg %p779
        %p1588 = pneg %p776
        %p1589 = scmp.lt.s32.totalorder %s101, 1
        %s1590 = scalar_select %p1589, %s101, 1
        %s1591 = smul.addr %s1590, 8
        %s1592 = smul.addr %s1591, 4
        %s1593 = scalar_lea.vmem %s53, %s1592
        %p1594 = pneg %p805
        %p1595 = pneg %p802
        %p1596 = scmp.lt.s32.totalorder %s101, 1
        %s1597 = scalar_select %p1596, %s101, 1
        %s1598 = scalar_lea.vmem %s55, %s1597
        %p1599 = pneg %p831
        %p1600 = pneg %p828
        %p1601 = scmp.lt.s32.totalorder %s101, 1
        %s1602 = scalar_select %p1601, %s101, 1
        %s1603 = scalar_lea.vmem %s57, %s1602
        %p1604 = pneg %p857
        %p1605 = pneg %p854
        %s1606 = sand.u32 %s96, 1
        %s1607 = scalar_lea.sflag [#allocation22], %s1606
        %s1608 = sand.u32 %s870, 1
        %s1609 = scalar_lea.vmem [#allocation23], %s1608
        %p1610 = pneg %p883
        %p1611 = pneg %p880
        %p1612 = pneg %p909
        %p1613 = pneg %p906
        %s1614 = sand.u32 %s896, 1
        %s1615 = scalar_lea.sflag [#allocation5], %s1614
        %s1616 = sand.u32 %s896, 1
        %s1617 = smul.addr %s1616, 4
        %s1618 = scalar_lea.vmem [#allocation24], %s1617
        %p1619 = scmp.lt.s32.totalorder %s101, 1
        %s1620 = scalar_select %p1619, %s101, 1
        %s1621 = smul.addr %s1620, 4
        %s1622 = smul.addr %s1621, 4
        %s1623 = scalar_lea.vmem %s9, %s1622
        %p1624 = scmp.lt.s32.totalorder %s101, 1
        %s1625 = scalar_select %p1624, %s101, 1
        %s1626 = scalar_lea.vmem %s11, %s1625
        %p1627 = scmp.lt.s32.totalorder %s101, 1
        %s1628 = scalar_select %p1627, %s101, 1
        %s1629 = smul.addr %s1628, 4
        %s1630 = smul.addr %s1629, 4
        %s1631 = scalar_lea.vmem %s13, %s1630
        %p1632 = scmp.lt.s32.totalorder %s101, 1
        %s1633 = scalar_select %p1632, %s101, 1
        %s1634 = scalar_lea.vmem %s15, %s1633
        %p1635 = scmp.lt.s32.totalorder %s101, 1
        %s1636 = scalar_select %p1635, %s101, 1
        %s1637 = smul.addr %s1636, 4
        %s1638 = smul.addr %s1637, 4
        %s1639 = scalar_lea.vmem %s17, %s1638
        %p1640 = scmp.lt.s32.totalorder %s101, 1
        %s1641 = scalar_select %p1640, %s101, 1
        %s1642 = scalar_lea.vmem %s19, %s1641
        %p1643 = scmp.lt.s32.totalorder %s101, 1
        %s1644 = scalar_select %p1643, %s101, 1
        %s1645 = scalar_lea.vmem %s23, %s1644
        %p1646 = scmp.lt.s32.totalorder %s101, 1
        %s1647 = scalar_select %p1646, %s101, 1
        %s1648 = scalar_lea.vmem %s25, %s1647
        %p1649 = scmp.lt.s32.totalorder %s101, 1
        %s1650 = scalar_select %p1649, %s101, 1
        %s1651 = scalar_lea.vmem %s31, %s1650
        %p1652 = scmp.lt.s32.totalorder %s101, 1
        %s1653 = scalar_select %p1652, %s101, 1
        %s1654 = scalar_lea.vmem %s35, %s1653
        %p1655 = scmp.lt.s32.totalorder %s101, 1
        %s1656 = scalar_select %p1655, %s101, 1
        %s1657 = scalar_lea.vmem %s39, %s1656
        %p1658 = scmp.lt.s32.totalorder %s101, 1
        %s1659 = scalar_select %p1658, %s101, 1
        %s1660 = scalar_lea.vmem %s43, %s1659
        %p1661 = scmp.lt.s32.totalorder %s101, 1
        %s1662 = scalar_select %p1661, %s101, 1
        %s1663 = scalar_lea.vmem %s45, %s1662
        %p1664 = scmp.lt.s32.totalorder %s101, 1
        %s1665 = scalar_select %p1664, %s101, 1
        %s1666 = scalar_lea.vmem %s51, %s1665
        %p1667 = scmp.lt.s32.totalorder %s101, 1
        %s1668 = scalar_select %p1667, %s101, 1
        %s1669 = smul.addr %s1668, 8
        %s1670 = smul.addr %s1669, 4
        %s1671 = scalar_lea.vmem %s53, %s1670
        %p1672 = scmp.lt.s32.totalorder %s101, 1
        %s1673 = scalar_select %p1672, %s101, 1
        %s1674 = scalar_lea.vmem %s55, %s1673
        %p1675 = scmp.lt.s32.totalorder %s101, 1
        %s1676 = scalar_select %p1675, %s101, 1
        %s1677 = scalar_lea.vmem %s57, %s1676
        %p1679 = scmp.eq.s32.totalorder %s101, 0
        // Predicated region
        $region193: #{tpu_custom_call.1} parent=139 // pred_check
          %p1680 = pneg %p1679
        $region194: #{tpu_custom_call.1} parent=139 // pred_check_branch
          %1682 = sbr.rel (%p1680) target = $region196
        $region195: #{tpu_custom_call.1} parent=139 // pred_region
          %v1683 = vld [vmem:[%s1308] sm:$0xff]
          %vm1684 = vcmask 261120
          %1685 = vst.msk [vmem:[#allocation2] sm:$0xff] %vm1684, %v1683
        $region196: #{tpu_custom_call.1} parent=139 // pred_fallthru
          _
        %v1686 = vld [vmem:[#allocation2] sm:$0xff]
        %v1687 = vld [vmem:[%s1328] sm:$0xf]
        %v1688 = vunpack.c.l.bf16 %v1687
        %vm1689 = vcmp.ne.f32.partialorder %v1688, 0.0
        %v1690 = vld [vmem:[%s1338] sm:$0xf]
        %v1691 = vunpack.c.l.bf16 %v1690
        %vm1692 = vcmp.ne.f32.partialorder %v1691, 0.0
        %v1693 = vld [vmem:[%s1623] sm:$0xf]
        %v1694 = vld [vmem:[%s1623 + $0x4] sm:$0xf]
        %v1695 = vld [vmem:[%s1623 + $0x8] sm:$0xf]
        %v1696 = vld [vmem:[%s1623 + $0xc] sm:$0xf]
        %v1697 = vld [vmem:[%s1626] sm:$0x1]
        %v1698 = vld [vmem:[%s1631] sm:$0xf]
        %v1699 = vld [vmem:[%s1631 + $0x4] sm:$0xf]
        %v1700 = vld [vmem:[%s1631 + $0x8] sm:$0xf]
        %v1701 = vld [vmem:[%s1631 + $0xc] sm:$0xf]
        %v1702 = vld [vmem:[%s1634] sm:$0x1]
        %v1703 = vld [vmem:[%s1639] sm:$0xf]
        %v1704 = vld [vmem:[%s1639 + $0x4] sm:$0xf]
        %v1705 = vld [vmem:[%s1639 + $0x8] sm:$0xf]
        %v1706 = vld [vmem:[%s1639 + $0xc] sm:$0xf]
        %v1707 = vld [vmem:[%s1642] sm:$0x1]
        %v1708 = vld [vmem:[%s1348] sm:$0xf]
        %v1709 = vld [vmem:[%s1348 + $0x4] sm:$0xf]
        %v1710 = vld [vmem:[%s1348 + $0x8] sm:$0xf]
        %v1711 = vld [vmem:[%s1348 + $0xc] sm:$0xf]
        %v1712 = vld [vmem:[%s1645] sm:$0x1]
        %v1713 = vpack.c.bf16 %v1686, %v1686
        %v1715 = vperm.slane %v1697, 0
        %v1721 = vunpack.c.l.b16 %v1693
        %v1722 = vunpack.c.l.b16 %v1694
        %v1723 = vunpack.c.l.b16 %v1695
        %v1724 = vunpack.c.l.b16 %v1696
        %v1725 = vpack.c.b16 %v1722, %v1721
        %v1726 = vpack.c.b16 %v1724, %v1723
        %vm1729 = vcmask 261120
        %v1731 = vsel %vm1729, %v1713, 0
        %1733 = vmatpush.bf16.msra.mxu0 0
        %1734 = vmatpush.bf16.msra.mxu0 0
        %1735 = vmatpush.bf16.msra.mxu0 0
        %1736 = vmatpush.bf16.msra.mxu0 0
        %1737 = vmatpush.bf16.msra.mxu0 0
        %1738 = vmatpush.bf16.msra.mxu0 0
        %1739 = vmatpush.bf16.msra.mxu0 %v1726
        %1740 = vmatpush.bf16.msra.mxu0 %v1725
        %1741 = vmatmul.bf16.gmra.mxu0 %v1731
        %v1742 = vpop.f32.mrf.mxu0
        %v1743 = vadd.f32 %v1715, %v1742
        %v1744 = vpop.f32.mrf.mxu0
        %1745 = vdwg.mxu0
        %v1747 = vperm.slane %v1702, 0
        %v1753 = vunpack.c.l.b16 %v1698
        %v1754 = vunpack.c.l.b16 %v1699
        %v1755 = vunpack.c.l.b16 %v1700
        %v1756 = vunpack.c.l.b16 %v1701
        %v1757 = vpack.c.b16 %v1754, %v1753
        %v1758 = vpack.c.b16 %v1756, %v1755
        %1761 = vmatpush.bf16.msra.mxu0 0
        %1762 = vmatpush.bf16.msra.mxu0 0
        %1763 = vmatpush.bf16.msra.mxu0 0
        %1764 = vmatpush.bf16.msra.mxu0 0
        %1765 = vmatpush.bf16.msra.mxu0 0
        %1766 = vmatpush.bf16.msra.mxu0 0
        %1767 = vmatpush.bf16.msra.mxu0 %v1758
        %1768 = vmatpush.bf16.msra.mxu0 %v1757
        %1769 = vmatmul.bf16.gmra.mxu0 %v1731
        %v1770 = vpop.f32.mrf.mxu0
        %v1771 = vadd.f32 %v1747, %v1770
        %v1772 = vpop.f32.mrf.mxu0
        %1773 = vdwg.mxu0
        %v1775 = vperm.slane %v1707, 0
        %v1781 = vunpack.c.l.b16 %v1703
        %v1782 = vunpack.c.l.b16 %v1704
        %v1783 = vunpack.c.l.b16 %v1705
        %v1784 = vunpack.c.l.b16 %v1706
        %v1785 = vpack.c.b16 %v1782, %v1781
        %v1786 = vpack.c.b16 %v1784, %v1783
        %1789 = vmatpush.bf16.msra.mxu0 0
        %1790 = vmatpush.bf16.msra.mxu0 0
        %1791 = vmatpush.bf16.msra.mxu0 0
        %1792 = vmatpush.bf16.msra.mxu0 0
        %1793 = vmatpush.bf16.msra.mxu0 0
        %1794 = vmatpush.bf16.msra.mxu0 0
        %1795 = vmatpush.bf16.msra.mxu0 %v1786
        %1796 = vmatpush.bf16.msra.mxu0 %v1785
        %1797 = vmatmul.bf16.gmra.mxu0 %v1731
        %v1798 = vpop.f32.mrf.mxu0
        %v1799 = vadd.f32 %v1775, %v1798
        %v1800 = vpop.f32.mrf.mxu0
        %1801 = vdwg.mxu0
        %v1802 = vpack.c.bf16 %v1743, %v1743
        %v1803 = vpack.c.bf16 %v1771, %v1771
        %v1804 = vpack.c.bf16 %v1799, %v1799
        %vm1805 = vcmask 130048
        %v1807 = vsel %vm1805, %v1802, 0
        %v1810 = vsel %vm1805, %v1803, 0
        %1812 = vmatpush.bf16.xpose.msra.mxu0 0
        %1813 = vmatpush.bf16.xpose.msra.mxu0 0
        %1814 = vmatpush.bf16.xpose.msra.mxu0 0
        %1815 = vmatpush.bf16.xpose.msra.mxu0 0
        %1816 = vmatpush.bf16.xpose.msra.mxu0 0
        %1817 = vmatpush.bf16.xpose.msra.mxu0 0
        %1818 = vmatpush.bf16.xpose.msra.mxu0 0
        %1819 = vmatpush.bf16.xpose.msra.mxu0 %v1810
        %1820 = vmatmul.bf16.gmra.mxu0 %v1807
        %v1821 = vpop.f32.mrf.mxu0
        %v1822 = vadd.f32 0.0, %v1821
        %v1823 = vpop.f32.mrf.mxu0
        %1824 = vdwg.mxu0
        %v1825 = vmul.f32 %v1822, 0.25
        %v1826 = vsel %vm1689, %v1825, -10000.0
        %vm1827 = vcmask 64512
        %v1828 = vsel %vm1827, %v1826, -inf
        %1829 = vmax.xlane.f32.xlu0 %v1828
        %v1830 = vpop.xlane.xlu0 %1829
        %v1831 = vsub.f32 %v1826, %v1830
        %v1832 = vmul.f32 %v1831, 1.442695
        %v1833 = vpow.pop %v1832
        %v1834 = vsel %vm1827, %v1833, 0.0
        %1835 = vadd.xlane.f32.xlu0 %v1834
        %v1836 = vpop.xlane.xlu0 %1835
        %v1837 = vrcp.pop %v1836
        %v1838 = vmul.f32 %v1836, %v1837
        %v1839 = vsub.f32 1.0, %v1838
        %v1840 = vmul.f32 %v1837, %v1839
        %v1841 = vadd.f32 %v1837, %v1840
        %vm1842 = vweird.f32 %v1836
        %vm1843 = vweird.f32 %v1837
        %vm1844 = vmor %vm1842, %vm1843
        %v1845 = vsel %vm1844, %v1837, %v1841
        %v1846 = vand.u32 2147483647, %v1836
        %vm1847 = vcmp.eq.f32.partialorder %v1846, 8.507059e+37
        %v1848 = vand.u32 %v1836, 2147483648
        %v1849 = vor.u32 1.1754944e-38, %v1848
        %v1850 = vsel %vm1847, %v1849, %v1845
        %v1851 = vmul.f32 %v1833, %v1850
        %v1852 = vpack.c.bf16 %v1851, %v1851
        %v1854 = vsel %vm1827, %v1852, 0
        %vm1856 = vcmask 1043456
        %v1858 = vsel %vm1856, %v1804, 0
        %1860 = vmatpush.bf16.msra.mxu0 0
        %1861 = vmatpush.bf16.msra.mxu0 0
        %1862 = vmatpush.bf16.msra.mxu0 0
        %1863 = vmatpush.bf16.msra.mxu0 0
        %1864 = vmatpush.bf16.msra.mxu0 0
        %1865 = vmatpush.bf16.msra.mxu0 0
        %1866 = vmatpush.bf16.msra.mxu0 0
        %1867 = vmatpush.bf16.msra.mxu0 %v1858
        %1868 = vmatmul.bf16.gmra.mxu0 %v1854
        %v1869 = vpop.f32.mrf.mxu0
        %v1870 = vadd.f32 0.0, %v1869
        %v1871 = vpop.f32.mrf.mxu0
        %1872 = vdwg.mxu0
        %v1873 = vpack.c.bf16 %v1870, %v1870
        %v1875 = vunpack.c.l.b16 %v1802
        %v1876 = vpack.c.b16 %v1875, %v1875
        %1877 = vrot.lane.b32.xlu0 %v1876, 112
        %v1878 = vpop.permute.xlu0 %1877
        %v1880 = vunpack.c.l.b16 %v1803
        %v1881 = vpack.c.b16 %v1880, %v1880
        %1882 = vrot.lane.b32.xlu0 %v1881, 112
        %v1883 = vpop.permute.xlu0 %1882
        %v1885 = vsel %vm1805, %v1878, 0
        %v1888 = vsel %vm1805, %v1883, 0
        %1890 = vmatpush.bf16.xpose.msra.mxu0 0
        %1891 = vmatpush.bf16.xpose.msra.mxu0 0
        %1892 = vmatpush.bf16.xpose.msra.mxu0 0
        %1893 = vmatpush.bf16.xpose.msra.mxu0 0
        %1894 = vmatpush.bf16.xpose.msra.mxu0 0
        %1895 = vmatpush.bf16.xpose.msra.mxu0 0
        %1896 = vmatpush.bf16.xpose.msra.mxu0 0
        %1897 = vmatpush.bf16.xpose.msra.mxu0 %v1888
        %1898 = vmatmul.bf16.gmra.mxu0 %v1885
        %v1899 = vpop.f32.mrf.mxu0
        %v1900 = vadd.f32 0.0, %v1899
        %v1901 = vpop.f32.mrf.mxu0
        %1902 = vdwg.mxu0
        %v1903 = vmul.f32 %v1900, 0.25
        %v1904 = vsel %vm1689, %v1903, -10000.0
        %v1905 = vsel %vm1827, %v1904, -inf
        %1906 = vmax.xlane.f32.xlu0 %v1905
        %v1907 = vpop.xlane.xlu0 %1906
        %v1908 = vsub.f32 %v1904, %v1907
        %v1909 = vmul.f32 %v1908, 1.442695
        %v1910 = vpow.pop %v1909
        %v1911 = vsel %vm1827, %v1910, 0.0
        %1912 = vadd.xlane.f32.xlu0 %v1911
        %v1913 = vpop.xlane.xlu0 %1912
        %v1914 = vrcp.pop %v1913
        %v1915 = vmul.f32 %v1913, %v1914
        %v1916 = vsub.f32 1.0, %v1915
        %v1917 = vmul.f32 %v1914, %v1916
        %v1918 = vadd.f32 %v1914, %v1917
        %vm1919 = vweird.f32 %v1913
        %vm1920 = vweird.f32 %v1914
        %vm1921 = vmor %vm1919, %vm1920
        %v1922 = vsel %vm1921, %v1914, %v1918
        %v1923 = vand.u32 2147483647, %v1913
        %vm1924 = vcmp.eq.f32.partialorder %v1923, 8.507059e+37
        %v1925 = vand.u32 %v1913, 2147483648
        %v1926 = vor.u32 1.1754944e-38, %v1925
        %v1927 = vsel %vm1924, %v1926, %v1922
        %v1928 = vmul.f32 %v1910, %v1927
        %v1929 = vpack.c.bf16 %v1928, %v1928
        %v1931 = vunpack.c.l.b16 %v1804
        %v1932 = vpack.c.b16 %v1931, %v1931
        %1933 = vrot.lane.b32.xlu0 %v1932, 112
        %v1934 = vpop.permute.xlu0 %1933
        %v1936 = vsel %vm1827, %v1929, 0
        %v1939 = vsel %vm1856, %v1934, 0
        %1941 = vmatpush.bf16.msra.mxu0 0
        %1942 = vmatpush.bf16.msra.mxu0 0
        %1943 = vmatpush.bf16.msra.mxu0 0
        %1944 = vmatpush.bf16.msra.mxu0 0
        %1945 = vmatpush.bf16.msra.mxu0 0
        %1946 = vmatpush.bf16.msra.mxu0 0
        %1947 = vmatpush.bf16.msra.mxu0 0
        %1948 = vmatpush.bf16.msra.mxu0 %v1939
        %1949 = vmatmul.bf16.gmra.mxu0 %v1936
        %v1950 = vpop.f32.mrf.mxu0
        %v1951 = vadd.f32 0.0, %v1950
        %v1952 = vpop.f32.mrf.mxu0
        %1953 = vdwg.mxu0
        %v1954 = vpack.c.bf16 %v1951, %v1951
        %v1957 = vunpack.c.l.b16 %v1710
        %v1958 = vunpack.c.l.b16 %v1711
        %v1959 = vpack.c.b16 %v1958, %v1957
        %v1962 = vsel %vm1805, %v1954, 0
        %1964 = vmatpush.bf16.msra.mxu0 0
        %1965 = vmatpush.bf16.msra.mxu0 0
        %1966 = vmatpush.bf16.msra.mxu0 0
        %1967 = vmatpush.bf16.msra.mxu0 0
        %1968 = vmatpush.bf16.msra.mxu0 0
        %1969 = vmatpush.bf16.msra.mxu0 0
        %1970 = vmatpush.bf16.msra.mxu0 0
        %1971 = vmatpush.bf16.msra.mxu0 %v1959
        %1972 = vmatmul.bf16.gmra.mxu0 %v1962
        %v1973 = vpop.f32.mrf.mxu0
        %v1974 = vadd.f32 0.0, %v1973
        %v1975 = vpop.f32.mrf.mxu0
        %1976 = vdwg.mxu0
        %v1979 = vunpack.c.l.b16 %v1708
        %v1980 = vunpack.c.l.b16 %v1709
        %v1981 = vpack.c.b16 %v1980, %v1979
        %v1984 = vsel %vm1805, %v1873, 0
        %1986 = vmatpush.bf16.msra.mxu0 0
        %1987 = vmatpush.bf16.msra.mxu0 0
        %1988 = vmatpush.bf16.msra.mxu0 0
        %1989 = vmatpush.bf16.msra.mxu0 0
        %1990 = vmatpush.bf16.msra.mxu0 0
        %1991 = vmatpush.bf16.msra.mxu0 0
        %1992 = vmatpush.bf16.msra.mxu0 0
        %1993 = vmatpush.bf16.msra.mxu0 %v1981
        %1994 = vmatmul.bf16.gmra.mxu0 %v1984
        %v1995 = vpop.f32.mrf.mxu0
        %v1996 = vadd.f32 %v1974, %v1995
        %v1997 = vpop.f32.mrf.mxu0
        %1998 = vdwg.mxu0
        %v2000 = vperm.slane %v1712, 0
        %v2002 = vadd.f32 %v1996, %v2000
        %v2003 = vadd.f32 %v2002, %v1686
        %v2004 = vld [vmem:[%s1648] sm:$0x1]
        %v2005 = vld [vmem:[%s1357] sm:$0x1]
        %v2006 = vsel %vm1729, %v2003, 0.0
        %2007 = vadd.xlane.f32.xlu0 %v2006
        %v2008 = vpop.xlane.xlu0 %2007
        %v2009 = vrcp.pop 32.0
        %v2010 = vmul.f32 32.0, %v2009
        %v2011 = vsub.f32 1.0, %v2010
        %v2012 = vmul.f32 %v2009, %v2011
        %v2013 = vadd.f32 %v2009, %v2012
        %vm2014 = vweird.f32 %v2009
        %v2015 = vsel %vm2014, %v2009, %v2013
        %v2016 = vmul.f32 %v2008, %v2015
        %v2017 = vsub.f32 %v2003, %v2016
        %v2018 = vmul.f32 %v2017, %v2017
        %v2019 = vsel %vm1729, %v2018, 0.0
        %2020 = vadd.xlane.f32.xlu0 %v2019
        %v2021 = vpop.xlane.xlu0 %2020
        %v2022 = vmul.f32 %v2021, %v2015
        %v2023 = vadd.f32 %v2022, 1e-12
        %v2024 = vrsqrt.pop %v2023
        %v2025 = vmul.f32 %v2024, %v2023
        %v2026 = vmul.f32 %v2025, %v2024
        %v2027 = vmul.f32 0.5, %v2026
        %v2028 = vsub.f32 1.5, %v2027
        %v2029 = vmul.f32 %v2024, %v2028
        %vm2030 = vweird.f32 %v2023
        %vm2031 = vweird.f32 %v2024
        %vm2032 = vmor %vm2030, %vm2031
        %v2033 = vsel %vm2032, %v2024, %v2029
        %v2034 = vmul.f32 %v2017, %v2033
        %v2036 = vperm.slane %v2004, 0
        %v2038 = vmul.f32 %v2034, %v2036
        %v2040 = vperm.slane %v2005, 0
        %v2042 = vadd.f32 %v2038, %v2040
        %v2043 = vld [vmem:[%s1318] sm:$0xf]
        %v2044 = vld [vmem:[%s1367] sm:$0xf]
        %v2045 = vld [vmem:[%s1367 + $0x4] sm:$0xf]
        %v2046 = vld [vmem:[%s1367 + $0x8] sm:$0xf]
        %v2047 = vld [vmem:[%s1367 + $0xc] sm:$0xf]
        %v2048 = vld [vmem:[%s1651] sm:$0x1]
        %v2049 = vld [vmem:[%s1377] sm:$0xf]
        %v2050 = vld [vmem:[%s1377 + $0x4] sm:$0xf]
        %v2051 = vld [vmem:[%s1377 + $0x8] sm:$0xf]
        %v2052 = vld [vmem:[%s1377 + $0xc] sm:$0xf]
        %v2053 = vld [vmem:[%s1654] sm:$0x1]
        %v2054 = vld [vmem:[%s1387] sm:$0xf]
        %v2055 = vld [vmem:[%s1387 + $0x4] sm:$0xf]
        %v2056 = vld [vmem:[%s1387 + $0x8] sm:$0xf]
        %v2057 = vld [vmem:[%s1387 + $0xc] sm:$0xf]
        %v2058 = vld [vmem:[%s1657] sm:$0x1]
        %v2059 = vld [vmem:[%s1397] sm:$0xf]
        %v2060 = vld [vmem:[%s1397 + $0x4] sm:$0xf]
        %v2061 = vld [vmem:[%s1397 + $0x8] sm:$0xf]
        %v2062 = vld [vmem:[%s1397 + $0xc] sm:$0xf]
        %v2063 = vld [vmem:[%s1660] sm:$0x1]
        %v2064 = vpack.c.bf16 %v2042, %v2042
        %v2066 = vperm.slane %v2048, 0
        %v2072 = vunpack.c.l.b16 %v2044
        %v2073 = vunpack.c.l.b16 %v2045
        %v2074 = vunpack.c.l.b16 %v2046
        %v2075 = vunpack.c.l.b16 %v2047
        %v2076 = vpack.c.b16 %v2073, %v2072
        %v2077 = vpack.c.b16 %v2075, %v2074
        %v2081 = vsel %vm1729, %v2064, 0
        %2083 = vmatpush.bf16.msra.mxu0 0
        %2084 = vmatpush.bf16.msra.mxu0 0
        %2085 = vmatpush.bf16.msra.mxu0 0
        %2086 = vmatpush.bf16.msra.mxu0 0
        %2087 = vmatpush.bf16.msra.mxu0 0
        %2088 = vmatpush.bf16.msra.mxu0 0
        %2089 = vmatpush.bf16.msra.mxu0 %v2077
        %2090 = vmatpush.bf16.msra.mxu0 %v2076
        %2091 = vmatmul.bf16.gmra.mxu0 %v2081
        %v2092 = vpop.f32.mrf.mxu0
        %v2093 = vadd.f32 %v2066, %v2092
        %v2094 = vpop.f32.mrf.mxu0
        %2095 = vdwg.mxu0
        %v2097 = vperm.slane %v2053, 0
        %v2103 = vunpack.c.l.b16 %v2049
        %v2104 = vunpack.c.l.b16 %v2050
        %v2105 = vunpack.c.l.b16 %v2051
        %v2106 = vunpack.c.l.b16 %v2052
        %v2107 = vpack.c.b16 %v2104, %v2103
        %v2108 = vpack.c.b16 %v2106, %v2105
        %v2112 = vsel %vm1729, %v2043, 0
        %2114 = vmatpush.bf16.msra.mxu0 0
        %2115 = vmatpush.bf16.msra.mxu0 0
        %2116 = vmatpush.bf16.msra.mxu0 0
        %2117 = vmatpush.bf16.msra.mxu0 0
        %2118 = vmatpush.bf16.msra.mxu0 0
        %2119 = vmatpush.bf16.msra.mxu0 0
        %2120 = vmatpush.bf16.msra.mxu0 %v2108
        %2121 = vmatpush.bf16.msra.mxu0 %v2107
        %2122 = vmatmul.bf16.gmra.mxu0 %v2112
        %v2123 = vpop.f32.mrf.mxu0
        %v2124 = vadd.f32 %v2097, %v2123
        %v2125 = vpop.f32.mrf.mxu0
        %2126 = vdwg.mxu0
        %v2128 = vperm.slane %v2058, 0
        %v2134 = vunpack.c.l.b16 %v2054
        %v2135 = vunpack.c.l.b16 %v2055
        %v2136 = vunpack.c.l.b16 %v2056
        %v2137 = vunpack.c.l.b16 %v2057
        %v2138 = vpack.c.b16 %v2135, %v2134
        %v2139 = vpack.c.b16 %v2137, %v2136
        %2142 = vmatpush.bf16.msra.mxu0 0
        %2143 = vmatpush.bf16.msra.mxu0 0
        %2144 = vmatpush.bf16.msra.mxu0 0
        %2145 = vmatpush.bf16.msra.mxu0 0
        %2146 = vmatpush.bf16.msra.mxu0 0
        %2147 = vmatpush.bf16.msra.mxu0 0
        %2148 = vmatpush.bf16.msra.mxu0 %v2139
        %2149 = vmatpush.bf16.msra.mxu0 %v2138
        %2150 = vmatmul.bf16.gmra.mxu0 %v2112
        %v2151 = vpop.f32.mrf.mxu0
        %v2152 = vadd.f32 %v2128, %v2151
        %v2153 = vpop.f32.mrf.mxu0
        %2154 = vdwg.mxu0
        %v2155 = vpack.c.bf16 %v2093, %v2093
        %v2156 = vpack.c.bf16 %v2124, %v2124
        %v2157 = vpack.c.bf16 %v2152, %v2152
        %v2159 = vsel %vm1805, %v2155, 0
        %v2162 = vsel %vm1805, %v2156, 0
        %2164 = vmatpush.bf16.xpose.msra.mxu0 0
        %2165 = vmatpush.bf16.xpose.msra.mxu0 0
        %2166 = vmatpush.bf16.xpose.msra.mxu0 0
        %2167 = vmatpush.bf16.xpose.msra.mxu0 0
        %2168 = vmatpush.bf16.xpose.msra.mxu0 0
        %2169 = vmatpush.bf16.xpose.msra.mxu0 0
        %2170 = vmatpush.bf16.xpose.msra.mxu0 0
        %2171 = vmatpush.bf16.xpose.msra.mxu0 %v2162
        %2172 = vmatmul.bf16.gmra.mxu0 %v2159
        %v2173 = vpop.f32.mrf.mxu0
        %v2174 = vadd.f32 0.0, %v2173
        %v2175 = vpop.f32.mrf.mxu0
        %2176 = vdwg.mxu0
        %v2177 = vmul.f32 %v2174, 0.25
        %v2178 = vsel %vm1692, %v2177, -10000.0
        %v2179 = vsel %vm1827, %v2178, -inf
        %2180 = vmax.xlane.f32.xlu0 %v2179
        %v2181 = vpop.xlane.xlu0 %2180
        %v2182 = vsub.f32 %v2178, %v2181
        %v2183 = vmul.f32 %v2182, 1.442695
        %v2184 = vpow.pop %v2183
        %v2185 = vsel %vm1827, %v2184, 0.0
        %2186 = vadd.xlane.f32.xlu0 %v2185
        %v2187 = vpop.xlane.xlu0 %2186
        %v2188 = vrcp.pop %v2187
        %v2189 = vmul.f32 %v2187, %v2188
        %v2190 = vsub.f32 1.0, %v2189
        %v2191 = vmul.f32 %v2188, %v2190
        %v2192 = vadd.f32 %v2188, %v2191
        %vm2193 = vweird.f32 %v2187
        %vm2194 = vweird.f32 %v2188
        %vm2195 = vmor %vm2193, %vm2194
        %v2196 = vsel %vm2195, %v2188, %v2192
        %v2197 = vand.u32 2147483647, %v2187
        %vm2198 = vcmp.eq.f32.partialorder %v2197, 8.507059e+37
        %v2199 = vand.u32 %v2187, 2147483648
        %v2200 = vor.u32 1.1754944e-38, %v2199
        %v2201 = vsel %vm2198, %v2200, %v2196
        %v2202 = vmul.f32 %v2184, %v2201
        %v2203 = vpack.c.bf16 %v2202, %v2202
        %v2205 = vsel %vm1827, %v2203, 0
        %v2208 = vsel %vm1856, %v2157, 0
        %2210 = vmatpush.bf16.msra.mxu0 0
        %2211 = vmatpush.bf16.msra.mxu0 0
        %2212 = vmatpush.bf16.msra.mxu0 0
        %2213 = vmatpush.bf16.msra.mxu0 0
        %2214 = vmatpush.bf16.msra.mxu0 0
        %2215 = vmatpush.bf16.msra.mxu0 0
        %2216 = vmatpush.bf16.msra.mxu0 0
        %2217 = vmatpush.bf16.msra.mxu0 %v2208
        %2218 = vmatmul.bf16.gmra.mxu0 %v2205
        %v2219 = vpop.f32.mrf.mxu0
        %v2220 = vadd.f32 0.0, %v2219
        %v2221 = vpop.f32.mrf.mxu0
        %2222 = vdwg.mxu0
        %v2223 = vpack.c.bf16 %v2220, %v2220
        %v2225 = vunpack.c.l.b16 %v2155
        %v2226 = vpack.c.b16 %v2225, %v2225
        %2227 = vrot.lane.b32.xlu0 %v2226, 112
        %v2228 = vpop.permute.xlu0 %2227
        %v2230 = vunpack.c.l.b16 %v2156
        %v2231 = vpack.c.b16 %v2230, %v2230
        %2232 = vrot.lane.b32.xlu0 %v2231, 112
        %v2233 = vpop.permute.xlu0 %2232
        %v2235 = vsel %vm1805, %v2228, 0
        %v2238 = vsel %vm1805, %v2233, 0
        %2240 = vmatpush.bf16.xpose.msra.mxu0 0
        %2241 = vmatpush.bf16.xpose.msra.mxu0 0
        %2242 = vmatpush.bf16.xpose.msra.mxu0 0
        %2243 = vmatpush.bf16.xpose.msra.mxu0 0
        %2244 = vmatpush.bf16.xpose.msra.mxu0 0
        %2245 = vmatpush.bf16.xpose.msra.mxu0 0
        %2246 = vmatpush.bf16.xpose.msra.mxu0 0
        %2247 = vmatpush.bf16.xpose.msra.mxu0 %v2238
        %2248 = vmatmul.bf16.gmra.mxu0 %v2235
        %v2249 = vpop.f32.mrf.mxu0
        %v2250 = vadd.f32 0.0, %v2249
        %v2251 = vpop.f32.mrf.mxu0
        %2252 = vdwg.mxu0
        %v2253 = vmul.f32 %v2250, 0.25
        %v2254 = vsel %vm1692, %v2253, -10000.0
        %v2255 = vsel %vm1827, %v2254, -inf
        %2256 = vmax.xlane.f32.xlu0 %v2255
        %v2257 = vpop.xlane.xlu0 %2256
        %v2258 = vsub.f32 %v2254, %v2257
        %v2259 = vmul.f32 %v2258, 1.442695
        %v2260 = vpow.pop %v2259
        %v2261 = vsel %vm1827, %v2260, 0.0
        %2262 = vadd.xlane.f32.xlu0 %v2261
        %v2263 = vpop.xlane.xlu0 %2262
        %v2264 = vrcp.pop %v2263
        %v2265 = vmul.f32 %v2263, %v2264
        %v2266 = vsub.f32 1.0, %v2265
        %v2267 = vmul.f32 %v2264, %v2266
        %v2268 = vadd.f32 %v2264, %v2267
        %vm2269 = vweird.f32 %v2263
        %vm2270 = vweird.f32 %v2264
        %vm2271 = vmor %vm2269, %vm2270
        %v2272 = vsel %vm2271, %v2264, %v2268
        %v2273 = vand.u32 2147483647, %v2263
        %vm2274 = vcmp.eq.f32.partialorder %v2273, 8.507059e+37
        %v2275 = vand.u32 %v2263, 2147483648
        %v2276 = vor.u32 1.1754944e-38, %v2275
        %v2277 = vsel %vm2274, %v2276, %v2272
        %v2278 = vmul.f32 %v2260, %v2277
        %v2279 = vpack.c.bf16 %v2278, %v2278
        %v2281 = vunpack.c.l.b16 %v2157
        %v2282 = vpack.c.b16 %v2281, %v2281
        %2283 = vrot.lane.b32.xlu0 %v2282, 112
        %v2284 = vpop.permute.xlu0 %2283
        %v2286 = vsel %vm1827, %v2279, 0
        %v2289 = vsel %vm1856, %v2284, 0
        %2291 = vmatpush.bf16.msra.mxu0 0
        %2292 = vmatpush.bf16.msra.mxu0 0
        %2293 = vmatpush.bf16.msra.mxu0 0
        %2294 = vmatpush.bf16.msra.mxu0 0
        %2295 = vmatpush.bf16.msra.mxu0 0
        %2296 = vmatpush.bf16.msra.mxu0 0
        %2297 = vmatpush.bf16.msra.mxu0 0
        %2298 = vmatpush.bf16.msra.mxu0 %v2289
        %2299 = vmatmul.bf16.gmra.mxu0 %v2286
        %v2300 = vpop.f32.mrf.mxu0
        %v2301 = vadd.f32 0.0, %v2300
        %v2302 = vpop.f32.mrf.mxu0
        %2303 = vdwg.mxu0
        %v2304 = vpack.c.bf16 %v2301, %v2301
        %v2307 = vunpack.c.l.b16 %v2061
        %v2308 = vunpack.c.l.b16 %v2062
        %v2309 = vpack.c.b16 %v2308, %v2307
        %v2312 = vsel %vm1805, %v2304, 0
        %2314 = vmatpush.bf16.msra.mxu0 0
        %2315 = vmatpush.bf16.msra.mxu0 0
        %2316 = vmatpush.bf16.msra.mxu0 0
        %2317 = vmatpush.bf16.msra.mxu0 0
        %2318 = vmatpush.bf16.msra.mxu0 0
        %2319 = vmatpush.bf16.msra.mxu0 0
        %2320 = vmatpush.bf16.msra.mxu0 0
        %2321 = vmatpush.bf16.msra.mxu0 %v2309
        %2322 = vmatmul.bf16.gmra.mxu0 %v2312
        %v2323 = vpop.f32.mrf.mxu0
        %v2324 = vadd.f32 0.0, %v2323
        %v2325 = vpop.f32.mrf.mxu0
        %2326 = vdwg.mxu0
        %v2329 = vunpack.c.l.b16 %v2059
        %v2330 = vunpack.c.l.b16 %v2060
        %v2331 = vpack.c.b16 %v2330, %v2329
        %v2334 = vsel %vm1805, %v2223, 0
        %2336 = vmatpush.bf16.msra.mxu0 0
        %2337 = vmatpush.bf16.msra.mxu0 0
        %2338 = vmatpush.bf16.msra.mxu0 0
        %2339 = vmatpush.bf16.msra.mxu0 0
        %2340 = vmatpush.bf16.msra.mxu0 0
        %2341 = vmatpush.bf16.msra.mxu0 0
        %2342 = vmatpush.bf16.msra.mxu0 0
        %2343 = vmatpush.bf16.msra.mxu0 %v2331
        %2344 = vmatmul.bf16.gmra.mxu0 %v2334
        %v2345 = vpop.f32.mrf.mxu0
        %v2346 = vadd.f32 %v2324, %v2345
        %v2347 = vpop.f32.mrf.mxu0
        %2348 = vdwg.mxu0
        %v2350 = vperm.slane %v2063, 0
        %v2352 = vadd.f32 %v2346, %v2350
        %v2353 = vadd.f32 %v2352, %v2042
        %v2354 = vld [vmem:[%s1663] sm:$0x1]
        %v2355 = vld [vmem:[%s1406] sm:$0x1]
        %v2356 = vsel %vm1729, %v2353, 0.0
        %2357 = vadd.xlane.f32.xlu0 %v2356
        %v2358 = vpop.xlane.xlu0 %2357
        %v2359 = vmul.f32 %v2358, %v2015
        %v2360 = vsub.f32 %v2353, %v2359
        %v2361 = vmul.f32 %v2360, %v2360
        %v2362 = vsel %vm1729, %v2361, 0.0
        %2363 = vadd.xlane.f32.xlu0 %v2362
        %v2364 = vpop.xlane.xlu0 %2363
        %v2365 = vmul.f32 %v2364, %v2015
        %v2366 = vadd.f32 %v2365, 1e-12
        %v2367 = vrsqrt.pop %v2366
        %v2368 = vmul.f32 %v2367, %v2366
        %v2369 = vmul.f32 %v2368, %v2367
        %v2370 = vmul.f32 0.5, %v2369
        %v2371 = vsub.f32 1.5, %v2370
        %v2372 = vmul.f32 %v2367, %v2371
        %vm2373 = vweird.f32 %v2366
        %vm2374 = vweird.f32 %v2367
        %vm2375 = vmor %vm2373, %vm2374
        %v2376 = vsel %vm2375, %v2367, %v2372
        %v2377 = vmul.f32 %v2360, %v2376
        %v2379 = vperm.slane %v2354, 0
        %v2381 = vmul.f32 %v2377, %v2379
        %v2383 = vperm.slane %v2355, 0
        %v2385 = vadd.f32 %v2381, %v2383
        %v2386 = vpack.c.bf16 %v2385, %v2385
        %v2387 = vld [vmem:[%s1416] sm:$0xf]
        %v2388 = vld [vmem:[%s1416 + $0x4] sm:$0xf]
        %v2389 = vld [vmem:[%s1416 + $0x8] sm:$0xf]
        %v2390 = vld [vmem:[%s1416 + $0xc] sm:$0xf]
        %v2391 = vld [vmem:[%s1666] sm:$0x1]
        %v2393 = vperm.slane %v2391, 0
        %v2399 = vunpack.c.l.b16 %v2387
        %v2400 = vunpack.c.l.b16 %v2388
        %v2401 = vunpack.c.l.b16 %v2389
        %v2402 = vunpack.c.l.b16 %v2390
        %v2403 = vpack.c.b16 %v2400, %v2399
        %v2404 = vpack.c.b16 %v2402, %v2401
        %v2408 = vsel %vm1729, %v2386, 0
        %2410 = vmatpush.bf16.msra.mxu0 0
        %2411 = vmatpush.bf16.msra.mxu0 0
        %2412 = vmatpush.bf16.msra.mxu0 0
        %2413 = vmatpush.bf16.msra.mxu0 0
        %2414 = vmatpush.bf16.msra.mxu0 0
        %2415 = vmatpush.bf16.msra.mxu0 0
        %2416 = vmatpush.bf16.msra.mxu0 %v2404
        %2417 = vmatpush.bf16.msra.mxu0 %v2403
        %2418 = vmatmul.bf16.gmra.mxu0 %v2408
        %v2419 = vpop.f32.mrf.mxu0
        %v2420 = vadd.f32 %v2393, %v2419
        %v2421 = vpop.f32.mrf.mxu0
        %2422 = vdwg.mxu0
        %v2423 = vmax.f32 %v2420, 0.0
        %v2424 = vpack.c.bf16 %v2423, %v2423
        %v2425 = vld [vmem:[%s1671] sm:$0xf]
        %v2426 = vld [vmem:[%s1671 + $0x4] sm:$0xf]
        %v2427 = vld [vmem:[%s1671 + $0x8] sm:$0xf]
        %v2428 = vld [vmem:[%s1671 + $0xc] sm:$0xf]
        %v2429 = vld [vmem:[%s1671 + $0x10] sm:$0xf]
        %v2430 = vld [vmem:[%s1671 + $0x14] sm:$0xf]
        %v2431 = vld [vmem:[%s1671 + $0x18] sm:$0xf]
        %v2432 = vld [vmem:[%s1671 + $0x1c] sm:$0xf]
        %v2433 = vld [vmem:[%s1674] sm:$0x1]
        %v2435 = vperm.slane %v2433, 0
        %v2445 = vunpack.c.l.b16 %v2425
        %v2446 = vunpack.c.l.b16 %v2426
        %v2447 = vunpack.c.l.b16 %v2427
        %v2448 = vunpack.c.l.b16 %v2428
        %v2449 = vunpack.c.l.b16 %v2429
        %v2450 = vunpack.c.l.b16 %v2430
        %v2451 = vunpack.c.l.b16 %v2431
        %v2452 = vunpack.c.l.b16 %v2432
        %v2453 = vpack.c.b16 %v2446, %v2445
        %v2454 = vpack.c.b16 %v2448, %v2447
        %v2455 = vpack.c.b16 %v2450, %v2449
        %v2456 = vpack.c.b16 %v2452, %v2451
        %vm2461 = vcmask 523264
        %v2463 = vsel %vm2461, %v2424, 0
        %2465 = vmatpush.bf16.msra.mxu0 0
        %2466 = vmatpush.bf16.msra.mxu0 0
        %2467 = vmatpush.bf16.msra.mxu0 0
        %2468 = vmatpush.bf16.msra.mxu0 0
        %2469 = vmatpush.bf16.msra.mxu0 %v2456
        %2470 = vmatpush.bf16.msra.mxu0 %v2455
        %2471 = vmatpush.bf16.msra.mxu0 %v2454
        %2472 = vmatpush.bf16.msra.mxu0 %v2453
        %2473 = vmatmul.bf16.gmra.mxu0 %v2463
        %v2474 = vpop.f32.mrf.mxu0
        %v2475 = vadd.f32 %v2435, %v2474
        %v2476 = vpop.f32.mrf.mxu0
        %2477 = vdwg.mxu0
        %v2478 = vadd.f32 %v2475, %v2385
        %v2479 = vld [vmem:[%s1677] sm:$0x1]
        %v2480 = vld [vmem:[%s1425] sm:$0x1]
        %v2481 = vsel %vm1729, %v2478, 0.0
        %2482 = vadd.xlane.f32.xlu0 %v2481
        %v2483 = vpop.xlane.xlu0 %2482
        %v2484 = vmul.f32 %v2483, %v2015
        %v2485 = vsub.f32 %v2478, %v2484
        %v2486 = vmul.f32 %v2485, %v2485
        %v2487 = vsel %vm1729, %v2486, 0.0
        %2488 = vadd.xlane.f32.xlu0 %v2487
        %v2489 = vpop.xlane.xlu0 %2488
        %v2490 = vmul.f32 %v2489, %v2015
        %v2491 = vadd.f32 %v2490, 1e-12
        %v2492 = vrsqrt.pop %v2491
        %v2493 = vmul.f32 %v2492, %v2491
        %v2494 = vmul.f32 %v2493, %v2492
        %v2495 = vmul.f32 0.5, %v2494
        %v2496 = vsub.f32 1.5, %v2495
        %v2497 = vmul.f32 %v2492, %v2496
        %vm2498 = vweird.f32 %v2491
        %vm2499 = vweird.f32 %v2492
        %vm2500 = vmor %vm2498, %vm2499
        %v2501 = vsel %vm2500, %v2492, %v2497
        %v2502 = vmul.f32 %v2485, %v2501
        %v2504 = vperm.slane %v2479, 0
        %v2506 = vmul.f32 %v2502, %v2504
        %v2508 = vperm.slane %v2480, 0
        %v2510 = vadd.f32 %v2506, %v2508
        %2511 = vst.msk [vmem:[#allocation2] sm:$0xff] %vm1729, %v2510
        %p2512 = scmp.eq.s32.totalorder %s101, 1
        // Predicated region
        $region197: #{tpu_custom_call.1} parent=139 // pred_check
          %p2513 = pneg %p2512
        $region198: #{tpu_custom_call.1} parent=139 // pred_check_branch
          %2515 = sbr.rel (%p2513) target = $region200
        $region199: #{tpu_custom_call.1} parent=139 // pred_region
          %v2516 = vpack.c.bf16 %v2510, %v2510
          %vm2517 = vcmask 257024
          %2518 = vst.msk [vmem:[%s1618] sm:$0xf] %vm2517, %v2516
        $region200: #{tpu_custom_call.1} parent=139 // pred_fallthru
          _
        %s2519 = sand.u32 %s896, 1
        %s2520 = scalar_lea.sflag [#allocation5], %s2519
        %s2521 = sand.u32 %s896, 1
        %s2522 = smul.addr %s2521, 4
        %s2523 = scalar_lea.vmem [#allocation24], %s2522
        // Predicated region
        $region201: #{tpu_custom_call.1} parent=139 // pred_check
          %p2524 = pneg %p906
        $region202: #{tpu_custom_call.1} parent=139 // pred_check_branch
          %2526 = sbr.rel (%p2524) target = $region204
        $region203: #{tpu_custom_call.1} parent=139 // pred_region
          %2528 = vsyncadd %s2520, 0
          %s2529 = smul.addr %s100, 4
          %s2530 = scalar_lea.hbm %s61, %s2529
          %s2532 = sshll.u32 %s2523, 4
          %s2533 = int_to_ptr.vmem [resolvable:$true] %s2532
          %s2534 = sshll.u32 %s2530, 4
          %s2535 = int_to_ptr.hbm [resolvable:$true] %s2534
          %2537 = dma.vmem_to_hbm [thread:$0]  %s2533, 64, %s2535, %s2520
        $region204: #{tpu_custom_call.1} parent=139 // pred_fallthru
          _
      $region140: #{tpu_custom_call.1} parent=5 // pred_fallthru
        _
      %p2538 = scmp.le.s32.totalorder 2, %s91
      // Predicated region
      $region205: #{tpu_custom_call.1} parent=5 // pred_check
        %p2539 = pneg %p2538
      $region206: #{tpu_custom_call.1} parent=5 // pred_check_branch
        %2541 = sbr.rel (%p2539) target = $region208
      $region207: #{tpu_custom_call.1} parent=5 // pred_region
        %s2542 = ssub.s32 %s91, 2
        // Predicated region
        $region209: #{tpu_custom_call.1} parent=207 // pred_check
          %p2543 = pneg %p912
        $region210: #{tpu_custom_call.1} parent=207 // pred_check_branch
          %2545 = sbr.rel (%p2543) target = $region212
        $region211: #{tpu_custom_call.1} parent=207 // pred_region
          %s2546 = sand.u32 %s897, 1
          %s2547 = scalar_lea.sflag [#allocation5], %s2546
          %s2548 = sand.u32 %s897, 1
          %s2549 = smul.addr %s2548, 4
          %s2550 = scalar_lea.vmem [#allocation24], %s2549
          %2552 = dma.done %s2547, 64
        $region212: #{tpu_custom_call.1} parent=207 // pred_fallthru
          _
      $region208: #{tpu_custom_call.1} parent=5 // pred_fallthru
        _
    $region6: #{tpu_custom_call.1} parent=1 // loop_footer
      %s95 = sadd.s32 1, %s91
    $region7: #{tpu_custom_call.1} parent=1 // loop_footer_branch
      %90 = sbr.rel target = $region3
    $region8: #{tpu_custom_call.1} parent=1 // loop_exit
      _
    %2553 = vsyncpa [#allocation4], 1
    %s2554 = scalar_lea.sflag [#allocation4], 1
    %2555 = vsyncpa %s2554, 1
    %2556 = vsyncpa [#allocation7], 1
    %s2557 = scalar_lea.sflag [#allocation7], 1
    %2558 = vsyncpa %s2557, 1
    %2559 = vsyncpa [#allocation10], 1
    %s2560 = scalar_lea.sflag [#allocation10], 1
    %2561 = vsyncpa %s2560, 1
    %2562 = vsyncpa [#allocation13], 1
    %s2563 = scalar_lea.sflag [#allocation13], 1
    %2564 = vsyncpa %s2563, 1
    %2565 = vsyncpa [#allocation16], 1
    %s2566 = scalar_lea.sflag [#allocation16], 1
    %2567 = vsyncpa %s2566, 1
    %2568 = vsyncpa [#allocation19], 1
    %s2569 = scalar_lea.sflag [#allocation19], 1
    %2570 = vsyncpa %s2569, 1
    %2571 = vsyncpa [#allocation22], 1
    %s2572 = scalar_lea.sflag [#allocation22], 1
    %2573 = vsyncpa %s2572, 1
    %2574 = vsyncpa [#allocation5], 1
    %s2575 = scalar_lea.sflag [#allocation5], 1
    %2576 = vsyncpa %s2575, 1

</llo_original>
